<compile_context>
chip_gen: v5e
topology: v5e:2x2
jax: 0.10.0
libtpu: 0.0.40
codegen_flags: <defaults>
</compile_context>

<pallas_src>
import functools

import jax
import jax.numpy as jnp
from jax.experimental import pallas as pl
from jax.experimental.pallas import tpu as pltpu


def _round_up(a, b):
    return (a + b - 1) // b * b


def attention_block_kernel(x_ref, p_ref, w1t_ref, b1_ref, w2t_ref, b2_ref,
                           o_ref, *, alpha, C, T, V):
    # x_ref:   (Nb, D)      batch block of NCTV-flat rows, D = C*T*V
    # p_ref:   (D, T)       constant pooling matrix, P[c*T*V + t*V + v, t] = 1/(C*V)
    # w1t_ref: (T, T)       first Linear weight, transposed
    # b1_ref:  (1, T)
    # w2t_ref: (T, T*T)     second Linear weight, transposed
    # b2_ref:  (1, T*T)
    # o_ref:   (Nb, D)      output block, NCTV-flat rows
    Nb = x_ref.shape[0]
    CV = C * V

    x = x_ref[...]                                              # (Nb, D)

    # AdaptiveAvgPool2d(1) over (C, V) per t: one MXU matmul with a constant
    # pooling matrix (keeps everything lane-dense, no 4D reshape + reduce).
    pool = jnp.dot(x, p_ref[...], preferred_element_type=jnp.float32)      # (Nb, T)

    # fcn[0]: Linear(T, T) + ReLU
    h = jnp.dot(pool, w1t_ref[...], preferred_element_type=jnp.float32) + b1_ref[...]
    h = jnp.maximum(h, 0.0)                                     # (Nb, T)

    # fcn[2]: Linear(T, T*T) as a single MXU matmul.
    f = jnp.dot(h, w2t_ref[...], preferred_element_type=jnp.float32) + b2_ref[...]  # (Nb, T*T)

    # Softmax over the *entire* T*T row (torch softmax(dim=1) on (N, T*T)).
    f = f - jnp.max(f, axis=-1, keepdims=True)
    e = jnp.exp(f)
    s = e / jnp.sum(e, axis=-1, keepdims=True)                  # (Nb, T*T)

    # x3[n] = x1[n] @ x2[n] with x1 = softmax.view(T, T) and x2 = raw
    # reinterpretation of the NCTV row as (T, C*V)  (exactly torch's .view).
    x1 = s.reshape(Nb, T, T)
    x2 = x.reshape(Nb, T, CV)
    x3 = jnp.einsum('ntk,nkj->ntj', x1, x2,
                    preferred_element_type=jnp.float32)          # (Nb, T, CV)

    # Reorder (t, c, v) -> (c, t, v) so residual-add and store stay in the
    # NCTV-flat lane-dense layout: one unmasked full-tile store.
    parts = [x3[:, :, c * V:(c + 1) * V].reshape(Nb, T * V) for c in range(C)]
    add = jnp.concatenate(parts, axis=-1)                        # (Nb, D)

    o_ref[...] = x + alpha * add


def attention_block(x, w1, b1, w2, b2, alpha, *, block_n=128):
    """x: (N, C, T, V); w1: (T, T); b1: (T,); w2: (T*T, T); b2: (T*T,)."""
    N, C, T, V = x.shape
    D = C * T * V
    x_flat = jnp.asarray(x, jnp.float32).reshape(N, D)   # free: NCTV is contiguous

    # Batch blocking: Nb rows per grid step (multiple of 8), pad N up to a
    # multiple of Nb with zero rows (zeros are benign; padded rows are sliced
    # off at the end).  block_n=128 keeps worst-case VMEM well under the
    # scoped default on all of v5e / v6e / v7x; raise it (with
    # vmem_limit_bytes) for very large N if desired.
    nb = min(int(block_n), _round_up(N, 8))
    n_pad = _round_up(N, nb)
    if n_pad != N:
        x_flat = jnp.pad(x_flat, ((0, n_pad - N), (0, 0)))

    # Constant pooling matrix: P[c*T*V + t*V + v, t] = 1 / (C*V).
    t_of_m = (jnp.arange(D) // V) % T
    p_mat = jax.nn.one_hot(t_of_m, T, dtype=jnp.float32) / float(C * V)    # (D, T)

    w1t = jnp.asarray(w1, jnp.float32).T                          # (T, T)
    b1r = jnp.asarray(b1, jnp.float32).reshape(1, T)              # (1, T)
    w2t = jnp.asarray(w2, jnp.float32).T                          # (T, T*T)
    b2r = jnp.asarray(b2, jnp.float32).reshape(1, T * T)          # (1, T*T)

    kernel = functools.partial(attention_block_kernel,
                               alpha=float(alpha), C=C, T=T, V=V)

    out_flat = pl.pallas_call(
        kernel,
        out_shape=jax.ShapeDtypeStruct((n_pad, D), jnp.float32),
        grid_spec=pltpu.PrefetchScalarGridSpec(
            num_scalar_prefetch=0,
            grid=(n_pad // nb,),
            in_specs=[
                pl.BlockSpec((nb, D), lambda i: (i, 0)),
                pl.BlockSpec((D, T), lambda i: (0, 0)),
                pl.BlockSpec((T, T), lambda i: (0, 0)),
                pl.BlockSpec((1, T), lambda i: (0, 0)),
                pl.BlockSpec((T, T * T), lambda i: (0, 0)),
                pl.BlockSpec((1, T * T), lambda i: (0, 0)),
            ],
            out_specs=pl.BlockSpec((nb, D), lambda i: (i, 0)),
        ),
        compiler_params=pltpu.CompilerParams(
            dimension_semantics=("parallel",)),
    )(x_flat, p_mat, w1t, b1r, w2t, b2r)

    return out_flat[:N].reshape(N, C, T, V)


def attention_block_ref(x, w1, b1, w2, b2, alpha):
    """Pure-JAX reference mirroring the PyTorch forward exactly."""
    N, C, T, V = x.shape
    xp = jnp.transpose(x, (0, 2, 1, 3))              # (N, T, C, V)
    pool = jnp.mean(xp, axis=(2, 3))                 # (N, T)
    h = jax.nn.relu(pool @ w1.T + b1)                # (N, T)
    f = h @ w2.T + b2                                # (N, T*T)
    s = jax.nn.softmax(f, axis=1)                    # softmax over whole T*T
    x1 = s.reshape(N, T, T)
    x2 = x.reshape(N, T, C * V)                      # same raw "view" as torch
    x3 = jnp.einsum('ntk,nkm->ntm', x1, x2).reshape(N, T, C, V)
    out = xp + alpha * x3
    return jnp.transpose(out, (0, 2, 1, 3))          # (N, C, T, V)


if __name__ == "__main__":
    N, C, T, V = 20, 4, 16, 16       # in_channels == T == 16
    alpha = 0.5

    key = jax.random.PRNGKey(0)
    kx, k1, k2, k3, k4 = jax.random.split(key, 5)
    x = jax.random.normal(kx, (N, C, T, V), dtype=jnp.float32)
    w1 = jax.random.normal(k1, (T, T), dtype=jnp.float32) * 0.1
    b1 = jax.random.normal(k2, (T,), dtype=jnp.float32) * 0.1
    w2 = jax.random.normal(k3, (T * T, T), dtype=jnp.float32) * 0.1
    b2 = jax.random.normal(k4, (T * T,), dtype=jnp.float32) * 0.1

    with jax.default_matmul_precision("highest"):
        ref = attention_block_ref(x, w1, b1, w2, b2, alpha)

    # Single-block path (default block_n).
    out = jax.block_until_ready(attention_block(x, w1, b1, w2, b2, alpha))
    assert out.shape == (N, C, T, V)
    assert jnp.allclose(out, ref, rtol=1e-5, atol=1e-5), "mismatch vs reference"

    # Multi-block grid + batch-padding path (N=20 padded to 24, grid=(3,)).
    out2 = jax.block_until_ready(
        attention_block(x, w1, b1, w2, b2, alpha, block_n=8))
    assert jnp.allclose(out2, ref, rtol=1e-5, atol=1e-5), "mismatch (blocked)"

    print("KERNEL_OK")
</pallas_src>

<mosaic_0001>
module attributes {stable_mosaic.version = 11 : i64} {
  func.func @attention_block_kernel(%arg0: i32, %arg1: memref<24x1024xf32, #tpu.memory_space<vmem>>, %arg2: memref<1024x16xf32, #tpu.memory_space<vmem>>, %arg3: memref<16x16xf32, #tpu.memory_space<vmem>>, %arg4: memref<1x16xf32, #tpu.memory_space<vmem>>, %arg5: memref<16x256xf32, #tpu.memory_space<vmem>>, %arg6: memref<1x256xf32, #tpu.memory_space<vmem>>, %arg7: memref<24x1024xf32, #tpu.memory_space<vmem>>) attributes {dimension_semantics = [#tpu.dimension_semantics<parallel>], iteration_bounds = array<i64: 1>, scalar_prefetch = 0 : i64, scratch_operands = 0 : i64, tpu.core_type = #tpu.core_type<tc>, window_params = [{transform_indices = @transform_0, window_bounds = array<i64: 24, 1024>}, {pipeline_mode = #tpu.pipeline_mode<synchronous>, transform_indices = @transform_1, window_bounds = array<i64: 1024, 16>}, {pipeline_mode = #tpu.pipeline_mode<synchronous>, transform_indices = @transform_2, window_bounds = array<i64: 16, 16>}, {pipeline_mode = #tpu.pipeline_mode<synchronous>, transform_indices = @transform_3, window_bounds = array<i64: 1, 16>}, {pipeline_mode = #tpu.pipeline_mode<synchronous>, transform_indices = @transform_4, window_bounds = array<i64: 16, 256>}, {pipeline_mode = #tpu.pipeline_mode<synchronous>, transform_indices = @transform_5, window_bounds = array<i64: 1, 256>}, {transform_indices = @transform_6, window_bounds = array<i64: 24, 1024>}]} {
    %c0 = arith.constant 0 : index
    %c0_0 = arith.constant 0 : index
    %0 = vector.load %arg1[%c0, %c0_0] : memref<24x1024xf32, #tpu.memory_space<vmem>>, vector<24x1024xf32>
    %c0_1 = arith.constant 0 : index
    %c0_2 = arith.constant 0 : index
    %1 = vector.load %arg2[%c0_1, %c0_2] : memref<1024x16xf32, #tpu.memory_space<vmem>>, vector<1024x16xf32>
    %cst = arith.constant dense<0.000000e+00> : vector<24x16xf32>
    %2 = tpu.matmul %0, %1, %cst {dimension_numbers = #tpu.dot_dimension_numbers<[1], [0], [0], [1], [0, 0, 1, 1], [], []>} : vector<24x1024xf32>, vector<1024x16xf32>, vector<24x16xf32> -> vector<24x16xf32>
    %c0_3 = arith.constant 0 : index
    %c0_4 = arith.constant 0 : index
    %3 = vector.load %arg3[%c0_3, %c0_4] : memref<16x16xf32, #tpu.memory_space<vmem>>, vector<16x16xf32>
    %cst_5 = arith.constant dense<0.000000e+00> : vector<24x16xf32>
    %4 = tpu.matmul %2, %3, %cst_5 {dimension_numbers = #tpu.dot_dimension_numbers<[1], [0], [0], [1], [0, 0, 1, 1], [], []>} : vector<24x16xf32>, vector<16x16xf32>, vector<24x16xf32> -> vector<24x16xf32>
    %c0_6 = arith.constant 0 : index
    %c0_7 = arith.constant 0 : index
    %5 = vector.load %arg4[%c0_6, %c0_7] : memref<1x16xf32, #tpu.memory_space<vmem>>, vector<1x16xf32>
    %6 = vector.broadcast %5 : vector<1x16xf32> to vector<24x16xf32>
    %7 = arith.addf %4, %6 : vector<24x16xf32>
    %cst_8 = arith.constant 0.000000e+00 : f32
    %8 = vector.broadcast %cst_8 : f32 to vector<24x16xf32>
    %9 = arith.maximumf %7, %8 : vector<24x16xf32>
    %c0_9 = arith.constant 0 : index
    %c0_10 = arith.constant 0 : index
    %10 = vector.load %arg5[%c0_9, %c0_10] : memref<16x256xf32, #tpu.memory_space<vmem>>, vector<16x256xf32>
    %cst_11 = arith.constant dense<0.000000e+00> : vector<24x256xf32>
    %11 = tpu.matmul %9, %10, %cst_11 {dimension_numbers = #tpu.dot_dimension_numbers<[1], [0], [0], [1], [0, 0, 1, 1], [], []>} : vector<24x16xf32>, vector<16x256xf32>, vector<24x256xf32> -> vector<24x256xf32>
    %c0_12 = arith.constant 0 : index
    %c0_13 = arith.constant 0 : index
    %12 = vector.load %arg6[%c0_12, %c0_13] : memref<1x256xf32, #tpu.memory_space<vmem>>, vector<1x256xf32>
    %13 = vector.broadcast %12 : vector<1x256xf32> to vector<24x256xf32>
    %14 = arith.addf %11, %13 : vector<24x256xf32>
    %cst_14 = arith.constant dense<0xFF800000> : vector<24xf32>
    %15 = vector.multi_reduction <maximumf>, %14, %cst_14 [1] : vector<24x256xf32> to vector<24xf32>
    %16 = vector.shape_cast %15 : vector<24xf32> to vector<24x1xf32>
    %17 = vector.broadcast %16 : vector<24x1xf32> to vector<24x256xf32>
    %18 = arith.subf %14, %17 : vector<24x256xf32>
    %19 = math.exp %18 : vector<24x256xf32>
    %cst_15 = arith.constant dense<0.000000e+00> : vector<24xf32>
    %20 = vector.multi_reduction <add>, %19, %cst_15 [1] : vector<24x256xf32> to vector<24xf32>
    %21 = vector.shape_cast %20 : vector<24xf32> to vector<24x1xf32>
    %22 = vector.broadcast %21 : vector<24x1xf32> to vector<24x256xf32>
    %23 = arith.divf %19, %22 : vector<24x256xf32>
    %24 = vector.shape_cast %23 : vector<24x256xf32> to vector<24x16x16xf32>
    %25 = vector.shape_cast %0 : vector<24x1024xf32> to vector<24x16x64xf32>
    "tpu.trace_start"() <{level = 10 : i32, message = "ntk,nkj->ntj"}> : () -> ()
    %cst_16 = arith.constant dense<0.000000e+00> : vector<24x16x64xf32>
    %26 = tpu.matmul %24, %25, %cst_16 {dimension_numbers = #tpu.dot_dimension_numbers<[2], [1], [1], [2], [0, 0, 0, 1, 1, 2], [0], [0]>} : vector<24x16x16xf32>, vector<24x16x64xf32>, vector<24x16x64xf32> -> vector<24x16x64xf32>
    "tpu.trace_stop"() : () -> ()
    %27 = vector.extract_strided_slice %26 {offsets = [0, 0, 0], sizes = [24, 16, 16], strides = [1, 1, 1]} : vector<24x16x64xf32> to vector<24x16x16xf32>
    %28 = vector.shape_cast %27 : vector<24x16x16xf32> to vector<24x256xf32>
    %29 = vector.extract_strided_slice %26 {offsets = [0, 0, 16], sizes = [24, 16, 16], strides = [1, 1, 1]} : vector<24x16x64xf32> to vector<24x16x16xf32>
    %30 = vector.shape_cast %29 : vector<24x16x16xf32> to vector<24x256xf32>
    %31 = vector.extract_strided_slice %26 {offsets = [0, 0, 32], sizes = [24, 16, 16], strides = [1, 1, 1]} : vector<24x16x64xf32> to vector<24x16x16xf32>
    %32 = vector.shape_cast %31 : vector<24x16x16xf32> to vector<24x256xf32>
    %33 = vector.extract_strided_slice %26 {offsets = [0, 0, 48], sizes = [24, 16, 16], strides = [1, 1, 1]} : vector<24x16x64xf32> to vector<24x16x16xf32>
    %34 = vector.shape_cast %33 : vector<24x16x16xf32> to vector<24x256xf32>
    %35 = tpu.concatenate %28, %30, %32, %34 in 1 : vector<24x256xf32>, vector<24x256xf32>, vector<24x256xf32>, vector<24x256xf32> -> vector<24x1024xf32>
    %cst_17 = arith.constant 5.000000e-01 : f32
    %36 = vector.broadcast %cst_17 : f32 to vector<24x1024xf32>
    %37 = arith.mulf %36, %35 : vector<24x1024xf32>
    %38 = arith.addf %0, %37 : vector<24x1024xf32>
    %c0_18 = arith.constant 0 : index
    %c0_19 = arith.constant 0 : index
    %39 = vector.load %arg7[%c0_18, %c0_19] : memref<24x1024xf32, #tpu.memory_space<vmem>>, vector<24x1024xf32>
    tpu.vector_store %arg7[%c0_18, %c0_19], %38 {strides = array<i32>} : memref<24x1024xf32, #tpu.memory_space<vmem>>, vector<24x1024xf32>,
    return
  }
  func.func @transform_0(%arg0: i32) -> (i32, i32) {
    %c0_i32 = arith.constant 0 : i32
    %c0_i32_0 = arith.constant 0 : i32
    return %arg0, %c0_i32 : i32, i32
  }
  func.func @transform_1(%arg0: i32) -> (i32, i32) {
    %c0_i32 = arith.constant 0 : i32
    %c0_i32_0 = arith.constant 0 : i32
    %c0_i32_1 = arith.constant 0 : i32
    return %c0_i32, %c0_i32_0 : i32, i32
  }
  func.func @transform_2(%arg0: i32) -> (i32, i32) {
    %c0_i32 = arith.constant 0 : i32
    %c0_i32_0 = arith.constant 0 : i32
    %c0_i32_1 = arith.constant 0 : i32
    return %c0_i32, %c0_i32_0 : i32, i32
  }
  func.func @transform_3(%arg0: i32) -> (i32, i32) {
    %c0_i32 = arith.constant 0 : i32
    %c0_i32_0 = arith.constant 0 : i32
    %c0_i32_1 = arith.constant 0 : i32
    return %c0_i32, %c0_i32_0 : i32, i32
  }
  func.func @transform_4(%arg0: i32) -> (i32, i32) {
    %c0_i32 = arith.constant 0 : i32
    %c0_i32_0 = arith.constant 0 : i32
    %c0_i32_1 = arith.constant 0 : i32
    return %c0_i32, %c0_i32_0 : i32, i32
  }
  func.func @transform_5(%arg0: i32) -> (i32, i32) {
    %c0_i32 = arith.constant 0 : i32
    %c0_i32_0 = arith.constant 0 : i32
    %c0_i32_1 = arith.constant 0 : i32
    return %c0_i32, %c0_i32_0 : i32, i32
  }
  func.func @transform_6(%arg0: i32) -> (i32, i32) {
    %c0_i32 = arith.constant 0 : i32
    %c0_i32_0 = arith.constant 0 : i32
    return %arg0, %c0_i32 : i32, i32
  }
}

</mosaic_0001>

<llo_original>
// kernel: tpu_custom_call.1
$region0: #{tpu_custom_call.1}
  #allocation0 [shape = 'u32[]', space=smem, size = 0x4, offset = 0x4, fixed_abs, tag = 'smem constant byte address 0x4 - core index']
  #allocation1 [shape = 'u32[72,128]{1,0:T(1,128)}', space=vmem, size = 0x9000, scoped, tag = 'internal scratch']
  %s0 = inlined_call_operand.vmem [shape: f32[24,1024], index: 0, kind: input, shape index: {}]
  %s1 = inlined_call_operand.vmem [shape: f32[1024,16], index: 1, kind: input, shape index: {}]
  %s2 = inlined_call_operand.vmem [shape: f32[16,16], index: 2, kind: input, shape index: {}]
  %s3 = inlined_call_operand.vmem [shape: f32[1,16], index: 3, kind: input, shape index: {}]
  %s4 = inlined_call_operand.vmem [shape: f32[16,256], index: 4, kind: input, shape index: {}]
  %s5 = inlined_call_operand.vmem [shape: f32[1,256], index: 5, kind: input, shape index: {}]
  %s6 = inlined_call_operand.hbm [shape: f32[24,1024], index: 6, kind: output, shape index: {}]
  %s7 = sld [smem:[#allocation0]]
  $region34: #{tpu_custom_call.1} parent=0
    _
  %s9 = ssub.s32 1, %s7
  %s10 = scalar_select 0, %s9, %s7
  $region1: #{tpu_custom_call.1} parent=0
    #allocation2 [shape = 'u8[98304]{0}', space=vmem, size = 0x18000, scoped, tag = 'output window, operand 0, single buffered']
    #allocation3 [shape = 's32[1]{0}', space=sflag, size = 0x4, scoped, tag = 'scoped memory for tpu_custom_call.1']
    %11 = vsyncpa [#allocation3], 0
    // Predicated region
    $region2: #{tpu_custom_call.1} parent=1 // pred_check
      _
    $region3: #{tpu_custom_call.1} parent=1 // pred_check_branch
      %13 = sbr.rel (0) target = $region5
    $region4: #{tpu_custom_call.1} parent=1 // pred_region
      _
    $region5: #{tpu_custom_call.1} parent=1 // pred_fallthru
      _
    // Predicated region
    $region6: #{tpu_custom_call.1} parent=1 // pred_check
      _
    $region7: #{tpu_custom_call.1} parent=1 // pred_check_branch
      %15 = sbr.rel (0) target = $region9
    $region8: #{tpu_custom_call.1} parent=1 // pred_region
      _
    $region9: #{tpu_custom_call.1} parent=1 // pred_fallthru
      _
    // Predicated region
    $region10: #{tpu_custom_call.1} parent=1 // pred_check
      _
    $region11: #{tpu_custom_call.1} parent=1 // pred_check_branch
      %17 = sbr.rel (0) target = $region13
    $region12: #{tpu_custom_call.1} parent=1 // pred_region
      _
    $region13: #{tpu_custom_call.1} parent=1 // pred_fallthru
      _
    // Predicated region
    $region14: #{tpu_custom_call.1} parent=1 // pred_check
      _
    $region15: #{tpu_custom_call.1} parent=1 // pred_check_branch
      %19 = sbr.rel (0) target = $region17
    $region16: #{tpu_custom_call.1} parent=1 // pred_region
      _
    $region17: #{tpu_custom_call.1} parent=1 // pred_fallthru
      _
    // Predicated region
    $region18: #{tpu_custom_call.1} parent=1 // pred_check
      _
    $region19: #{tpu_custom_call.1} parent=1 // pred_check_branch
      %21 = sbr.rel (0) target = $region21
    $region20: #{tpu_custom_call.1} parent=1 // pred_region
      _
    $region21: #{tpu_custom_call.1} parent=1 // pred_fallthru
      _
    // Predicated region
    $region22: #{tpu_custom_call.1} parent=1 // pred_check
      _
    $region23: #{tpu_custom_call.1} parent=1 // pred_check_branch
      %23 = sbr.rel (0) target = $region25
    $region24: #{tpu_custom_call.1} parent=1 // pred_region
      _
    $region25: #{tpu_custom_call.1} parent=1 // pred_fallthru
      _
    %v24 = vld [vmem:[%s0] sm:$0xff]
    %v25 = vld [vmem:[%s0 + $0x8] sm:$0xff]
    %v26 = vld [vmem:[%s0 + $0x10] sm:$0xff]
    %v27 = vld [vmem:[%s0 + $0x18] sm:$0xff]
    %v28 = vld [vmem:[%s0 + $0x20] sm:$0xff]
    %v29 = vld [vmem:[%s0 + $0x28] sm:$0xff]
    %v30 = vld [vmem:[%s0 + $0x30] sm:$0xff]
    %v31 = vld [vmem:[%s0 + $0x38] sm:$0xff]
    %v32 = vld [vmem:[%s0 + $0x40] sm:$0xff]
    %v33 = vld [vmem:[%s0 + $0x48] sm:$0xff]
    %v34 = vld [vmem:[%s0 + $0x50] sm:$0xff]
    %v35 = vld [vmem:[%s0 + $0x58] sm:$0xff]
    %v36 = vld [vmem:[%s0 + $0x60] sm:$0xff]
    %v37 = vld [vmem:[%s0 + $0x68] sm:$0xff]
    %v38 = vld [vmem:[%s0 + $0x70] sm:$0xff]
    %v39 = vld [vmem:[%s0 + $0x78] sm:$0xff]
    %v40 = vld [vmem:[%s0 + $0x80] sm:$0xff]
    %v41 = vld [vmem:[%s0 + $0x88] sm:$0xff]
    %v42 = vld [vmem:[%s0 + $0x90] sm:$0xff]
    %v43 = vld [vmem:[%s0 + $0x98] sm:$0xff]
    %v44 = vld [vmem:[%s0 + $0xa0] sm:$0xff]
    %v45 = vld [vmem:[%s0 + $0xa8] sm:$0xff]
    %v46 = vld [vmem:[%s0 + $0xb0] sm:$0xff]
    %v47 = vld [vmem:[%s0 + $0xb8] sm:$0xff]
    %v48 = vld [vmem:[%s1] sm:$0xff]
    %v49 = vld [vmem:[%s1 + $0x8] sm:$0xff]
    %v50 = vld [vmem:[%s1 + $0x10] sm:$0xff]
    %v51 = vld [vmem:[%s1 + $0x18] sm:$0xff]
    %v52 = vld [vmem:[%s1 + $0x20] sm:$0xff]
    %v53 = vld [vmem:[%s1 + $0x28] sm:$0xff]
    %v54 = vld [vmem:[%s1 + $0x30] sm:$0xff]
    %v55 = vld [vmem:[%s1 + $0x38] sm:$0xff]
    %v56 = vld [vmem:[%s1 + $0x40] sm:$0xff]
    %v57 = vld [vmem:[%s1 + $0x48] sm:$0xff]
    %v58 = vld [vmem:[%s1 + $0x50] sm:$0xff]
    %v59 = vld [vmem:[%s1 + $0x58] sm:$0xff]
    %v60 = vld [vmem:[%s1 + $0x60] sm:$0xff]
    %v61 = vld [vmem:[%s1 + $0x68] sm:$0xff]
    %v62 = vld [vmem:[%s1 + $0x70] sm:$0xff]
    %v63 = vld [vmem:[%s1 + $0x78] sm:$0xff]
    %v64 = vld [vmem:[%s1 + $0x80] sm:$0xff]
    %v65 = vld [vmem:[%s1 + $0x88] sm:$0xff]
    %v66 = vld [vmem:[%s1 + $0x90] sm:$0xff]
    %v67 = vld [vmem:[%s1 + $0x98] sm:$0xff]
    %v68 = vld [vmem:[%s1 + $0xa0] sm:$0xff]
    %v69 = vld [vmem:[%s1 + $0xa8] sm:$0xff]
    %v70 = vld [vmem:[%s1 + $0xb0] sm:$0xff]
    %v71 = vld [vmem:[%s1 + $0xb8] sm:$0xff]
    %v72 = vld [vmem:[%s1 + $0xc0] sm:$0xff]
    %v73 = vld [vmem:[%s1 + $0xc8] sm:$0xff]
    %v74 = vld [vmem:[%s1 + $0xd0] sm:$0xff]
    %v75 = vld [vmem:[%s1 + $0xd8] sm:$0xff]
    %v76 = vld [vmem:[%s1 + $0xe0] sm:$0xff]
    %v77 = vld [vmem:[%s1 + $0xe8] sm:$0xff]
    %v78 = vld [vmem:[%s1 + $0xf0] sm:$0xff]
    %v79 = vld [vmem:[%s1 + $0xf8] sm:$0xff]
    %v80 = vld [vmem:[%s1 + $0x100] sm:$0xff]
    %v81 = vld [vmem:[%s1 + $0x108] sm:$0xff]
    %v82 = vld [vmem:[%s1 + $0x110] sm:$0xff]
    %v83 = vld [vmem:[%s1 + $0x118] sm:$0xff]
    %v84 = vld [vmem:[%s1 + $0x120] sm:$0xff]
    %v85 = vld [vmem:[%s1 + $0x128] sm:$0xff]
    %v86 = vld [vmem:[%s1 + $0x130] sm:$0xff]
    %v87 = vld [vmem:[%s1 + $0x138] sm:$0xff]
    %v88 = vld [vmem:[%s1 + $0x140] sm:$0xff]
    %v89 = vld [vmem:[%s1 + $0x148] sm:$0xff]
    %v90 = vld [vmem:[%s1 + $0x150] sm:$0xff]
    %v91 = vld [vmem:[%s1 + $0x158] sm:$0xff]
    %v92 = vld [vmem:[%s1 + $0x160] sm:$0xff]
    %v93 = vld [vmem:[%s1 + $0x168] sm:$0xff]
    %v94 = vld [vmem:[%s1 + $0x170] sm:$0xff]
    %v95 = vld [vmem:[%s1 + $0x178] sm:$0xff]
    %v96 = vld [vmem:[%s1 + $0x180] sm:$0xff]
    %v97 = vld [vmem:[%s1 + $0x188] sm:$0xff]
    %v98 = vld [vmem:[%s1 + $0x190] sm:$0xff]
    %v99 = vld [vmem:[%s1 + $0x198] sm:$0xff]
    %v100 = vld [vmem:[%s1 + $0x1a0] sm:$0xff]
    %v101 = vld [vmem:[%s1 + $0x1a8] sm:$0xff]
    %v102 = vld [vmem:[%s1 + $0x1b0] sm:$0xff]
    %v103 = vld [vmem:[%s1 + $0x1b8] sm:$0xff]
    %v104 = vld [vmem:[%s1 + $0x1c0] sm:$0xff]
    %v105 = vld [vmem:[%s1 + $0x1c8] sm:$0xff]
    %v106 = vld [vmem:[%s1 + $0x1d0] sm:$0xff]
    %v107 = vld [vmem:[%s1 + $0x1d8] sm:$0xff]
    %v108 = vld [vmem:[%s1 + $0x1e0] sm:$0xff]
    %v109 = vld [vmem:[%s1 + $0x1e8] sm:$0xff]
    %v110 = vld [vmem:[%s1 + $0x1f0] sm:$0xff]
    %v111 = vld [vmem:[%s1 + $0x1f8] sm:$0xff]
    %v112 = vld [vmem:[%s1 + $0x200] sm:$0xff]
    %v113 = vld [vmem:[%s1 + $0x208] sm:$0xff]
    %v114 = vld [vmem:[%s1 + $0x210] sm:$0xff]
    %v115 = vld [vmem:[%s1 + $0x218] sm:$0xff]
    %v116 = vld [vmem:[%s1 + $0x220] sm:$0xff]
    %v117 = vld [vmem:[%s1 + $0x228] sm:$0xff]
    %v118 = vld [vmem:[%s1 + $0x230] sm:$0xff]
    %v119 = vld [vmem:[%s1 + $0x238] sm:$0xff]
    %v120 = vld [vmem:[%s1 + $0x240] sm:$0xff]
    %v121 = vld [vmem:[%s1 + $0x248] sm:$0xff]
    %v122 = vld [vmem:[%s1 + $0x250] sm:$0xff]
    %v123 = vld [vmem:[%s1 + $0x258] sm:$0xff]
    %v124 = vld [vmem:[%s1 + $0x260] sm:$0xff]
    %v125 = vld [vmem:[%s1 + $0x268] sm:$0xff]
    %v126 = vld [vmem:[%s1 + $0x270] sm:$0xff]
    %v127 = vld [vmem:[%s1 + $0x278] sm:$0xff]
    %v128 = vld [vmem:[%s1 + $0x280] sm:$0xff]
    %v129 = vld [vmem:[%s1 + $0x288] sm:$0xff]
    %v130 = vld [vmem:[%s1 + $0x290] sm:$0xff]
    %v131 = vld [vmem:[%s1 + $0x298] sm:$0xff]
    %v132 = vld [vmem:[%s1 + $0x2a0] sm:$0xff]
    %v133 = vld [vmem:[%s1 + $0x2a8] sm:$0xff]
    %v134 = vld [vmem:[%s1 + $0x2b0] sm:$0xff]
    %v135 = vld [vmem:[%s1 + $0x2b8] sm:$0xff]
    %v136 = vld [vmem:[%s1 + $0x2c0] sm:$0xff]
    %v137 = vld [vmem:[%s1 + $0x2c8] sm:$0xff]
    %v138 = vld [vmem:[%s1 + $0x2d0] sm:$0xff]
    %v139 = vld [vmem:[%s1 + $0x2d8] sm:$0xff]
    %v140 = vld [vmem:[%s1 + $0x2e0] sm:$0xff]
    %v141 = vld [vmem:[%s1 + $0x2e8] sm:$0xff]
    %v142 = vld [vmem:[%s1 + $0x2f0] sm:$0xff]
    %v143 = vld [vmem:[%s1 + $0x2f8] sm:$0xff]
    %v144 = vld [vmem:[%s1 + $0x300] sm:$0xff]
    %v145 = vld [vmem:[%s1 + $0x308] sm:$0xff]
    %v146 = vld [vmem:[%s1 + $0x310] sm:$0xff]
    %v147 = vld [vmem:[%s1 + $0x318] sm:$0xff]
    %v148 = vld [vmem:[%s1 + $0x320] sm:$0xff]
    %v149 = vld [vmem:[%s1 + $0x328] sm:$0xff]
    %v150 = vld [vmem:[%s1 + $0x330] sm:$0xff]
    %v151 = vld [vmem:[%s1 + $0x338] sm:$0xff]
    %v152 = vld [vmem:[%s1 + $0x340] sm:$0xff]
    %v153 = vld [vmem:[%s1 + $0x348] sm:$0xff]
    %v154 = vld [vmem:[%s1 + $0x350] sm:$0xff]
    %v155 = vld [vmem:[%s1 + $0x358] sm:$0xff]
    %v156 = vld [vmem:[%s1 + $0x360] sm:$0xff]
    %v157 = vld [vmem:[%s1 + $0x368] sm:$0xff]
    %v158 = vld [vmem:[%s1 + $0x370] sm:$0xff]
    %v159 = vld [vmem:[%s1 + $0x378] sm:$0xff]
    %v160 = vld [vmem:[%s1 + $0x380] sm:$0xff]
    %v161 = vld [vmem:[%s1 + $0x388] sm:$0xff]
    %v162 = vld [vmem:[%s1 + $0x390] sm:$0xff]
    %v163 = vld [vmem:[%s1 + $0x398] sm:$0xff]
    %v164 = vld [vmem:[%s1 + $0x3a0] sm:$0xff]
    %v165 = vld [vmem:[%s1 + $0x3a8] sm:$0xff]
    %v166 = vld [vmem:[%s1 + $0x3b0] sm:$0xff]
    %v167 = vld [vmem:[%s1 + $0x3b8] sm:$0xff]
    %v168 = vld [vmem:[%s1 + $0x3c0] sm:$0xff]
    %v169 = vld [vmem:[%s1 + $0x3c8] sm:$0xff]
    %v170 = vld [vmem:[%s1 + $0x3d0] sm:$0xff]
    %v171 = vld [vmem:[%s1 + $0x3d8] sm:$0xff]
    %v172 = vld [vmem:[%s1 + $0x3e0] sm:$0xff]
    %v173 = vld [vmem:[%s1 + $0x3e8] sm:$0xff]
    %v174 = vld [vmem:[%s1 + $0x3f0] sm:$0xff]
    %v175 = vld [vmem:[%s1 + $0x3f8] sm:$0xff]
    %176 = vmatpush.msra.mxu0 %v63
    %177 = vmatpush.msra.mxu0 %v62
    %178 = vmatpush.msra.mxu0 %v61
    %179 = vmatpush.msra.mxu0 %v60
    %180 = vmatpush.msra.mxu0 %v59
    %181 = vmatpush.msra.mxu0 %v58
    %182 = vmatpush.msra.mxu0 %v57
    %183 = vmatpush.msra.mxu0 %v56
    %184 = vmatpush.msra.mxu0 %v55
    %185 = vmatpush.msra.mxu0 %v54
    %186 = vmatpush.msra.mxu0 %v53
    %187 = vmatpush.msra.mxu0 %v52
    %188 = vmatpush.msra.mxu0 %v51
    %189 = vmatpush.msra.mxu0 %v50
    %190 = vmatpush.msra.mxu0 %v49
    %191 = vmatpush.msra.mxu0 %v48
    %192 = vmatmul.f32.gmra.mxu0 %v24
    %v193 = vpop.f32.mrf.mxu0
    %v194 = vadd.f32 0.0, %v193
    %195 = vmatmul.f32.gmra.mxu0 %v32
    %v196 = vpop.f32.mrf.mxu0
    %v197 = vadd.f32 0.0, %v196
    %198 = vmatmul.f32.gmra.mxu0 %v40
    %v199 = vpop.f32.mrf.mxu0
    %v200 = vadd.f32 0.0, %v199
    %201 = vdwg.mxu0
    %202 = vmatpush.msra.mxu0 %v79
    %203 = vmatpush.msra.mxu0 %v78
    %204 = vmatpush.msra.mxu0 %v77
    %205 = vmatpush.msra.mxu0 %v76
    %206 = vmatpush.msra.mxu0 %v75
    %207 = vmatpush.msra.mxu0 %v74
    %208 = vmatpush.msra.mxu0 %v73
    %209 = vmatpush.msra.mxu0 %v72
    %210 = vmatpush.msra.mxu0 %v71
    %211 = vmatpush.msra.mxu0 %v70
    %212 = vmatpush.msra.mxu0 %v69
    %213 = vmatpush.msra.mxu0 %v68
    %214 = vmatpush.msra.mxu0 %v67
    %215 = vmatpush.msra.mxu0 %v66
    %216 = vmatpush.msra.mxu0 %v65
    %217 = vmatpush.msra.mxu0 %v64
    %218 = vmatmul.f32.gmra.mxu0 %v25
    %v219 = vpop.f32.mrf.mxu0
    %v220 = vadd.f32 %v194, %v219
    %221 = vmatmul.f32.gmra.mxu0 %v33
    %v222 = vpop.f32.mrf.mxu0
    %v223 = vadd.f32 %v197, %v222
    %224 = vmatmul.f32.gmra.mxu0 %v41
    %v225 = vpop.f32.mrf.mxu0
    %v226 = vadd.f32 %v200, %v225
    %227 = vdwg.mxu0
    %228 = vmatpush.msra.mxu0 %v95
    %229 = vmatpush.msra.mxu0 %v94
    %230 = vmatpush.msra.mxu0 %v93
    %231 = vmatpush.msra.mxu0 %v92
    %232 = vmatpush.msra.mxu0 %v91
    %233 = vmatpush.msra.mxu0 %v90
    %234 = vmatpush.msra.mxu0 %v89
    %235 = vmatpush.msra.mxu0 %v88
    %236 = vmatpush.msra.mxu0 %v87
    %237 = vmatpush.msra.mxu0 %v86
    %238 = vmatpush.msra.mxu0 %v85
    %239 = vmatpush.msra.mxu0 %v84
    %240 = vmatpush.msra.mxu0 %v83
    %241 = vmatpush.msra.mxu0 %v82
    %242 = vmatpush.msra.mxu0 %v81
    %243 = vmatpush.msra.mxu0 %v80
    %244 = vmatmul.f32.gmra.mxu0 %v26
    %v245 = vpop.f32.mrf.mxu0
    %v246 = vadd.f32 %v220, %v245
    %247 = vmatmul.f32.gmra.mxu0 %v34
    %v248 = vpop.f32.mrf.mxu0
    %v249 = vadd.f32 %v223, %v248
    %250 = vmatmul.f32.gmra.mxu0 %v42
    %v251 = vpop.f32.mrf.mxu0
    %v252 = vadd.f32 %v226, %v251
    %253 = vdwg.mxu0
    %254 = vmatpush.msra.mxu0 %v111
    %255 = vmatpush.msra.mxu0 %v110
    %256 = vmatpush.msra.mxu0 %v109
    %257 = vmatpush.msra.mxu0 %v108
    %258 = vmatpush.msra.mxu0 %v107
    %259 = vmatpush.msra.mxu0 %v106
    %260 = vmatpush.msra.mxu0 %v105
    %261 = vmatpush.msra.mxu0 %v104
    %262 = vmatpush.msra.mxu0 %v103
    %263 = vmatpush.msra.mxu0 %v102
    %264 = vmatpush.msra.mxu0 %v101
    %265 = vmatpush.msra.mxu0 %v100
    %266 = vmatpush.msra.mxu0 %v99
    %267 = vmatpush.msra.mxu0 %v98
    %268 = vmatpush.msra.mxu0 %v97
    %269 = vmatpush.msra.mxu0 %v96
    %270 = vmatmul.f32.gmra.mxu0 %v27
    %v271 = vpop.f32.mrf.mxu0
    %v272 = vadd.f32 %v246, %v271
    %273 = vmatmul.f32.gmra.mxu0 %v35
    %v274 = vpop.f32.mrf.mxu0
    %v275 = vadd.f32 %v249, %v274
    %276 = vmatmul.f32.gmra.mxu0 %v43
    %v277 = vpop.f32.mrf.mxu0
    %v278 = vadd.f32 %v252, %v277
    %279 = vdwg.mxu0
    %280 = vmatpush.msra.mxu0 %v127
    %281 = vmatpush.msra.mxu0 %v126
    %282 = vmatpush.msra.mxu0 %v125
    %283 = vmatpush.msra.mxu0 %v124
    %284 = vmatpush.msra.mxu0 %v123
    %285 = vmatpush.msra.mxu0 %v122
    %286 = vmatpush.msra.mxu0 %v121
    %287 = vmatpush.msra.mxu0 %v120
    %288 = vmatpush.msra.mxu0 %v119
    %289 = vmatpush.msra.mxu0 %v118
    %290 = vmatpush.msra.mxu0 %v117
    %291 = vmatpush.msra.mxu0 %v116
    %292 = vmatpush.msra.mxu0 %v115
    %293 = vmatpush.msra.mxu0 %v114
    %294 = vmatpush.msra.mxu0 %v113
    %295 = vmatpush.msra.mxu0 %v112
    %296 = vmatmul.f32.gmra.mxu0 %v28
    %v297 = vpop.f32.mrf.mxu0
    %v298 = vadd.f32 %v272, %v297
    %299 = vmatmul.f32.gmra.mxu0 %v36
    %v300 = vpop.f32.mrf.mxu0
    %v301 = vadd.f32 %v275, %v300
    %302 = vmatmul.f32.gmra.mxu0 %v44
    %v303 = vpop.f32.mrf.mxu0
    %v304 = vadd.f32 %v278, %v303
    %305 = vdwg.mxu0
    %306 = vmatpush.msra.mxu0 %v143
    %307 = vmatpush.msra.mxu0 %v142
    %308 = vmatpush.msra.mxu0 %v141
    %309 = vmatpush.msra.mxu0 %v140
    %310 = vmatpush.msra.mxu0 %v139
    %311 = vmatpush.msra.mxu0 %v138
    %312 = vmatpush.msra.mxu0 %v137
    %313 = vmatpush.msra.mxu0 %v136
    %314 = vmatpush.msra.mxu0 %v135
    %315 = vmatpush.msra.mxu0 %v134
    %316 = vmatpush.msra.mxu0 %v133
    %317 = vmatpush.msra.mxu0 %v132
    %318 = vmatpush.msra.mxu0 %v131
    %319 = vmatpush.msra.mxu0 %v130
    %320 = vmatpush.msra.mxu0 %v129
    %321 = vmatpush.msra.mxu0 %v128
    %322 = vmatmul.f32.gmra.mxu0 %v29
    %v323 = vpop.f32.mrf.mxu0
    %v324 = vadd.f32 %v298, %v323
    %325 = vmatmul.f32.gmra.mxu0 %v37
    %v326 = vpop.f32.mrf.mxu0
    %v327 = vadd.f32 %v301, %v326
    %328 = vmatmul.f32.gmra.mxu0 %v45
    %v329 = vpop.f32.mrf.mxu0
    %v330 = vadd.f32 %v304, %v329
    %331 = vdwg.mxu0
    %332 = vmatpush.msra.mxu0 %v159
    %333 = vmatpush.msra.mxu0 %v158
    %334 = vmatpush.msra.mxu0 %v157
    %335 = vmatpush.msra.mxu0 %v156
    %336 = vmatpush.msra.mxu0 %v155
    %337 = vmatpush.msra.mxu0 %v154
    %338 = vmatpush.msra.mxu0 %v153
    %339 = vmatpush.msra.mxu0 %v152
    %340 = vmatpush.msra.mxu0 %v151
    %341 = vmatpush.msra.mxu0 %v150
    %342 = vmatpush.msra.mxu0 %v149
    %343 = vmatpush.msra.mxu0 %v148
    %344 = vmatpush.msra.mxu0 %v147
    %345 = vmatpush.msra.mxu0 %v146
    %346 = vmatpush.msra.mxu0 %v145
    %347 = vmatpush.msra.mxu0 %v144
    %348 = vmatmul.f32.gmra.mxu0 %v30
    %v349 = vpop.f32.mrf.mxu0
    %v350 = vadd.f32 %v324, %v349
    %351 = vmatmul.f32.gmra.mxu0 %v38
    %v352 = vpop.f32.mrf.mxu0
    %v353 = vadd.f32 %v327, %v352
    %354 = vmatmul.f32.gmra.mxu0 %v46
    %v355 = vpop.f32.mrf.mxu0
    %v356 = vadd.f32 %v330, %v355
    %357 = vdwg.mxu0
    %358 = vmatpush.msra.mxu0 %v175
    %359 = vmatpush.msra.mxu0 %v174
    %360 = vmatpush.msra.mxu0 %v173
    %361 = vmatpush.msra.mxu0 %v172
    %362 = vmatpush.msra.mxu0 %v171
    %363 = vmatpush.msra.mxu0 %v170
    %364 = vmatpush.msra.mxu0 %v169
    %365 = vmatpush.msra.mxu0 %v168
    %366 = vmatpush.msra.mxu0 %v167
    %367 = vmatpush.msra.mxu0 %v166
    %368 = vmatpush.msra.mxu0 %v165
    %369 = vmatpush.msra.mxu0 %v164
    %370 = vmatpush.msra.mxu0 %v163
    %371 = vmatpush.msra.mxu0 %v162
    %372 = vmatpush.msra.mxu0 %v161
    %373 = vmatpush.msra.mxu0 %v160
    %374 = vmatmul.f32.gmra.mxu0 %v31
    %v375 = vpop.f32.mrf.mxu0
    %v376 = vadd.f32 %v350, %v375
    %377 = vmatmul.f32.gmra.mxu0 %v39
    %v378 = vpop.f32.mrf.mxu0
    %v379 = vadd.f32 %v353, %v378
    %380 = vmatmul.f32.gmra.mxu0 %v47
    %v381 = vpop.f32.mrf.mxu0
    %v382 = vadd.f32 %v356, %v381
    %383 = vdwg.mxu0
    %v384 = vld [vmem:[%s2] sm:$0xff]
    %v385 = vld [vmem:[%s2 + $0x8] sm:$0xff]
    %v386 = vld [vmem:[%s3] sm:$0x1]
    %v388 = vperm.slane %v386, 0
    %vm390 = vcmask 130048
    %v392 = vsel %vm390, %v376, 0
    %v395 = vsel %vm390, %v379, 0
    %v398 = vsel %vm390, %v382, 0
    %400 = vmatpush.msra.mxu0 0.0
    %401 = vmatpush.msra.mxu0 0.0
    %402 = vmatpush.msra.mxu0 0.0
    %403 = vmatpush.msra.mxu0 0.0
    %404 = vmatpush.msra.mxu0 0.0
    %405 = vmatpush.msra.mxu0 0.0
    %406 = vmatpush.msra.mxu0 0.0
    %407 = vmatpush.msra.mxu0 0.0
    %408 = vmatpush.msra.mxu0 0.0
    %409 = vmatpush.msra.mxu0 0.0
    %410 = vmatpush.msra.mxu0 0.0
    %411 = vmatpush.msra.mxu0 0.0
    %412 = vmatpush.msra.mxu0 0.0
    %413 = vmatpush.msra.mxu0 0.0
    %414 = vmatpush.msra.mxu0 %v385
    %415 = vmatpush.msra.mxu0 %v384
    %416 = vmatmul.f32.gmra.mxu0 %v392
    %v417 = vpop.f32.mrf.mxu0
    %v418 = vadd.f32 %v388, %v417
    %419 = vmatmul.f32.gmra.mxu0 %v395
    %v420 = vpop.f32.mrf.mxu0
    %v421 = vadd.f32 %v388, %v420
    %422 = vmatmul.f32.gmra.mxu0 %v398
    %v423 = vpop.f32.mrf.mxu0
    %v424 = vadd.f32 %v388, %v423
    %425 = vdwg.mxu0
    %v426 = vmax.f32 %v418, 0.0
    %v427 = vmax.f32 %v421, 0.0
    %v428 = vmax.f32 %v424, 0.0
    %v429 = vld [vmem:[%s4] sm:$0xff]
    %v430 = vld [vmem:[%s4 + $0x8] sm:$0xff]
    %v431 = vld [vmem:[%s4 + $0x10] sm:$0xff]
    %v432 = vld [vmem:[%s4 + $0x18] sm:$0xff]
    %v433 = vld [vmem:[%s5] sm:$0x3]
    %v435 = vperm.slane %v433, 0
    %v436 = vperm.slane %v433, 1
    %v440 = vsel %vm390, %v426, 0
    %v443 = vsel %vm390, %v427, 0
    %v446 = vsel %vm390, %v428, 0
    %448 = vmatpush.msra.mxu0 0.0
    %449 = vmatpush.msra.mxu0 0.0
    %450 = vmatpush.msra.mxu0 0.0
    %451 = vmatpush.msra.mxu0 0.0
    %452 = vmatpush.msra.mxu0 0.0
    %453 = vmatpush.msra.mxu0 0.0
    %454 = vmatpush.msra.mxu0 0.0
    %455 = vmatpush.msra.mxu0 0.0
    %456 = vmatpush.msra.mxu0 0.0
    %457 = vmatpush.msra.mxu0 0.0
    %458 = vmatpush.msra.mxu0 0.0
    %459 = vmatpush.msra.mxu0 0.0
    %460 = vmatpush.msra.mxu0 0.0
    %461 = vmatpush.msra.mxu0 0.0
    %462 = vmatpush.msra.mxu0 %v431
    %463 = vmatpush.msra.mxu0 %v429
    %464 = vmatmul.f32.gmra.mxu0 %v440
    %v465 = vpop.f32.mrf.mxu0
    %v466 = vadd.f32 %v435, %v465
    %467 = vmatmul.f32.gmra.mxu0 %v443
    %v468 = vpop.f32.mrf.mxu0
    %v469 = vadd.f32 %v435, %v468
    %470 = vmatmul.f32.gmra.mxu0 %v446
    %v471 = vpop.f32.mrf.mxu0
    %v472 = vadd.f32 %v435, %v471
    %473 = vdwg.mxu0
    %474 = vmatpush.msra.mxu0 0.0
    %475 = vmatpush.msra.mxu0 0.0
    %476 = vmatpush.msra.mxu0 0.0
    %477 = vmatpush.msra.mxu0 0.0
    %478 = vmatpush.msra.mxu0 0.0
    %479 = vmatpush.msra.mxu0 0.0
    %480 = vmatpush.msra.mxu0 0.0
    %481 = vmatpush.msra.mxu0 0.0
    %482 = vmatpush.msra.mxu0 0.0
    %483 = vmatpush.msra.mxu0 0.0
    %484 = vmatpush.msra.mxu0 0.0
    %485 = vmatpush.msra.mxu0 0.0
    %486 = vmatpush.msra.mxu0 0.0
    %487 = vmatpush.msra.mxu0 0.0
    %488 = vmatpush.msra.mxu0 %v432
    %489 = vmatpush.msra.mxu0 %v430
    %490 = vmatmul.f32.gmra.mxu0 %v440
    %v491 = vpop.f32.mrf.mxu0
    %v492 = vadd.f32 %v436, %v491
    %493 = vmatmul.f32.gmra.mxu0 %v443
    %v494 = vpop.f32.mrf.mxu0
    %v495 = vadd.f32 %v436, %v494
    %496 = vmatmul.f32.gmra.mxu0 %v446
    %v497 = vpop.f32.mrf.mxu0
    %v498 = vadd.f32 %v436, %v497
    %499 = vdwg.mxu0
    %v500 = vmax.f32 %v466, %v492
    %501 = vmax.xlane.f32.xlu0 %v500
    %v502 = vpop.xlane.xlu0 %501
    %v503 = vmax.f32 %v469, %v495
    %504 = vmax.xlane.f32.xlu0 %v503
    %v505 = vpop.xlane.xlu0 %504
    %v506 = vmax.f32 %v472, %v498
    %507 = vmax.xlane.f32.xlu0 %v506
    %v508 = vpop.xlane.xlu0 %507
    %v509 = vsub.f32 %v466, %v502
    %v510 = vsub.f32 %v492, %v502
    %v511 = vsub.f32 %v469, %v505
    %v512 = vsub.f32 %v495, %v505
    %v513 = vsub.f32 %v472, %v508
    %v514 = vsub.f32 %v498, %v508
    %v515 = vmul.f32 %v509, 1.442695
    %v516 = vpow.pop %v515
    %v517 = vmul.f32 %v510, 1.442695
    %v518 = vpow.pop %v517
    %v519 = vmul.f32 %v511, 1.442695
    %v520 = vpow.pop %v519
    %v521 = vmul.f32 %v512, 1.442695
    %v522 = vpow.pop %v521
    %v523 = vmul.f32 %v513, 1.442695
    %v524 = vpow.pop %v523
    %v525 = vmul.f32 %v514, 1.442695
    %v526 = vpow.pop %v525
    %v527 = vadd.f32 %v516, %v518
    %528 = vadd.xlane.f32.xlu0 %v527
    %v529 = vpop.xlane.xlu0 %528
    %v530 = vadd.f32 %v520, %v522
    %531 = vadd.xlane.f32.xlu0 %v530
    %v532 = vpop.xlane.xlu0 %531
    %v533 = vadd.f32 %v524, %v526
    %534 = vadd.xlane.f32.xlu0 %v533
    %v535 = vpop.xlane.xlu0 %534
    %v536 = vrcp.pop %v529
    %v537 = vmul.f32 %v529, %v536
    %v538 = vsub.f32 1.0, %v537
    %v539 = vmul.f32 %v536, %v538
    %v540 = vadd.f32 %v536, %v539
    %vm541 = vweird.f32 %v529
    %vm542 = vweird.f32 %v536
    %vm543 = vmor %vm541, %vm542
    %v544 = vsel %vm543, %v536, %v540
    %v545 = vand.u32 2147483647, %v529
    %vm546 = vcmp.eq.f32.partialorder %v545, 8.507059e+37
    %v547 = vand.u32 %v529, 2147483648
    %v548 = vor.u32 1.1754944e-38, %v547
    %v549 = vsel %vm546, %v548, %v544
    %v550 = vmul.f32 %v516, %v549
    %v551 = vmul.f32 %v518, %v549
    %v552 = vrcp.pop %v532
    %v553 = vmul.f32 %v532, %v552
    %v554 = vsub.f32 1.0, %v553
    %v555 = vmul.f32 %v552, %v554
    %v556 = vadd.f32 %v552, %v555
    %vm557 = vweird.f32 %v532
    %vm558 = vweird.f32 %v552
    %vm559 = vmor %vm557, %vm558
    %v560 = vsel %vm559, %v552, %v556
    %v561 = vand.u32 2147483647, %v532
    %vm562 = vcmp.eq.f32.partialorder %v561, 8.507059e+37
    %v563 = vand.u32 %v532, 2147483648
    %v564 = vor.u32 1.1754944e-38, %v563
    %v565 = vsel %vm562, %v564, %v560
    %v566 = vmul.f32 %v520, %v565
    %v567 = vmul.f32 %v522, %v565
    %v568 = vrcp.pop %v535
    %v569 = vmul.f32 %v535, %v568
    %v570 = vsub.f32 1.0, %v569
    %v571 = vmul.f32 %v568, %v570
    %v572 = vadd.f32 %v568, %v571
    %vm573 = vweird.f32 %v535
    %vm574 = vweird.f32 %v568
    %vm575 = vmor %vm573, %vm574
    %v576 = vsel %vm575, %v568, %v572
    %v577 = vand.u32 2147483647, %v535
    %vm578 = vcmp.eq.f32.partialorder %v577, 8.507059e+37
    %v579 = vand.u32 %v535, 2147483648
    %v580 = vor.u32 1.1754944e-38, %v579
    %v581 = vsel %vm578, %v580, %v576
    %v582 = vmul.f32 %v524, %v581
    %v583 = vmul.f32 %v526, %v581
    %587 = vrot.lane.b32.xlu0 %v550, 112
    %v588 = vpop.permute.xlu0 %587
    %589 = vrot.lane.b32.xlu0 %v566, 112
    %v590 = vpop.permute.xlu0 %589
    %591 = vrot.lane.b32.xlu0 %v582, 112
    %v592 = vpop.permute.xlu0 %591
    %596 = vrot.lane.b32.xlu0 %v550, 96
    %v597 = vpop.permute.xlu0 %596
    %598 = vrot.lane.b32.xlu0 %v566, 96
    %v599 = vpop.permute.xlu0 %598
    %600 = vrot.lane.b32.xlu0 %v582, 96
    %v601 = vpop.permute.xlu0 %600
    %605 = vrot.lane.b32.xlu0 %v550, 80
    %v606 = vpop.permute.xlu0 %605
    %607 = vrot.lane.b32.xlu0 %v566, 80
    %v608 = vpop.permute.xlu0 %607
    %609 = vrot.lane.b32.xlu0 %v582, 80
    %v610 = vpop.permute.xlu0 %609
    %614 = vrot.lane.b32.xlu0 %v550, 64
    %v615 = vpop.permute.xlu0 %614
    %616 = vrot.lane.b32.xlu0 %v566, 64
    %v617 = vpop.permute.xlu0 %616
    %618 = vrot.lane.b32.xlu0 %v582, 64
    %v619 = vpop.permute.xlu0 %618
    %623 = vrot.lane.b32.xlu0 %v550, 48
    %v624 = vpop.permute.xlu0 %623
    %625 = vrot.lane.b32.xlu0 %v566, 48
    %v626 = vpop.permute.xlu0 %625
    %627 = vrot.lane.b32.xlu0 %v582, 48
    %v628 = vpop.permute.xlu0 %627
    %632 = vrot.lane.b32.xlu0 %v550, 32
    %v633 = vpop.permute.xlu0 %632
    %634 = vrot.lane.b32.xlu0 %v566, 32
    %v635 = vpop.permute.xlu0 %634
    %636 = vrot.lane.b32.xlu0 %v582, 32
    %v637 = vpop.permute.xlu0 %636
    %641 = vrot.lane.b32.xlu0 %v550, 16
    %v642 = vpop.permute.xlu0 %641
    %643 = vrot.lane.b32.xlu0 %v566, 16
    %v644 = vpop.permute.xlu0 %643
    %645 = vrot.lane.b32.xlu0 %v582, 16
    %v646 = vpop.permute.xlu0 %645
    %653 = vrot.lane.b32.xlu0 %v551, 112
    %v654 = vpop.permute.xlu0 %653
    %655 = vrot.lane.b32.xlu0 %v567, 112
    %v656 = vpop.permute.xlu0 %655
    %657 = vrot.lane.b32.xlu0 %v583, 112
    %v658 = vpop.permute.xlu0 %657
    %662 = vrot.lane.b32.xlu0 %v551, 96
    %v663 = vpop.permute.xlu0 %662
    %664 = vrot.lane.b32.xlu0 %v567, 96
    %v665 = vpop.permute.xlu0 %664
    %666 = vrot.lane.b32.xlu0 %v583, 96
    %v667 = vpop.permute.xlu0 %666
    %671 = vrot.lane.b32.xlu0 %v551, 80
    %v672 = vpop.permute.xlu0 %671
    %673 = vrot.lane.b32.xlu0 %v567, 80
    %v674 = vpop.permute.xlu0 %673
    %675 = vrot.lane.b32.xlu0 %v583, 80
    %v676 = vpop.permute.xlu0 %675
    %680 = vrot.lane.b32.xlu0 %v551, 64
    %v681 = vpop.permute.xlu0 %680
    %682 = vrot.lane.b32.xlu0 %v567, 64
    %v683 = vpop.permute.xlu0 %682
    %684 = vrot.lane.b32.xlu0 %v583, 64
    %v685 = vpop.permute.xlu0 %684
    %689 = vrot.lane.b32.xlu0 %v551, 48
    %v690 = vpop.permute.xlu0 %689
    %691 = vrot.lane.b32.xlu0 %v567, 48
    %v692 = vpop.permute.xlu0 %691
    %693 = vrot.lane.b32.xlu0 %v583, 48
    %v694 = vpop.permute.xlu0 %693
    %698 = vrot.lane.b32.xlu0 %v551, 32
    %v699 = vpop.permute.xlu0 %698
    %700 = vrot.lane.b32.xlu0 %v567, 32
    %v701 = vpop.permute.xlu0 %700
    %702 = vrot.lane.b32.xlu0 %v583, 32
    %v703 = vpop.permute.xlu0 %702
    %707 = vrot.lane.b32.xlu0 %v551, 16
    %v708 = vpop.permute.xlu0 %707
    %709 = vrot.lane.b32.xlu0 %v567, 16
    %v710 = vpop.permute.xlu0 %709
    %711 = vrot.lane.b32.xlu0 %v583, 16
    %v712 = vpop.permute.xlu0 %711
    %v716 = vrot.slane %v597, 4
    %vm717 = vcmask 1047556
    %v718 = vsel %vm717, %v716, %v550
    %v719 = vrot.slane %v550, 4
    %v720 = vsel %vm717, %v597, %v719
    %v722 = vunpack.c.l.s4 1983009808
    %v723 = vunpack.c.0.s8 %v722
    %v724 = vperm.slane %v718, %v723
    %v726 = vunpack.c.l.s4 1983009808
    %v727 = vunpack.c.0.s8 %v726
    %v728 = vperm.slane %v720, %v727
    %v729 = vrot.slane %v606, 4
    %v730 = vsel %vm717, %v729, %v588
    %v731 = vrot.slane %v588, 4
    %v732 = vsel %vm717, %v606, %v731
    %v734 = vunpack.c.l.s4 1983009808
    %v735 = vunpack.c.0.s8 %v734
    %v736 = vperm.slane %v730, %v735
    %v738 = vunpack.c.l.s4 1983009808
    %v739 = vunpack.c.0.s8 %v738
    %v740 = vperm.slane %v732, %v739
    %v741 = vrot.slane %v633, 4
    %v742 = vsel %vm717, %v741, %v615
    %v743 = vrot.slane %v615, 4
    %v744 = vsel %vm717, %v633, %v743
    %v746 = vunpack.c.l.s4 1983009808
    %v747 = vunpack.c.0.s8 %v746
    %v748 = vperm.slane %v742, %v747
    %v750 = vunpack.c.l.s4 1983009808
    %v751 = vunpack.c.0.s8 %v750
    %v752 = vperm.slane %v744, %v751
    %v753 = vrot.slane %v642, 4
    %v754 = vsel %vm717, %v753, %v624
    %v755 = vrot.slane %v624, 4
    %v756 = vsel %vm717, %v642, %v755
    %v758 = vunpack.c.l.s4 1983009808
    %v759 = vunpack.c.0.s8 %v758
    %v760 = vperm.slane %v754, %v759
    %v762 = vunpack.c.l.s4 1983009808
    %v763 = vunpack.c.0.s8 %v762
    %v764 = vperm.slane %v756, %v763
    %v765 = vrot.slane %v736, 4
    %v766 = vsel %vm717, %v765, %v724
    %v767 = vrot.slane %v724, 4
    %v768 = vsel %vm717, %v736, %v767
    %v770 = vunpack.c.l.s4 1934713408
    %v771 = vunpack.c.0.s8 %v770
    %v772 = vperm.slane %v766, %v771
    %v774 = vunpack.c.l.s4 1934713408
    %v775 = vunpack.c.0.s8 %v774
    %v776 = vperm.slane %v768, %v775
    %v777 = vrot.slane %v740, 4
    %v778 = vsel %vm717, %v777, %v728
    %v779 = vrot.slane %v728, 4
    %v780 = vsel %vm717, %v740, %v779
    %v782 = vunpack.c.l.s4 1934713408
    %v783 = vunpack.c.0.s8 %v782
    %v784 = vperm.slane %v778, %v783
    %v786 = vunpack.c.l.s4 1934713408
    %v787 = vunpack.c.0.s8 %v786
    %v788 = vperm.slane %v780, %v787
    %v789 = vrot.slane %v760, 4
    %v790 = vsel %vm717, %v789, %v748
    %v791 = vrot.slane %v748, 4
    %v792 = vsel %vm717, %v760, %v791
    %v794 = vunpack.c.l.s4 1934713408
    %v795 = vunpack.c.0.s8 %v794
    %v796 = vperm.slane %v790, %v795
    %v798 = vunpack.c.l.s4 1934713408
    %v799 = vunpack.c.0.s8 %v798
    %v800 = vperm.slane %v792, %v799
    %v801 = vrot.slane %v764, 4
    %v802 = vsel %vm717, %v801, %v752
    %v803 = vrot.slane %v752, 4
    %v804 = vsel %vm717, %v764, %v803
    %v806 = vunpack.c.l.s4 1934713408
    %v807 = vunpack.c.0.s8 %v806
    %v808 = vperm.slane %v802, %v807
    %v810 = vunpack.c.l.s4 1934713408
    %v811 = vunpack.c.0.s8 %v810
    %v812 = vperm.slane %v804, %v811
    %v813 = vrot.slane %v796, 4
    %v814 = vsel %vm717, %v813, %v772
    %v815 = vrot.slane %v772, 4
    %v816 = vsel %vm717, %v796, %v815
    %v817 = vrot.slane %v800, 4
    %v818 = vsel %vm717, %v817, %v776
    %v819 = vrot.slane %v776, 4
    %v820 = vsel %vm717, %v800, %v819
    %v821 = vrot.slane %v808, 4
    %v822 = vsel %vm717, %v821, %v784
    %v823 = vrot.slane %v784, 4
    %v824 = vsel %vm717, %v808, %v823
    %v825 = vrot.slane %v812, 4
    %v826 = vsel %vm717, %v825, %v788
    %v827 = vrot.slane %v788, 4
    %v828 = vsel %vm717, %v812, %v827
    %v829 = vrot.slane %v663, 4
    %v830 = vsel %vm717, %v829, %v551
    %v831 = vrot.slane %v551, 4
    %v832 = vsel %vm717, %v663, %v831
    %v834 = vunpack.c.l.s4 1983009808
    %v835 = vunpack.c.0.s8 %v834
    %v836 = vperm.slane %v830, %v835
    %v838 = vunpack.c.l.s4 1983009808
    %v839 = vunpack.c.0.s8 %v838
    %v840 = vperm.slane %v832, %v839
    %v841 = vrot.slane %v672, 4
    %v842 = vsel %vm717, %v841, %v654
    %v843 = vrot.slane %v654, 4
    %v844 = vsel %vm717, %v672, %v843
    %v846 = vunpack.c.l.s4 1983009808
    %v847 = vunpack.c.0.s8 %v846
    %v848 = vperm.slane %v842, %v847
    %v850 = vunpack.c.l.s4 1983009808
    %v851 = vunpack.c.0.s8 %v850
    %v852 = vperm.slane %v844, %v851
    %v853 = vrot.slane %v699, 4
    %v854 = vsel %vm717, %v853, %v681
    %v855 = vrot.slane %v681, 4
    %v856 = vsel %vm717, %v699, %v855
    %v858 = vunpack.c.l.s4 1983009808
    %v859 = vunpack.c.0.s8 %v858
    %v860 = vperm.slane %v854, %v859
    %v862 = vunpack.c.l.s4 1983009808
    %v863 = vunpack.c.0.s8 %v862
    %v864 = vperm.slane %v856, %v863
    %v865 = vrot.slane %v708, 4
    %v866 = vsel %vm717, %v865, %v690
    %v867 = vrot.slane %v690, 4
    %v868 = vsel %vm717, %v708, %v867
    %v870 = vunpack.c.l.s4 1983009808
    %v871 = vunpack.c.0.s8 %v870
    %v872 = vperm.slane %v866, %v871
    %v874 = vunpack.c.l.s4 1983009808
    %v875 = vunpack.c.0.s8 %v874
    %v876 = vperm.slane %v868, %v875
    %v877 = vrot.slane %v848, 4
    %v878 = vsel %vm717, %v877, %v836
    %v879 = vrot.slane %v836, 4
    %v880 = vsel %vm717, %v848, %v879
    %v882 = vunpack.c.l.s4 1934713408
    %v883 = vunpack.c.0.s8 %v882
    %v884 = vperm.slane %v878, %v883
    %v886 = vunpack.c.l.s4 1934713408
    %v887 = vunpack.c.0.s8 %v886
    %v888 = vperm.slane %v880, %v887
    %v889 = vrot.slane %v852, 4
    %v890 = vsel %vm717, %v889, %v840
    %v891 = vrot.slane %v840, 4
    %v892 = vsel %vm717, %v852, %v891
    %v894 = vunpack.c.l.s4 1934713408
    %v895 = vunpack.c.0.s8 %v894
    %v896 = vperm.slane %v890, %v895
    %v898 = vunpack.c.l.s4 1934713408
    %v899 = vunpack.c.0.s8 %v898
    %v900 = vperm.slane %v892, %v899
    %v901 = vrot.slane %v872, 4
    %v902 = vsel %vm717, %v901, %v860
    %v903 = vrot.slane %v860, 4
    %v904 = vsel %vm717, %v872, %v903
    %v906 = vunpack.c.l.s4 1934713408
    %v907 = vunpack.c.0.s8 %v906
    %v908 = vperm.slane %v902, %v907
    %v910 = vunpack.c.l.s4 1934713408
    %v911 = vunpack.c.0.s8 %v910
    %v912 = vperm.slane %v904, %v911
    %v913 = vrot.slane %v876, 4
    %v914 = vsel %vm717, %v913, %v864
    %v915 = vrot.slane %v864, 4
    %v916 = vsel %vm717, %v876, %v915
    %v918 = vunpack.c.l.s4 1934713408
    %v919 = vunpack.c.0.s8 %v918
    %v920 = vperm.slane %v914, %v919
    %v922 = vunpack.c.l.s4 1934713408
    %v923 = vunpack.c.0.s8 %v922
    %v924 = vperm.slane %v916, %v923
    %v925 = vrot.slane %v908, 4
    %v926 = vsel %vm717, %v925, %v884
    %v927 = vrot.slane %v884, 4
    %v928 = vsel %vm717, %v908, %v927
    %v929 = vrot.slane %v912, 4
    %v930 = vsel %vm717, %v929, %v888
    %v931 = vrot.slane %v888, 4
    %v932 = vsel %vm717, %v912, %v931
    %v933 = vrot.slane %v920, 4
    %v934 = vsel %vm717, %v933, %v896
    %v935 = vrot.slane %v896, 4
    %v936 = vsel %vm717, %v920, %v935
    %v937 = vrot.slane %v924, 4
    %v938 = vsel %vm717, %v937, %v900
    %v939 = vrot.slane %v900, 4
    %v940 = vsel %vm717, %v924, %v939
    %v941 = vrot.slane %v599, 4
    %v942 = vsel %vm717, %v941, %v566
    %v943 = vrot.slane %v566, 4
    %v944 = vsel %vm717, %v599, %v943
    %v946 = vunpack.c.l.s4 1983009808
    %v947 = vunpack.c.0.s8 %v946
    %v948 = vperm.slane %v942, %v947
    %v950 = vunpack.c.l.s4 1983009808
    %v951 = vunpack.c.0.s8 %v950
    %v952 = vperm.slane %v944, %v951
    %v953 = vrot.slane %v608, 4
    %v954 = vsel %vm717, %v953, %v590
    %v955 = vrot.slane %v590, 4
    %v956 = vsel %vm717, %v608, %v955
    %v958 = vunpack.c.l.s4 1983009808
    %v959 = vunpack.c.0.s8 %v958
    %v960 = vperm.slane %v954, %v959
    %v962 = vunpack.c.l.s4 1983009808
    %v963 = vunpack.c.0.s8 %v962
    %v964 = vperm.slane %v956, %v963
    %v965 = vrot.slane %v635, 4
    %v966 = vsel %vm717, %v965, %v617
    %v967 = vrot.slane %v617, 4
    %v968 = vsel %vm717, %v635, %v967
    %v970 = vunpack.c.l.s4 1983009808
    %v971 = vunpack.c.0.s8 %v970
    %v972 = vperm.slane %v966, %v971
    %v974 = vunpack.c.l.s4 1983009808
    %v975 = vunpack.c.0.s8 %v974
    %v976 = vperm.slane %v968, %v975
    %v977 = vrot.slane %v644, 4
    %v978 = vsel %vm717, %v977, %v626
    %v979 = vrot.slane %v626, 4
    %v980 = vsel %vm717, %v644, %v979
    %v982 = vunpack.c.l.s4 1983009808
    %v983 = vunpack.c.0.s8 %v982
    %v984 = vperm.slane %v978, %v983
    %v986 = vunpack.c.l.s4 1983009808
    %v987 = vunpack.c.0.s8 %v986
    %v988 = vperm.slane %v980, %v987
    %v989 = vrot.slane %v960, 4
    %v990 = vsel %vm717, %v989, %v948
    %v991 = vrot.slane %v948, 4
    %v992 = vsel %vm717, %v960, %v991
    %v994 = vunpack.c.l.s4 1934713408
    %v995 = vunpack.c.0.s8 %v994
    %v996 = vperm.slane %v990, %v995
    %v998 = vunpack.c.l.s4 1934713408
    %v999 = vunpack.c.0.s8 %v998
    %v1000 = vperm.slane %v992, %v999
    %v1001 = vrot.slane %v964, 4
    %v1002 = vsel %vm717, %v1001, %v952
    %v1003 = vrot.slane %v952, 4
    %v1004 = vsel %vm717, %v964, %v1003
    %v1006 = vunpack.c.l.s4 1934713408
    %v1007 = vunpack.c.0.s8 %v1006
    %v1008 = vperm.slane %v1002, %v1007
    %v1010 = vunpack.c.l.s4 1934713408
    %v1011 = vunpack.c.0.s8 %v1010
    %v1012 = vperm.slane %v1004, %v1011
    %v1013 = vrot.slane %v984, 4
    %v1014 = vsel %vm717, %v1013, %v972
    %v1015 = vrot.slane %v972, 4
    %v1016 = vsel %vm717, %v984, %v1015
    %v1018 = vunpack.c.l.s4 1934713408
    %v1019 = vunpack.c.0.s8 %v1018
    %v1020 = vperm.slane %v1014, %v1019
    %v1022 = vunpack.c.l.s4 1934713408
    %v1023 = vunpack.c.0.s8 %v1022
    %v1024 = vperm.slane %v1016, %v1023
    %v1025 = vrot.slane %v988, 4
    %v1026 = vsel %vm717, %v1025, %v976
    %v1027 = vrot.slane %v976, 4
    %v1028 = vsel %vm717, %v988, %v1027
    %v1030 = vunpack.c.l.s4 1934713408
    %v1031 = vunpack.c.0.s8 %v1030
    %v1032 = vperm.slane %v1026, %v1031
    %v1034 = vunpack.c.l.s4 1934713408
    %v1035 = vunpack.c.0.s8 %v1034
    %v1036 = vperm.slane %v1028, %v1035
    %v1037 = vrot.slane %v1020, 4
    %v1038 = vsel %vm717, %v1037, %v996
    %v1039 = vrot.slane %v996, 4
    %v1040 = vsel %vm717, %v1020, %v1039
    %v1041 = vrot.slane %v1024, 4
    %v1042 = vsel %vm717, %v1041, %v1000
    %v1043 = vrot.slane %v1000, 4
    %v1044 = vsel %vm717, %v1024, %v1043
    %v1045 = vrot.slane %v1032, 4
    %v1046 = vsel %vm717, %v1045, %v1008
    %v1047 = vrot.slane %v1008, 4
    %v1048 = vsel %vm717, %v1032, %v1047
    %v1049 = vrot.slane %v1036, 4
    %v1050 = vsel %vm717, %v1049, %v1012
    %v1051 = vrot.slane %v1012, 4
    %v1052 = vsel %vm717, %v1036, %v1051
    %v1053 = vrot.slane %v665, 4
    %v1054 = vsel %vm717, %v1053, %v567
    %v1055 = vrot.slane %v567, 4
    %v1056 = vsel %vm717, %v665, %v1055
    %v1058 = vunpack.c.l.s4 1983009808
    %v1059 = vunpack.c.0.s8 %v1058
    %v1060 = vperm.slane %v1054, %v1059
    %v1062 = vunpack.c.l.s4 1983009808
    %v1063 = vunpack.c.0.s8 %v1062
    %v1064 = vperm.slane %v1056, %v1063
    %v1065 = vrot.slane %v674, 4
    %v1066 = vsel %vm717, %v1065, %v656
    %v1067 = vrot.slane %v656, 4
    %v1068 = vsel %vm717, %v674, %v1067
    %v1070 = vunpack.c.l.s4 1983009808
    %v1071 = vunpack.c.0.s8 %v1070
    %v1072 = vperm.slane %v1066, %v1071
    %v1074 = vunpack.c.l.s4 1983009808
    %v1075 = vunpack.c.0.s8 %v1074
    %v1076 = vperm.slane %v1068, %v1075
    %v1077 = vrot.slane %v701, 4
    %v1078 = vsel %vm717, %v1077, %v683
    %v1079 = vrot.slane %v683, 4
    %v1080 = vsel %vm717, %v701, %v1079
    %v1082 = vunpack.c.l.s4 1983009808
    %v1083 = vunpack.c.0.s8 %v1082
    %v1084 = vperm.slane %v1078, %v1083
    %v1086 = vunpack.c.l.s4 1983009808
    %v1087 = vunpack.c.0.s8 %v1086
    %v1088 = vperm.slane %v1080, %v1087
    %v1089 = vrot.slane %v710, 4
    %v1090 = vsel %vm717, %v1089, %v692
    %v1091 = vrot.slane %v692, 4
    %v1092 = vsel %vm717, %v710, %v1091
    %v1094 = vunpack.c.l.s4 1983009808
    %v1095 = vunpack.c.0.s8 %v1094
    %v1096 = vperm.slane %v1090, %v1095
    %v1098 = vunpack.c.l.s4 1983009808
    %v1099 = vunpack.c.0.s8 %v1098
    %v1100 = vperm.slane %v1092, %v1099
    %v1101 = vrot.slane %v1072, 4
    %v1102 = vsel %vm717, %v1101, %v1060
    %v1103 = vrot.slane %v1060, 4
    %v1104 = vsel %vm717, %v1072, %v1103
    %v1106 = vunpack.c.l.s4 1934713408
    %v1107 = vunpack.c.0.s8 %v1106
    %v1108 = vperm.slane %v1102, %v1107
    %v1110 = vunpack.c.l.s4 1934713408
    %v1111 = vunpack.c.0.s8 %v1110
    %v1112 = vperm.slane %v1104, %v1111
    %v1113 = vrot.slane %v1076, 4
    %v1114 = vsel %vm717, %v1113, %v1064
    %v1115 = vrot.slane %v1064, 4
    %v1116 = vsel %vm717, %v1076, %v1115
    %v1118 = vunpack.c.l.s4 1934713408
    %v1119 = vunpack.c.0.s8 %v1118
    %v1120 = vperm.slane %v1114, %v1119
    %v1122 = vunpack.c.l.s4 1934713408
    %v1123 = vunpack.c.0.s8 %v1122
    %v1124 = vperm.slane %v1116, %v1123
    %v1125 = vrot.slane %v1096, 4
    %v1126 = vsel %vm717, %v1125, %v1084
    %v1127 = vrot.slane %v1084, 4
    %v1128 = vsel %vm717, %v1096, %v1127
    %v1130 = vunpack.c.l.s4 1934713408
    %v1131 = vunpack.c.0.s8 %v1130
    %v1132 = vperm.slane %v1126, %v1131
    %v1134 = vunpack.c.l.s4 1934713408
    %v1135 = vunpack.c.0.s8 %v1134
    %v1136 = vperm.slane %v1128, %v1135
    %v1137 = vrot.slane %v1100, 4
    %v1138 = vsel %vm717, %v1137, %v1088
    %v1139 = vrot.slane %v1088, 4
    %v1140 = vsel %vm717, %v1100, %v1139
    %v1142 = vunpack.c.l.s4 1934713408
    %v1143 = vunpack.c.0.s8 %v1142
    %v1144 = vperm.slane %v1138, %v1143
    %v1146 = vunpack.c.l.s4 1934713408
    %v1147 = vunpack.c.0.s8 %v1146
    %v1148 = vperm.slane %v1140, %v1147
    %v1149 = vrot.slane %v1132, 4
    %v1150 = vsel %vm717, %v1149, %v1108
    %v1151 = vrot.slane %v1108, 4
    %v1152 = vsel %vm717, %v1132, %v1151
    %v1153 = vrot.slane %v1136, 4
    %v1154 = vsel %vm717, %v1153, %v1112
    %v1155 = vrot.slane %v1112, 4
    %v1156 = vsel %vm717, %v1136, %v1155
    %v1157 = vrot.slane %v1144, 4
    %v1158 = vsel %vm717, %v1157, %v1120
    %v1159 = vrot.slane %v1120, 4
    %v1160 = vsel %vm717, %v1144, %v1159
    %v1161 = vrot.slane %v1148, 4
    %v1162 = vsel %vm717, %v1161, %v1124
    %v1163 = vrot.slane %v1124, 4
    %v1164 = vsel %vm717, %v1148, %v1163
    %v1165 = vrot.slane %v601, 4
    %v1166 = vsel %vm717, %v1165, %v582
    %v1167 = vrot.slane %v582, 4
    %v1168 = vsel %vm717, %v601, %v1167
    %v1170 = vunpack.c.l.s4 1983009808
    %v1171 = vunpack.c.0.s8 %v1170
    %v1172 = vperm.slane %v1166, %v1171
    %v1174 = vunpack.c.l.s4 1983009808
    %v1175 = vunpack.c.0.s8 %v1174
    %v1176 = vperm.slane %v1168, %v1175
    %v1177 = vrot.slane %v610, 4
    %v1178 = vsel %vm717, %v1177, %v592
    %v1179 = vrot.slane %v592, 4
    %v1180 = vsel %vm717, %v610, %v1179
    %v1182 = vunpack.c.l.s4 1983009808
    %v1183 = vunpack.c.0.s8 %v1182
    %v1184 = vperm.slane %v1178, %v1183
    %v1186 = vunpack.c.l.s4 1983009808
    %v1187 = vunpack.c.0.s8 %v1186
    %v1188 = vperm.slane %v1180, %v1187
    %v1189 = vrot.slane %v637, 4
    %v1190 = vsel %vm717, %v1189, %v619
    %v1191 = vrot.slane %v619, 4
    %v1192 = vsel %vm717, %v637, %v1191
    %v1194 = vunpack.c.l.s4 1983009808
    %v1195 = vunpack.c.0.s8 %v1194
    %v1196 = vperm.slane %v1190, %v1195
    %v1198 = vunpack.c.l.s4 1983009808
    %v1199 = vunpack.c.0.s8 %v1198
    %v1200 = vperm.slane %v1192, %v1199
    %v1201 = vrot.slane %v646, 4
    %v1202 = vsel %vm717, %v1201, %v628
    %v1203 = vrot.slane %v628, 4
    %v1204 = vsel %vm717, %v646, %v1203
    %v1206 = vunpack.c.l.s4 1983009808
    %v1207 = vunpack.c.0.s8 %v1206
    %v1208 = vperm.slane %v1202, %v1207
    %v1210 = vunpack.c.l.s4 1983009808
    %v1211 = vunpack.c.0.s8 %v1210
    %v1212 = vperm.slane %v1204, %v1211
    %v1213 = vrot.slane %v1184, 4
    %v1214 = vsel %vm717, %v1213, %v1172
    %v1215 = vrot.slane %v1172, 4
    %v1216 = vsel %vm717, %v1184, %v1215
    %v1218 = vunpack.c.l.s4 1934713408
    %v1219 = vunpack.c.0.s8 %v1218
    %v1220 = vperm.slane %v1214, %v1219
    %v1222 = vunpack.c.l.s4 1934713408
    %v1223 = vunpack.c.0.s8 %v1222
    %v1224 = vperm.slane %v1216, %v1223
    %v1225 = vrot.slane %v1188, 4
    %v1226 = vsel %vm717, %v1225, %v1176
    %v1227 = vrot.slane %v1176, 4
    %v1228 = vsel %vm717, %v1188, %v1227
    %v1230 = vunpack.c.l.s4 1934713408
    %v1231 = vunpack.c.0.s8 %v1230
    %v1232 = vperm.slane %v1226, %v1231
    %v1234 = vunpack.c.l.s4 1934713408
    %v1235 = vunpack.c.0.s8 %v1234
    %v1236 = vperm.slane %v1228, %v1235
    %v1237 = vrot.slane %v1208, 4
    %v1238 = vsel %vm717, %v1237, %v1196
    %v1239 = vrot.slane %v1196, 4
    %v1240 = vsel %vm717, %v1208, %v1239
    %v1242 = vunpack.c.l.s4 1934713408
    %v1243 = vunpack.c.0.s8 %v1242
    %v1244 = vperm.slane %v1238, %v1243
    %v1246 = vunpack.c.l.s4 1934713408
    %v1247 = vunpack.c.0.s8 %v1246
    %v1248 = vperm.slane %v1240, %v1247
    %v1249 = vrot.slane %v1212, 4
    %v1250 = vsel %vm717, %v1249, %v1200
    %v1251 = vrot.slane %v1200, 4
    %v1252 = vsel %vm717, %v1212, %v1251
    %v1254 = vunpack.c.l.s4 1934713408
    %v1255 = vunpack.c.0.s8 %v1254
    %v1256 = vperm.slane %v1250, %v1255
    %v1258 = vunpack.c.l.s4 1934713408
    %v1259 = vunpack.c.0.s8 %v1258
    %v1260 = vperm.slane %v1252, %v1259
    %v1261 = vrot.slane %v1244, 4
    %v1262 = vsel %vm717, %v1261, %v1220
    %v1263 = vrot.slane %v1220, 4
    %v1264 = vsel %vm717, %v1244, %v1263
    %v1265 = vrot.slane %v1248, 4
    %v1266 = vsel %vm717, %v1265, %v1224
    %v1267 = vrot.slane %v1224, 4
    %v1268 = vsel %vm717, %v1248, %v1267
    %v1269 = vrot.slane %v1256, 4
    %v1270 = vsel %vm717, %v1269, %v1232
    %v1271 = vrot.slane %v1232, 4
    %v1272 = vsel %vm717, %v1256, %v1271
    %v1273 = vrot.slane %v1260, 4
    %v1274 = vsel %vm717, %v1273, %v1236
    %v1275 = vrot.slane %v1236, 4
    %v1276 = vsel %vm717, %v1260, %v1275
    %v1277 = vrot.slane %v667, 4
    %v1278 = vsel %vm717, %v1277, %v583
    %v1279 = vrot.slane %v583, 4
    %v1280 = vsel %vm717, %v667, %v1279
    %v1282 = vunpack.c.l.s4 1983009808
    %v1283 = vunpack.c.0.s8 %v1282
    %v1284 = vperm.slane %v1278, %v1283
    %v1286 = vunpack.c.l.s4 1983009808
    %v1287 = vunpack.c.0.s8 %v1286
    %v1288 = vperm.slane %v1280, %v1287
    %v1289 = vrot.slane %v676, 4
    %v1290 = vsel %vm717, %v1289, %v658
    %v1291 = vrot.slane %v658, 4
    %v1292 = vsel %vm717, %v676, %v1291
    %v1294 = vunpack.c.l.s4 1983009808
    %v1295 = vunpack.c.0.s8 %v1294
    %v1296 = vperm.slane %v1290, %v1295
    %v1298 = vunpack.c.l.s4 1983009808
    %v1299 = vunpack.c.0.s8 %v1298
    %v1300 = vperm.slane %v1292, %v1299
    %v1301 = vrot.slane %v703, 4
    %v1302 = vsel %vm717, %v1301, %v685
    %v1303 = vrot.slane %v685, 4
    %v1304 = vsel %vm717, %v703, %v1303
    %v1306 = vunpack.c.l.s4 1983009808
    %v1307 = vunpack.c.0.s8 %v1306
    %v1308 = vperm.slane %v1302, %v1307
    %v1310 = vunpack.c.l.s4 1983009808
    %v1311 = vunpack.c.0.s8 %v1310
    %v1312 = vperm.slane %v1304, %v1311
    %v1313 = vrot.slane %v712, 4
    %v1314 = vsel %vm717, %v1313, %v694
    %v1315 = vrot.slane %v694, 4
    %v1316 = vsel %vm717, %v712, %v1315
    %v1318 = vunpack.c.l.s4 1983009808
    %v1319 = vunpack.c.0.s8 %v1318
    %v1320 = vperm.slane %v1314, %v1319
    %v1322 = vunpack.c.l.s4 1983009808
    %v1323 = vunpack.c.0.s8 %v1322
    %v1324 = vperm.slane %v1316, %v1323
    %v1325 = vrot.slane %v1296, 4
    %v1326 = vsel %vm717, %v1325, %v1284
    %v1327 = vrot.slane %v1284, 4
    %v1328 = vsel %vm717, %v1296, %v1327
    %v1330 = vunpack.c.l.s4 1934713408
    %v1331 = vunpack.c.0.s8 %v1330
    %v1332 = vperm.slane %v1326, %v1331
    %v1334 = vunpack.c.l.s4 1934713408
    %v1335 = vunpack.c.0.s8 %v1334
    %v1336 = vperm.slane %v1328, %v1335
    %v1337 = vrot.slane %v1300, 4
    %v1338 = vsel %vm717, %v1337, %v1288
    %v1339 = vrot.slane %v1288, 4
    %v1340 = vsel %vm717, %v1300, %v1339
    %v1342 = vunpack.c.l.s4 1934713408
    %v1343 = vunpack.c.0.s8 %v1342
    %v1344 = vperm.slane %v1338, %v1343
    %v1346 = vunpack.c.l.s4 1934713408
    %v1347 = vunpack.c.0.s8 %v1346
    %v1348 = vperm.slane %v1340, %v1347
    %v1349 = vrot.slane %v1320, 4
    %v1350 = vsel %vm717, %v1349, %v1308
    %v1351 = vrot.slane %v1308, 4
    %v1352 = vsel %vm717, %v1320, %v1351
    %v1354 = vunpack.c.l.s4 1934713408
    %v1355 = vunpack.c.0.s8 %v1354
    %v1356 = vperm.slane %v1350, %v1355
    %v1358 = vunpack.c.l.s4 1934713408
    %v1359 = vunpack.c.0.s8 %v1358
    %v1360 = vperm.slane %v1352, %v1359
    %v1361 = vrot.slane %v1324, 4
    %v1362 = vsel %vm717, %v1361, %v1312
    %v1363 = vrot.slane %v1312, 4
    %v1364 = vsel %vm717, %v1324, %v1363
    %v1366 = vunpack.c.l.s4 1934713408
    %v1367 = vunpack.c.0.s8 %v1366
    %v1368 = vperm.slane %v1362, %v1367
    %v1370 = vunpack.c.l.s4 1934713408
    %v1371 = vunpack.c.0.s8 %v1370
    %v1372 = vperm.slane %v1364, %v1371
    %v1373 = vrot.slane %v1356, 4
    %v1374 = vsel %vm717, %v1373, %v1332
    %v1375 = vrot.slane %v1332, 4
    %v1376 = vsel %vm717, %v1356, %v1375
    %v1377 = vrot.slane %v1360, 4
    %v1378 = vsel %vm717, %v1377, %v1336
    %v1379 = vrot.slane %v1336, 4
    %v1380 = vsel %vm717, %v1360, %v1379
    %v1381 = vrot.slane %v1368, 4
    %v1382 = vsel %vm717, %v1381, %v1344
    %v1383 = vrot.slane %v1344, 4
    %v1384 = vsel %vm717, %v1368, %v1383
    %v1385 = vrot.slane %v1372, 4
    %v1386 = vsel %vm717, %v1385, %v1348
    %v1387 = vrot.slane %v1348, 4
    %v1388 = vsel %vm717, %v1372, %v1387
    %1392 = vrot.lane.b32.xlu0 %v24, 64
    %v1393 = vpop.permute.xlu0 %1392
    %1394 = vrot.lane.b32.xlu0 %v32, 64
    %v1395 = vpop.permute.xlu0 %1394
    %1396 = vrot.lane.b32.xlu0 %v40, 64
    %v1397 = vpop.permute.xlu0 %1396
    %1404 = vrot.lane.b32.xlu0 %v25, 64
    %v1405 = vpop.permute.xlu0 %1404
    %1406 = vrot.lane.b32.xlu0 %v33, 64
    %v1407 = vpop.permute.xlu0 %1406
    %1408 = vrot.lane.b32.xlu0 %v41, 64
    %v1409 = vpop.permute.xlu0 %1408
    %1416 = vrot.lane.b32.xlu0 %v26, 64
    %v1417 = vpop.permute.xlu0 %1416
    %1418 = vrot.lane.b32.xlu0 %v34, 64
    %v1419 = vpop.permute.xlu0 %1418
    %1420 = vrot.lane.b32.xlu0 %v42, 64
    %v1421 = vpop.permute.xlu0 %1420
    %1428 = vrot.lane.b32.xlu0 %v27, 64
    %v1429 = vpop.permute.xlu0 %1428
    %1430 = vrot.lane.b32.xlu0 %v35, 64
    %v1431 = vpop.permute.xlu0 %1430
    %1432 = vrot.lane.b32.xlu0 %v43, 64
    %v1433 = vpop.permute.xlu0 %1432
    %1440 = vrot.lane.b32.xlu0 %v28, 64
    %v1441 = vpop.permute.xlu0 %1440
    %1442 = vrot.lane.b32.xlu0 %v36, 64
    %v1443 = vpop.permute.xlu0 %1442
    %1444 = vrot.lane.b32.xlu0 %v44, 64
    %v1445 = vpop.permute.xlu0 %1444
    %1452 = vrot.lane.b32.xlu0 %v29, 64
    %v1453 = vpop.permute.xlu0 %1452
    %1454 = vrot.lane.b32.xlu0 %v37, 64
    %v1455 = vpop.permute.xlu0 %1454
    %1456 = vrot.lane.b32.xlu0 %v45, 64
    %v1457 = vpop.permute.xlu0 %1456
    %1464 = vrot.lane.b32.xlu0 %v30, 64
    %v1465 = vpop.permute.xlu0 %1464
    %1466 = vrot.lane.b32.xlu0 %v38, 64
    %v1467 = vpop.permute.xlu0 %1466
    %1468 = vrot.lane.b32.xlu0 %v46, 64
    %v1469 = vpop.permute.xlu0 %1468
    %1476 = vrot.lane.b32.xlu0 %v31, 64
    %v1477 = vpop.permute.xlu0 %1476
    %1478 = vrot.lane.b32.xlu0 %v39, 64
    %v1479 = vpop.permute.xlu0 %1478
    %1480 = vrot.lane.b32.xlu0 %v47, 64
    %v1481 = vpop.permute.xlu0 %1480
    %v1485 = vrot.slane %v25, 4
    %v1486 = vsel %vm717, %v1485, %v24
    %v1487 = vrot.slane %v24, 4
    %v1488 = vsel %vm717, %v25, %v1487
    %v1490 = vunpack.c.l.s4 1983009808
    %v1491 = vunpack.c.0.s8 %v1490
    %v1492 = vperm.slane %v1486, %v1491
    %v1494 = vunpack.c.l.s4 1983009808
    %v1495 = vunpack.c.0.s8 %v1494
    %v1496 = vperm.slane %v1488, %v1495
    %v1497 = vrot.slane %v1405, 4
    %v1498 = vsel %vm717, %v1497, %v1393
    %v1499 = vrot.slane %v1393, 4
    %v1500 = vsel %vm717, %v1405, %v1499
    %v1502 = vunpack.c.l.s4 1983009808
    %v1503 = vunpack.c.0.s8 %v1502
    %v1504 = vperm.slane %v1498, %v1503
    %v1506 = vunpack.c.l.s4 1983009808
    %v1507 = vunpack.c.0.s8 %v1506
    %v1508 = vperm.slane %v1500, %v1507
    %v1509 = vrot.slane %v27, 4
    %v1510 = vsel %vm717, %v1509, %v26
    %v1511 = vrot.slane %v26, 4
    %v1512 = vsel %vm717, %v27, %v1511
    %v1514 = vunpack.c.l.s4 1983009808
    %v1515 = vunpack.c.0.s8 %v1514
    %v1516 = vperm.slane %v1510, %v1515
    %v1518 = vunpack.c.l.s4 1983009808
    %v1519 = vunpack.c.0.s8 %v1518
    %v1520 = vperm.slane %v1512, %v1519
    %v1521 = vrot.slane %v1429, 4
    %v1522 = vsel %vm717, %v1521, %v1417
    %v1523 = vrot.slane %v1417, 4
    %v1524 = vsel %vm717, %v1429, %v1523
    %v1526 = vunpack.c.l.s4 1983009808
    %v1527 = vunpack.c.0.s8 %v1526
    %v1528 = vperm.slane %v1522, %v1527
    %v1530 = vunpack.c.l.s4 1983009808
    %v1531 = vunpack.c.0.s8 %v1530
    %v1532 = vperm.slane %v1524, %v1531
    %v1533 = vrot.slane %v1504, 4
    %v1534 = vsel %vm717, %v1533, %v1492
    %v1535 = vrot.slane %v1492, 4
    %v1536 = vsel %vm717, %v1504, %v1535
    %v1538 = vunpack.c.l.s4 1934713408
    %v1539 = vunpack.c.0.s8 %v1538
    %v1540 = vperm.slane %v1534, %v1539
    %v1542 = vunpack.c.l.s4 1934713408
    %v1543 = vunpack.c.0.s8 %v1542
    %v1544 = vperm.slane %v1536, %v1543
    %v1545 = vrot.slane %v1508, 4
    %v1546 = vsel %vm717, %v1545, %v1496
    %v1547 = vrot.slane %v1496, 4
    %v1548 = vsel %vm717, %v1508, %v1547
    %v1550 = vunpack.c.l.s4 1934713408
    %v1551 = vunpack.c.0.s8 %v1550
    %v1552 = vperm.slane %v1546, %v1551
    %v1554 = vunpack.c.l.s4 1934713408
    %v1555 = vunpack.c.0.s8 %v1554
    %v1556 = vperm.slane %v1548, %v1555
    %v1557 = vrot.slane %v1528, 4
    %v1558 = vsel %vm717, %v1557, %v1516
    %v1559 = vrot.slane %v1516, 4
    %v1560 = vsel %vm717, %v1528, %v1559
    %v1562 = vunpack.c.l.s4 1934713408
    %v1563 = vunpack.c.0.s8 %v1562
    %v1564 = vperm.slane %v1558, %v1563
    %v1566 = vunpack.c.l.s4 1934713408
    %v1567 = vunpack.c.0.s8 %v1566
    %v1568 = vperm.slane %v1560, %v1567
    %v1569 = vrot.slane %v1532, 4
    %v1570 = vsel %vm717, %v1569, %v1520
    %v1571 = vrot.slane %v1520, 4
    %v1572 = vsel %vm717, %v1532, %v1571
    %v1574 = vunpack.c.l.s4 1934713408
    %v1575 = vunpack.c.0.s8 %v1574
    %v1576 = vperm.slane %v1570, %v1575
    %v1578 = vunpack.c.l.s4 1934713408
    %v1579 = vunpack.c.0.s8 %v1578
    %v1580 = vperm.slane %v1572, %v1579
    %v1581 = vrot.slane %v1564, 4
    %v1582 = vsel %vm717, %v1581, %v1540
    %v1583 = vrot.slane %v1540, 4
    %v1584 = vsel %vm717, %v1564, %v1583
    %v1585 = vrot.slane %v1568, 4
    %v1586 = vsel %vm717, %v1585, %v1544
    %v1587 = vrot.slane %v1544, 4
    %v1588 = vsel %vm717, %v1568, %v1587
    %v1589 = vrot.slane %v1576, 4
    %v1590 = vsel %vm717, %v1589, %v1552
    %v1591 = vrot.slane %v1552, 4
    %v1592 = vsel %vm717, %v1576, %v1591
    %v1593 = vrot.slane %v1580, 4
    %v1594 = vsel %vm717, %v1593, %v1556
    %v1595 = vrot.slane %v1556, 4
    %v1596 = vsel %vm717, %v1580, %v1595
    %v1597 = vrot.slane %v29, 4
    %v1598 = vsel %vm717, %v1597, %v28
    %v1599 = vrot.slane %v28, 4
    %v1600 = vsel %vm717, %v29, %v1599
    %v1602 = vunpack.c.l.s4 1983009808
    %v1603 = vunpack.c.0.s8 %v1602
    %v1604 = vperm.slane %v1598, %v1603
    %v1606 = vunpack.c.l.s4 1983009808
    %v1607 = vunpack.c.0.s8 %v1606
    %v1608 = vperm.slane %v1600, %v1607
    %v1609 = vrot.slane %v1453, 4
    %v1610 = vsel %vm717, %v1609, %v1441
    %v1611 = vrot.slane %v1441, 4
    %v1612 = vsel %vm717, %v1453, %v1611
    %v1614 = vunpack.c.l.s4 1983009808
    %v1615 = vunpack.c.0.s8 %v1614
    %v1616 = vperm.slane %v1610, %v1615
    %v1618 = vunpack.c.l.s4 1983009808
    %v1619 = vunpack.c.0.s8 %v1618
    %v1620 = vperm.slane %v1612, %v1619
    %v1621 = vrot.slane %v31, 4
    %v1622 = vsel %vm717, %v1621, %v30
    %v1623 = vrot.slane %v30, 4
    %v1624 = vsel %vm717, %v31, %v1623
    %v1626 = vunpack.c.l.s4 1983009808
    %v1627 = vunpack.c.0.s8 %v1626
    %v1628 = vperm.slane %v1622, %v1627
    %v1630 = vunpack.c.l.s4 1983009808
    %v1631 = vunpack.c.0.s8 %v1630
    %v1632 = vperm.slane %v1624, %v1631
    %v1633 = vrot.slane %v1477, 4
    %v1634 = vsel %vm717, %v1633, %v1465
    %v1635 = vrot.slane %v1465, 4
    %v1636 = vsel %vm717, %v1477, %v1635
    %v1638 = vunpack.c.l.s4 1983009808
    %v1639 = vunpack.c.0.s8 %v1638
    %v1640 = vperm.slane %v1634, %v1639
    %v1642 = vunpack.c.l.s4 1983009808
    %v1643 = vunpack.c.0.s8 %v1642
    %v1644 = vperm.slane %v1636, %v1643
    %v1645 = vrot.slane %v1616, 4
    %v1646 = vsel %vm717, %v1645, %v1604
    %v1647 = vrot.slane %v1604, 4
    %v1648 = vsel %vm717, %v1616, %v1647
    %v1650 = vunpack.c.l.s4 1934713408
    %v1651 = vunpack.c.0.s8 %v1650
    %v1652 = vperm.slane %v1646, %v1651
    %v1654 = vunpack.c.l.s4 1934713408
    %v1655 = vunpack.c.0.s8 %v1654
    %v1656 = vperm.slane %v1648, %v1655
    %v1657 = vrot.slane %v1620, 4
    %v1658 = vsel %vm717, %v1657, %v1608
    %v1659 = vrot.slane %v1608, 4
    %v1660 = vsel %vm717, %v1620, %v1659
    %v1662 = vunpack.c.l.s4 1934713408
    %v1663 = vunpack.c.0.s8 %v1662
    %v1664 = vperm.slane %v1658, %v1663
    %v1666 = vunpack.c.l.s4 1934713408
    %v1667 = vunpack.c.0.s8 %v1666
    %v1668 = vperm.slane %v1660, %v1667
    %v1669 = vrot.slane %v1640, 4
    %v1670 = vsel %vm717, %v1669, %v1628
    %v1671 = vrot.slane %v1628, 4
    %v1672 = vsel %vm717, %v1640, %v1671
    %v1674 = vunpack.c.l.s4 1934713408
    %v1675 = vunpack.c.0.s8 %v1674
    %v1676 = vperm.slane %v1670, %v1675
    %v1678 = vunpack.c.l.s4 1934713408
    %v1679 = vunpack.c.0.s8 %v1678
    %v1680 = vperm.slane %v1672, %v1679
    %v1681 = vrot.slane %v1644, 4
    %v1682 = vsel %vm717, %v1681, %v1632
    %v1683 = vrot.slane %v1632, 4
    %v1684 = vsel %vm717, %v1644, %v1683
    %v1686 = vunpack.c.l.s4 1934713408
    %v1687 = vunpack.c.0.s8 %v1686
    %v1688 = vperm.slane %v1682, %v1687
    %v1690 = vunpack.c.l.s4 1934713408
    %v1691 = vunpack.c.0.s8 %v1690
    %v1692 = vperm.slane %v1684, %v1691
    %v1693 = vrot.slane %v1676, 4
    %v1694 = vsel %vm717, %v1693, %v1652
    %v1695 = vrot.slane %v1652, 4
    %v1696 = vsel %vm717, %v1676, %v1695
    %v1697 = vrot.slane %v1680, 4
    %v1698 = vsel %vm717, %v1697, %v1656
    %v1699 = vrot.slane %v1656, 4
    %v1700 = vsel %vm717, %v1680, %v1699
    %v1701 = vrot.slane %v1688, 4
    %v1702 = vsel %vm717, %v1701, %v1664
    %v1703 = vrot.slane %v1664, 4
    %v1704 = vsel %vm717, %v1688, %v1703
    %v1705 = vrot.slane %v1692, 4
    %v1706 = vsel %vm717, %v1705, %v1668
    %v1707 = vrot.slane %v1668, 4
    %v1708 = vsel %vm717, %v1692, %v1707
    %v1709 = vrot.slane %v33, 4
    %v1710 = vsel %vm717, %v1709, %v32
    %v1711 = vrot.slane %v32, 4
    %v1712 = vsel %vm717, %v33, %v1711
    %v1714 = vunpack.c.l.s4 1983009808
    %v1715 = vunpack.c.0.s8 %v1714
    %v1716 = vperm.slane %v1710, %v1715
    %v1718 = vunpack.c.l.s4 1983009808
    %v1719 = vunpack.c.0.s8 %v1718
    %v1720 = vperm.slane %v1712, %v1719
    %v1721 = vrot.slane %v1407, 4
    %v1722 = vsel %vm717, %v1721, %v1395
    %v1723 = vrot.slane %v1395, 4
    %v1724 = vsel %vm717, %v1407, %v1723
    %v1726 = vunpack.c.l.s4 1983009808
    %v1727 = vunpack.c.0.s8 %v1726
    %v1728 = vperm.slane %v1722, %v1727
    %v1730 = vunpack.c.l.s4 1983009808
    %v1731 = vunpack.c.0.s8 %v1730
    %v1732 = vperm.slane %v1724, %v1731
    %v1733 = vrot.slane %v35, 4
    %v1734 = vsel %vm717, %v1733, %v34
    %v1735 = vrot.slane %v34, 4
    %v1736 = vsel %vm717, %v35, %v1735
    %v1738 = vunpack.c.l.s4 1983009808
    %v1739 = vunpack.c.0.s8 %v1738
    %v1740 = vperm.slane %v1734, %v1739
    %v1742 = vunpack.c.l.s4 1983009808
    %v1743 = vunpack.c.0.s8 %v1742
    %v1744 = vperm.slane %v1736, %v1743
    %v1745 = vrot.slane %v1431, 4
    %v1746 = vsel %vm717, %v1745, %v1419
    %v1747 = vrot.slane %v1419, 4
    %v1748 = vsel %vm717, %v1431, %v1747
    %v1750 = vunpack.c.l.s4 1983009808
    %v1751 = vunpack.c.0.s8 %v1750
    %v1752 = vperm.slane %v1746, %v1751
    %v1754 = vunpack.c.l.s4 1983009808
    %v1755 = vunpack.c.0.s8 %v1754
    %v1756 = vperm.slane %v1748, %v1755
    %v1757 = vrot.slane %v1728, 4
    %v1758 = vsel %vm717, %v1757, %v1716
    %v1759 = vrot.slane %v1716, 4
    %v1760 = vsel %vm717, %v1728, %v1759
    %v1762 = vunpack.c.l.s4 1934713408
    %v1763 = vunpack.c.0.s8 %v1762
    %v1764 = vperm.slane %v1758, %v1763
    %v1766 = vunpack.c.l.s4 1934713408
    %v1767 = vunpack.c.0.s8 %v1766
    %v1768 = vperm.slane %v1760, %v1767
    %v1769 = vrot.slane %v1732, 4
    %v1770 = vsel %vm717, %v1769, %v1720
    %v1771 = vrot.slane %v1720, 4
    %v1772 = vsel %vm717, %v1732, %v1771
    %v1774 = vunpack.c.l.s4 1934713408
    %v1775 = vunpack.c.0.s8 %v1774
    %v1776 = vperm.slane %v1770, %v1775
    %v1778 = vunpack.c.l.s4 1934713408
    %v1779 = vunpack.c.0.s8 %v1778
    %v1780 = vperm.slane %v1772, %v1779
    %v1781 = vrot.slane %v1752, 4
    %v1782 = vsel %vm717, %v1781, %v1740
    %v1783 = vrot.slane %v1740, 4
    %v1784 = vsel %vm717, %v1752, %v1783
    %v1786 = vunpack.c.l.s4 1934713408
    %v1787 = vunpack.c.0.s8 %v1786
    %v1788 = vperm.slane %v1782, %v1787
    %v1790 = vunpack.c.l.s4 1934713408
    %v1791 = vunpack.c.0.s8 %v1790
    %v1792 = vperm.slane %v1784, %v1791
    %v1793 = vrot.slane %v1756, 4
    %v1794 = vsel %vm717, %v1793, %v1744
    %v1795 = vrot.slane %v1744, 4
    %v1796 = vsel %vm717, %v1756, %v1795
    %v1798 = vunpack.c.l.s4 1934713408
    %v1799 = vunpack.c.0.s8 %v1798
    %v1800 = vperm.slane %v1794, %v1799
    %v1802 = vunpack.c.l.s4 1934713408
    %v1803 = vunpack.c.0.s8 %v1802
    %v1804 = vperm.slane %v1796, %v1803
    %v1805 = vrot.slane %v1788, 4
    %v1806 = vsel %vm717, %v1805, %v1764
    %v1807 = vrot.slane %v1764, 4
    %v1808 = vsel %vm717, %v1788, %v1807
    %v1809 = vrot.slane %v1792, 4
    %v1810 = vsel %vm717, %v1809, %v1768
    %v1811 = vrot.slane %v1768, 4
    %v1812 = vsel %vm717, %v1792, %v1811
    %v1813 = vrot.slane %v1800, 4
    %v1814 = vsel %vm717, %v1813, %v1776
    %v1815 = vrot.slane %v1776, 4
    %v1816 = vsel %vm717, %v1800, %v1815
    %v1817 = vrot.slane %v1804, 4
    %v1818 = vsel %vm717, %v1817, %v1780
    %v1819 = vrot.slane %v1780, 4
    %v1820 = vsel %vm717, %v1804, %v1819
    %v1821 = vrot.slane %v37, 4
    %v1822 = vsel %vm717, %v1821, %v36
    %v1823 = vrot.slane %v36, 4
    %v1824 = vsel %vm717, %v37, %v1823
    %v1826 = vunpack.c.l.s4 1983009808
    %v1827 = vunpack.c.0.s8 %v1826
    %v1828 = vperm.slane %v1822, %v1827
    %v1830 = vunpack.c.l.s4 1983009808
    %v1831 = vunpack.c.0.s8 %v1830
    %v1832 = vperm.slane %v1824, %v1831
    %v1833 = vrot.slane %v1455, 4
    %v1834 = vsel %vm717, %v1833, %v1443
    %v1835 = vrot.slane %v1443, 4
    %v1836 = vsel %vm717, %v1455, %v1835
    %v1838 = vunpack.c.l.s4 1983009808
    %v1839 = vunpack.c.0.s8 %v1838
    %v1840 = vperm.slane %v1834, %v1839
    %v1842 = vunpack.c.l.s4 1983009808
    %v1843 = vunpack.c.0.s8 %v1842
    %v1844 = vperm.slane %v1836, %v1843
    %v1845 = vrot.slane %v39, 4
    %v1846 = vsel %vm717, %v1845, %v38
    %v1847 = vrot.slane %v38, 4
    %v1848 = vsel %vm717, %v39, %v1847
    %v1850 = vunpack.c.l.s4 1983009808
    %v1851 = vunpack.c.0.s8 %v1850
    %v1852 = vperm.slane %v1846, %v1851
    %v1854 = vunpack.c.l.s4 1983009808
    %v1855 = vunpack.c.0.s8 %v1854
    %v1856 = vperm.slane %v1848, %v1855
    %v1857 = vrot.slane %v1479, 4
    %v1858 = vsel %vm717, %v1857, %v1467
    %v1859 = vrot.slane %v1467, 4
    %v1860 = vsel %vm717, %v1479, %v1859
    %v1862 = vunpack.c.l.s4 1983009808
    %v1863 = vunpack.c.0.s8 %v1862
    %v1864 = vperm.slane %v1858, %v1863
    %v1866 = vunpack.c.l.s4 1983009808
    %v1867 = vunpack.c.0.s8 %v1866
    %v1868 = vperm.slane %v1860, %v1867
    %v1869 = vrot.slane %v1840, 4
    %v1870 = vsel %vm717, %v1869, %v1828
    %v1871 = vrot.slane %v1828, 4
    %v1872 = vsel %vm717, %v1840, %v1871
    %v1874 = vunpack.c.l.s4 1934713408
    %v1875 = vunpack.c.0.s8 %v1874
    %v1876 = vperm.slane %v1870, %v1875
    %v1878 = vunpack.c.l.s4 1934713408
    %v1879 = vunpack.c.0.s8 %v1878
    %v1880 = vperm.slane %v1872, %v1879
    %v1881 = vrot.slane %v1844, 4
    %v1882 = vsel %vm717, %v1881, %v1832
    %v1883 = vrot.slane %v1832, 4
    %v1884 = vsel %vm717, %v1844, %v1883
    %v1886 = vunpack.c.l.s4 1934713408
    %v1887 = vunpack.c.0.s8 %v1886
    %v1888 = vperm.slane %v1882, %v1887
    %v1890 = vunpack.c.l.s4 1934713408
    %v1891 = vunpack.c.0.s8 %v1890
    %v1892 = vperm.slane %v1884, %v1891
    %v1893 = vrot.slane %v1864, 4
    %v1894 = vsel %vm717, %v1893, %v1852
    %v1895 = vrot.slane %v1852, 4
    %v1896 = vsel %vm717, %v1864, %v1895
    %v1898 = vunpack.c.l.s4 1934713408
    %v1899 = vunpack.c.0.s8 %v1898
    %v1900 = vperm.slane %v1894, %v1899
    %v1902 = vunpack.c.l.s4 1934713408
    %v1903 = vunpack.c.0.s8 %v1902
    %v1904 = vperm.slane %v1896, %v1903
    %v1905 = vrot.slane %v1868, 4
    %v1906 = vsel %vm717, %v1905, %v1856
    %v1907 = vrot.slane %v1856, 4
    %v1908 = vsel %vm717, %v1868, %v1907
    %v1910 = vunpack.c.l.s4 1934713408
    %v1911 = vunpack.c.0.s8 %v1910
    %v1912 = vperm.slane %v1906, %v1911
    %v1914 = vunpack.c.l.s4 1934713408
    %v1915 = vunpack.c.0.s8 %v1914
    %v1916 = vperm.slane %v1908, %v1915
    %v1917 = vrot.slane %v1900, 4
    %v1918 = vsel %vm717, %v1917, %v1876
    %v1919 = vrot.slane %v1876, 4
    %v1920 = vsel %vm717, %v1900, %v1919
    %v1921 = vrot.slane %v1904, 4
    %v1922 = vsel %vm717, %v1921, %v1880
    %v1923 = vrot.slane %v1880, 4
    %v1924 = vsel %vm717, %v1904, %v1923
    %v1925 = vrot.slane %v1912, 4
    %v1926 = vsel %vm717, %v1925, %v1888
    %v1927 = vrot.slane %v1888, 4
    %v1928 = vsel %vm717, %v1912, %v1927
    %v1929 = vrot.slane %v1916, 4
    %v1930 = vsel %vm717, %v1929, %v1892
    %v1931 = vrot.slane %v1892, 4
    %v1932 = vsel %vm717, %v1916, %v1931
    %v1933 = vrot.slane %v41, 4
    %v1934 = vsel %vm717, %v1933, %v40
    %v1935 = vrot.slane %v40, 4
    %v1936 = vsel %vm717, %v41, %v1935
    %v1938 = vunpack.c.l.s4 1983009808
    %v1939 = vunpack.c.0.s8 %v1938
    %v1940 = vperm.slane %v1934, %v1939
    %v1942 = vunpack.c.l.s4 1983009808
    %v1943 = vunpack.c.0.s8 %v1942
    %v1944 = vperm.slane %v1936, %v1943
    %v1945 = vrot.slane %v1409, 4
    %v1946 = vsel %vm717, %v1945, %v1397
    %v1947 = vrot.slane %v1397, 4
    %v1948 = vsel %vm717, %v1409, %v1947
    %v1950 = vunpack.c.l.s4 1983009808
    %v1951 = vunpack.c.0.s8 %v1950
    %v1952 = vperm.slane %v1946, %v1951
    %v1954 = vunpack.c.l.s4 1983009808
    %v1955 = vunpack.c.0.s8 %v1954
    %v1956 = vperm.slane %v1948, %v1955
    %v1957 = vrot.slane %v43, 4
    %v1958 = vsel %vm717, %v1957, %v42
    %v1959 = vrot.slane %v42, 4
    %v1960 = vsel %vm717, %v43, %v1959
    %v1962 = vunpack.c.l.s4 1983009808
    %v1963 = vunpack.c.0.s8 %v1962
    %v1964 = vperm.slane %v1958, %v1963
    %v1966 = vunpack.c.l.s4 1983009808
    %v1967 = vunpack.c.0.s8 %v1966
    %v1968 = vperm.slane %v1960, %v1967
    %v1969 = vrot.slane %v1433, 4
    %v1970 = vsel %vm717, %v1969, %v1421
    %v1971 = vrot.slane %v1421, 4
    %v1972 = vsel %vm717, %v1433, %v1971
    %v1974 = vunpack.c.l.s4 1983009808
    %v1975 = vunpack.c.0.s8 %v1974
    %v1976 = vperm.slane %v1970, %v1975
    %v1978 = vunpack.c.l.s4 1983009808
    %v1979 = vunpack.c.0.s8 %v1978
    %v1980 = vperm.slane %v1972, %v1979
    %v1981 = vrot.slane %v1952, 4
    %v1982 = vsel %vm717, %v1981, %v1940
    %v1983 = vrot.slane %v1940, 4
    %v1984 = vsel %vm717, %v1952, %v1983
    %v1986 = vunpack.c.l.s4 1934713408
    %v1987 = vunpack.c.0.s8 %v1986
    %v1988 = vperm.slane %v1982, %v1987
    %v1990 = vunpack.c.l.s4 1934713408
    %v1991 = vunpack.c.0.s8 %v1990
    %v1992 = vperm.slane %v1984, %v1991
    %v1993 = vrot.slane %v1956, 4
    %v1994 = vsel %vm717, %v1993, %v1944
    %v1995 = vrot.slane %v1944, 4
    %v1996 = vsel %vm717, %v1956, %v1995
    %v1998 = vunpack.c.l.s4 1934713408
    %v1999 = vunpack.c.0.s8 %v1998
    %v2000 = vperm.slane %v1994, %v1999
    %v2002 = vunpack.c.l.s4 1934713408
    %v2003 = vunpack.c.0.s8 %v2002
    %v2004 = vperm.slane %v1996, %v2003
    %v2005 = vrot.slane %v1976, 4
    %v2006 = vsel %vm717, %v2005, %v1964
    %v2007 = vrot.slane %v1964, 4
    %v2008 = vsel %vm717, %v1976, %v2007
    %v2010 = vunpack.c.l.s4 1934713408
    %v2011 = vunpack.c.0.s8 %v2010
    %v2012 = vperm.slane %v2006, %v2011
    %v2014 = vunpack.c.l.s4 1934713408
    %v2015 = vunpack.c.0.s8 %v2014
    %v2016 = vperm.slane %v2008, %v2015
    %v2017 = vrot.slane %v1980, 4
    %v2018 = vsel %vm717, %v2017, %v1968
    %v2019 = vrot.slane %v1968, 4
    %v2020 = vsel %vm717, %v1980, %v2019
    %v2022 = vunpack.c.l.s4 1934713408
    %v2023 = vunpack.c.0.s8 %v2022
    %v2024 = vperm.slane %v2018, %v2023
    %v2026 = vunpack.c.l.s4 1934713408
    %v2027 = vunpack.c.0.s8 %v2026
    %v2028 = vperm.slane %v2020, %v2027
    %v2029 = vrot.slane %v2012, 4
    %v2030 = vsel %vm717, %v2029, %v1988
    %v2031 = vrot.slane %v1988, 4
    %v2032 = vsel %vm717, %v2012, %v2031
    %v2033 = vrot.slane %v2016, 4
    %v2034 = vsel %vm717, %v2033, %v1992
    %v2035 = vrot.slane %v1992, 4
    %v2036 = vsel %vm717, %v2016, %v2035
    %v2037 = vrot.slane %v2024, 4
    %v2038 = vsel %vm717, %v2037, %v2000
    %v2039 = vrot.slane %v2000, 4
    %v2040 = vsel %vm717, %v2024, %v2039
    %v2041 = vrot.slane %v2028, 4
    %v2042 = vsel %vm717, %v2041, %v2004
    %v2043 = vrot.slane %v2004, 4
    %v2044 = vsel %vm717, %v2028, %v2043
    %v2045 = vrot.slane %v45, 4
    %v2046 = vsel %vm717, %v2045, %v44
    %v2047 = vrot.slane %v44, 4
    %v2048 = vsel %vm717, %v45, %v2047
    %v2050 = vunpack.c.l.s4 1983009808
    %v2051 = vunpack.c.0.s8 %v2050
    %v2052 = vperm.slane %v2046, %v2051
    %v2054 = vunpack.c.l.s4 1983009808
    %v2055 = vunpack.c.0.s8 %v2054
    %v2056 = vperm.slane %v2048, %v2055
    %v2057 = vrot.slane %v1457, 4
    %v2058 = vsel %vm717, %v2057, %v1445
    %v2059 = vrot.slane %v1445, 4
    %v2060 = vsel %vm717, %v1457, %v2059
    %v2062 = vunpack.c.l.s4 1983009808
    %v2063 = vunpack.c.0.s8 %v2062
    %v2064 = vperm.slane %v2058, %v2063
    %v2066 = vunpack.c.l.s4 1983009808
    %v2067 = vunpack.c.0.s8 %v2066
    %v2068 = vperm.slane %v2060, %v2067
    %v2069 = vrot.slane %v47, 4
    %v2070 = vsel %vm717, %v2069, %v46
    %v2071 = vrot.slane %v46, 4
    %v2072 = vsel %vm717, %v47, %v2071
    %v2074 = vunpack.c.l.s4 1983009808
    %v2075 = vunpack.c.0.s8 %v2074
    %v2076 = vperm.slane %v2070, %v2075
    %v2078 = vunpack.c.l.s4 1983009808
    %v2079 = vunpack.c.0.s8 %v2078
    %v2080 = vperm.slane %v2072, %v2079
    %v2081 = vrot.slane %v1481, 4
    %v2082 = vsel %vm717, %v2081, %v1469
    %v2083 = vrot.slane %v1469, 4
    %v2084 = vsel %vm717, %v1481, %v2083
    %v2086 = vunpack.c.l.s4 1983009808
    %v2087 = vunpack.c.0.s8 %v2086
    %v2088 = vperm.slane %v2082, %v2087
    %v2090 = vunpack.c.l.s4 1983009808
    %v2091 = vunpack.c.0.s8 %v2090
    %v2092 = vperm.slane %v2084, %v2091
    %v2093 = vrot.slane %v2064, 4
    %v2094 = vsel %vm717, %v2093, %v2052
    %v2095 = vrot.slane %v2052, 4
    %v2096 = vsel %vm717, %v2064, %v2095
    %v2098 = vunpack.c.l.s4 1934713408
    %v2099 = vunpack.c.0.s8 %v2098
    %v2100 = vperm.slane %v2094, %v2099
    %v2102 = vunpack.c.l.s4 1934713408
    %v2103 = vunpack.c.0.s8 %v2102
    %v2104 = vperm.slane %v2096, %v2103
    %v2105 = vrot.slane %v2068, 4
    %v2106 = vsel %vm717, %v2105, %v2056
    %v2107 = vrot.slane %v2056, 4
    %v2108 = vsel %vm717, %v2068, %v2107
    %v2110 = vunpack.c.l.s4 1934713408
    %v2111 = vunpack.c.0.s8 %v2110
    %v2112 = vperm.slane %v2106, %v2111
    %v2114 = vunpack.c.l.s4 1934713408
    %v2115 = vunpack.c.0.s8 %v2114
    %v2116 = vperm.slane %v2108, %v2115
    %v2117 = vrot.slane %v2088, 4
    %v2118 = vsel %vm717, %v2117, %v2076
    %v2119 = vrot.slane %v2076, 4
    %v2120 = vsel %vm717, %v2088, %v2119
    %v2122 = vunpack.c.l.s4 1934713408
    %v2123 = vunpack.c.0.s8 %v2122
    %v2124 = vperm.slane %v2118, %v2123
    %v2126 = vunpack.c.l.s4 1934713408
    %v2127 = vunpack.c.0.s8 %v2126
    %v2128 = vperm.slane %v2120, %v2127
    %v2129 = vrot.slane %v2092, 4
    %v2130 = vsel %vm717, %v2129, %v2080
    %v2131 = vrot.slane %v2080, 4
    %v2132 = vsel %vm717, %v2092, %v2131
    %v2134 = vunpack.c.l.s4 1934713408
    %v2135 = vunpack.c.0.s8 %v2134
    %v2136 = vperm.slane %v2130, %v2135
    %v2138 = vunpack.c.l.s4 1934713408
    %v2139 = vunpack.c.0.s8 %v2138
    %v2140 = vperm.slane %v2132, %v2139
    %v2141 = vrot.slane %v2124, 4
    %v2142 = vsel %vm717, %v2141, %v2100
    %v2143 = vrot.slane %v2100, 4
    %v2144 = vsel %vm717, %v2124, %v2143
    %v2145 = vrot.slane %v2128, 4
    %v2146 = vsel %vm717, %v2145, %v2104
    %v2147 = vrot.slane %v2104, 4
    %v2148 = vsel %vm717, %v2128, %v2147
    %v2149 = vrot.slane %v2136, 4
    %v2150 = vsel %vm717, %v2149, %v2112
    %v2151 = vrot.slane %v2112, 4
    %v2152 = vsel %vm717, %v2136, %v2151
    %v2153 = vrot.slane %v2140, 4
    %v2154 = vsel %vm717, %v2153, %v2116
    %v2155 = vrot.slane %v2116, 4
    %v2156 = vsel %vm717, %v2140, %v2155
    %v2158 = vsel %vm390, %v814, 0
    %v2161 = vsel %vm390, %v926, 0
    %2163 = vmatpush.msra.mxu0 0.0
    %2164 = vmatpush.msra.mxu0 0.0
    %2165 = vmatpush.msra.mxu0 0.0
    %2166 = vmatpush.msra.mxu0 0.0
    %2167 = vmatpush.msra.mxu0 0.0
    %2168 = vmatpush.msra.mxu0 0.0
    %2169 = vmatpush.msra.mxu0 0.0
    %2170 = vmatpush.msra.mxu0 0.0
    %2171 = vmatpush.msra.mxu0 0.0
    %2172 = vmatpush.msra.mxu0 0.0
    %2173 = vmatpush.msra.mxu0 0.0
    %2174 = vmatpush.msra.mxu0 0.0
    %2175 = vmatpush.msra.mxu0 0.0
    %2176 = vmatpush.msra.mxu0 0.0
    %2177 = vmatpush.msra.mxu0 %v1694
    %2178 = vmatpush.msra.mxu0 %v1582
    %2179 = vmatmul.f32.gmra.mxu0 %v2158
    %v2180 = vpop.f32.mrf.mxu0
    %v2181 = vadd.f32 0.0, %v2180
    %2182 = vmatmul.f32.gmra.mxu0 %v2161
    %v2183 = vpop.f32.mrf.mxu0
    %v2184 = vadd.f32 0.0, %v2183
    %2185 = vdwg.mxu0
    %v2187 = vsel %vm390, %v816, 0
    %v2190 = vsel %vm390, %v928, 0
    %2192 = vmatpush.msra.mxu0 0.0
    %2193 = vmatpush.msra.mxu0 0.0
    %2194 = vmatpush.msra.mxu0 0.0
    %2195 = vmatpush.msra.mxu0 0.0
    %2196 = vmatpush.msra.mxu0 0.0
    %2197 = vmatpush.msra.mxu0 0.0
    %2198 = vmatpush.msra.mxu0 0.0
    %2199 = vmatpush.msra.mxu0 0.0
    %2200 = vmatpush.msra.mxu0 0.0
    %2201 = vmatpush.msra.mxu0 0.0
    %2202 = vmatpush.msra.mxu0 0.0
    %2203 = vmatpush.msra.mxu0 0.0
    %2204 = vmatpush.msra.mxu0 0.0
    %2205 = vmatpush.msra.mxu0 0.0
    %2206 = vmatpush.msra.mxu0 %v1696
    %2207 = vmatpush.msra.mxu0 %v1584
    %2208 = vmatmul.f32.gmra.mxu0 %v2187
    %v2209 = vpop.f32.mrf.mxu0
    %v2210 = vadd.f32 0.0, %v2209
    %2211 = vmatmul.f32.gmra.mxu0 %v2190
    %v2212 = vpop.f32.mrf.mxu0
    %v2213 = vadd.f32 0.0, %v2212
    %2214 = vdwg.mxu0
    %v2216 = vsel %vm390, %v818, 0
    %v2219 = vsel %vm390, %v930, 0
    %2221 = vmatpush.msra.mxu0 0.0
    %2222 = vmatpush.msra.mxu0 0.0
    %2223 = vmatpush.msra.mxu0 0.0
    %2224 = vmatpush.msra.mxu0 0.0
    %2225 = vmatpush.msra.mxu0 0.0
    %2226 = vmatpush.msra.mxu0 0.0
    %2227 = vmatpush.msra.mxu0 0.0
    %2228 = vmatpush.msra.mxu0 0.0
    %2229 = vmatpush.msra.mxu0 0.0
    %2230 = vmatpush.msra.mxu0 0.0
    %2231 = vmatpush.msra.mxu0 0.0
    %2232 = vmatpush.msra.mxu0 0.0
    %2233 = vmatpush.msra.mxu0 0.0
    %2234 = vmatpush.msra.mxu0 0.0
    %2235 = vmatpush.msra.mxu0 %v1698
    %2236 = vmatpush.msra.mxu0 %v1586
    %2237 = vmatmul.f32.gmra.mxu0 %v2216
    %v2238 = vpop.f32.mrf.mxu0
    %v2239 = vadd.f32 0.0, %v2238
    %2240 = vmatmul.f32.gmra.mxu0 %v2219
    %v2241 = vpop.f32.mrf.mxu0
    %v2242 = vadd.f32 0.0, %v2241
    %2243 = vdwg.mxu0
    %v2245 = vsel %vm390, %v820, 0
    %v2248 = vsel %vm390, %v932, 0
    %2250 = vmatpush.msra.mxu0 0.0
    %2251 = vmatpush.msra.mxu0 0.0
    %2252 = vmatpush.msra.mxu0 0.0
    %2253 = vmatpush.msra.mxu0 0.0
    %2254 = vmatpush.msra.mxu0 0.0
    %2255 = vmatpush.msra.mxu0 0.0
    %2256 = vmatpush.msra.mxu0 0.0
    %2257 = vmatpush.msra.mxu0 0.0
    %2258 = vmatpush.msra.mxu0 0.0
    %2259 = vmatpush.msra.mxu0 0.0
    %2260 = vmatpush.msra.mxu0 0.0
    %2261 = vmatpush.msra.mxu0 0.0
    %2262 = vmatpush.msra.mxu0 0.0
    %2263 = vmatpush.msra.mxu0 0.0
    %2264 = vmatpush.msra.mxu0 %v1700
    %2265 = vmatpush.msra.mxu0 %v1588
    %2266 = vmatmul.f32.gmra.mxu0 %v2245
    %v2267 = vpop.f32.mrf.mxu0
    %v2268 = vadd.f32 0.0, %v2267
    %2269 = vmatmul.f32.gmra.mxu0 %v2248
    %v2270 = vpop.f32.mrf.mxu0
    %v2271 = vadd.f32 0.0, %v2270
    %2272 = vdwg.mxu0
    %v2274 = vsel %vm390, %v822, 0
    %v2277 = vsel %vm390, %v934, 0
    %2279 = vmatpush.msra.mxu0 0.0
    %2280 = vmatpush.msra.mxu0 0.0
    %2281 = vmatpush.msra.mxu0 0.0
    %2282 = vmatpush.msra.mxu0 0.0
    %2283 = vmatpush.msra.mxu0 0.0
    %2284 = vmatpush.msra.mxu0 0.0
    %2285 = vmatpush.msra.mxu0 0.0
    %2286 = vmatpush.msra.mxu0 0.0
    %2287 = vmatpush.msra.mxu0 0.0
    %2288 = vmatpush.msra.mxu0 0.0
    %2289 = vmatpush.msra.mxu0 0.0
    %2290 = vmatpush.msra.mxu0 0.0
    %2291 = vmatpush.msra.mxu0 0.0
    %2292 = vmatpush.msra.mxu0 0.0
    %2293 = vmatpush.msra.mxu0 %v1702
    %2294 = vmatpush.msra.mxu0 %v1590
    %2295 = vmatmul.f32.gmra.mxu0 %v2274
    %v2296 = vpop.f32.mrf.mxu0
    %v2297 = vadd.f32 0.0, %v2296
    %2298 = vmatmul.f32.gmra.mxu0 %v2277
    %v2299 = vpop.f32.mrf.mxu0
    %v2300 = vadd.f32 0.0, %v2299
    %2301 = vdwg.mxu0
    %v2303 = vsel %vm390, %v824, 0
    %v2306 = vsel %vm390, %v936, 0
    %2308 = vmatpush.msra.mxu0 0.0
    %2309 = vmatpush.msra.mxu0 0.0
    %2310 = vmatpush.msra.mxu0 0.0
    %2311 = vmatpush.msra.mxu0 0.0
    %2312 = vmatpush.msra.mxu0 0.0
    %2313 = vmatpush.msra.mxu0 0.0
    %2314 = vmatpush.msra.mxu0 0.0
    %2315 = vmatpush.msra.mxu0 0.0
    %2316 = vmatpush.msra.mxu0 0.0
    %2317 = vmatpush.msra.mxu0 0.0
    %2318 = vmatpush.msra.mxu0 0.0
    %2319 = vmatpush.msra.mxu0 0.0
    %2320 = vmatpush.msra.mxu0 0.0
    %2321 = vmatpush.msra.mxu0 0.0
    %2322 = vmatpush.msra.mxu0 %v1704
    %2323 = vmatpush.msra.mxu0 %v1592
    %2324 = vmatmul.f32.gmra.mxu0 %v2303
    %v2325 = vpop.f32.mrf.mxu0
    %v2326 = vadd.f32 0.0, %v2325
    %2327 = vmatmul.f32.gmra.mxu0 %v2306
    %v2328 = vpop.f32.mrf.mxu0
    %v2329 = vadd.f32 0.0, %v2328
    %2330 = vdwg.mxu0
    %v2332 = vsel %vm390, %v826, 0
    %v2335 = vsel %vm390, %v938, 0
    %2337 = vmatpush.msra.mxu0 0.0
    %2338 = vmatpush.msra.mxu0 0.0
    %2339 = vmatpush.msra.mxu0 0.0
    %2340 = vmatpush.msra.mxu0 0.0
    %2341 = vmatpush.msra.mxu0 0.0
    %2342 = vmatpush.msra.mxu0 0.0
    %2343 = vmatpush.msra.mxu0 0.0
    %2344 = vmatpush.msra.mxu0 0.0
    %2345 = vmatpush.msra.mxu0 0.0
    %2346 = vmatpush.msra.mxu0 0.0
    %2347 = vmatpush.msra.mxu0 0.0
    %2348 = vmatpush.msra.mxu0 0.0
    %2349 = vmatpush.msra.mxu0 0.0
    %2350 = vmatpush.msra.mxu0 0.0
    %2351 = vmatpush.msra.mxu0 %v1706
    %2352 = vmatpush.msra.mxu0 %v1594
    %2353 = vmatmul.f32.gmra.mxu0 %v2332
    %v2354 = vpop.f32.mrf.mxu0
    %v2355 = vadd.f32 0.0, %v2354
    %2356 = vmatmul.f32.gmra.mxu0 %v2335
    %v2357 = vpop.f32.mrf.mxu0
    %v2358 = vadd.f32 0.0, %v2357
    %2359 = vdwg.mxu0
    %v2361 = vsel %vm390, %v828, 0
    %v2364 = vsel %vm390, %v940, 0
    %2366 = vmatpush.msra.mxu0 0.0
    %2367 = vmatpush.msra.mxu0 0.0
    %2368 = vmatpush.msra.mxu0 0.0
    %2369 = vmatpush.msra.mxu0 0.0
    %2370 = vmatpush.msra.mxu0 0.0
    %2371 = vmatpush.msra.mxu0 0.0
    %2372 = vmatpush.msra.mxu0 0.0
    %2373 = vmatpush.msra.mxu0 0.0
    %2374 = vmatpush.msra.mxu0 0.0
    %2375 = vmatpush.msra.mxu0 0.0
    %2376 = vmatpush.msra.mxu0 0.0
    %2377 = vmatpush.msra.mxu0 0.0
    %2378 = vmatpush.msra.mxu0 0.0
    %2379 = vmatpush.msra.mxu0 0.0
    %2380 = vmatpush.msra.mxu0 %v1708
    %2381 = vmatpush.msra.mxu0 %v1596
    %2382 = vmatmul.f32.gmra.mxu0 %v2361
    %v2383 = vpop.f32.mrf.mxu0
    %v2384 = vadd.f32 0.0, %v2383
    %2385 = vmatmul.f32.gmra.mxu0 %v2364
    %v2386 = vpop.f32.mrf.mxu0
    %v2387 = vadd.f32 0.0, %v2386
    %2388 = vdwg.mxu0
    %v2390 = vsel %vm390, %v1038, 0
    %v2393 = vsel %vm390, %v1150, 0
    %2395 = vmatpush.msra.mxu0 0.0
    %2396 = vmatpush.msra.mxu0 0.0
    %2397 = vmatpush.msra.mxu0 0.0
    %2398 = vmatpush.msra.mxu0 0.0
    %2399 = vmatpush.msra.mxu0 0.0
    %2400 = vmatpush.msra.mxu0 0.0
    %2401 = vmatpush.msra.mxu0 0.0
    %2402 = vmatpush.msra.mxu0 0.0
    %2403 = vmatpush.msra.mxu0 0.0
    %2404 = vmatpush.msra.mxu0 0.0
    %2405 = vmatpush.msra.mxu0 0.0
    %2406 = vmatpush.msra.mxu0 0.0
    %2407 = vmatpush.msra.mxu0 0.0
    %2408 = vmatpush.msra.mxu0 0.0
    %2409 = vmatpush.msra.mxu0 %v1918
    %2410 = vmatpush.msra.mxu0 %v1806
    %2411 = vmatmul.f32.gmra.mxu0 %v2390
    %v2412 = vpop.f32.mrf.mxu0
    %v2413 = vadd.f32 0.0, %v2412
    %2414 = vmatmul.f32.gmra.mxu0 %v2393
    %v2415 = vpop.f32.mrf.mxu0
    %v2416 = vadd.f32 0.0, %v2415
    %2417 = vdwg.mxu0
    %v2419 = vsel %vm390, %v1040, 0
    %v2422 = vsel %vm390, %v1152, 0
    %2424 = vmatpush.msra.mxu0 0.0
    %2425 = vmatpush.msra.mxu0 0.0
    %2426 = vmatpush.msra.mxu0 0.0
    %2427 = vmatpush.msra.mxu0 0.0
    %2428 = vmatpush.msra.mxu0 0.0
    %2429 = vmatpush.msra.mxu0 0.0
    %2430 = vmatpush.msra.mxu0 0.0
    %2431 = vmatpush.msra.mxu0 0.0
    %2432 = vmatpush.msra.mxu0 0.0
    %2433 = vmatpush.msra.mxu0 0.0
    %2434 = vmatpush.msra.mxu0 0.0
    %2435 = vmatpush.msra.mxu0 0.0
    %2436 = vmatpush.msra.mxu0 0.0
    %2437 = vmatpush.msra.mxu0 0.0
    %2438 = vmatpush.msra.mxu0 %v1920
    %2439 = vmatpush.msra.mxu0 %v1808
    %2440 = vmatmul.f32.gmra.mxu0 %v2419
    %v2441 = vpop.f32.mrf.mxu0
    %v2442 = vadd.f32 0.0, %v2441
    %2443 = vmatmul.f32.gmra.mxu0 %v2422
    %v2444 = vpop.f32.mrf.mxu0
    %v2445 = vadd.f32 0.0, %v2444
    %2446 = vdwg.mxu0
    %v2448 = vsel %vm390, %v1042, 0
    %v2451 = vsel %vm390, %v1154, 0
    %2453 = vmatpush.msra.mxu0 0.0
    %2454 = vmatpush.msra.mxu0 0.0
    %2455 = vmatpush.msra.mxu0 0.0
    %2456 = vmatpush.msra.mxu0 0.0
    %2457 = vmatpush.msra.mxu0 0.0
    %2458 = vmatpush.msra.mxu0 0.0
    %2459 = vmatpush.msra.mxu0 0.0
    %2460 = vmatpush.msra.mxu0 0.0
    %2461 = vmatpush.msra.mxu0 0.0
    %2462 = vmatpush.msra.mxu0 0.0
    %2463 = vmatpush.msra.mxu0 0.0
    %2464 = vmatpush.msra.mxu0 0.0
    %2465 = vmatpush.msra.mxu0 0.0
    %2466 = vmatpush.msra.mxu0 0.0
    %2467 = vmatpush.msra.mxu0 %v1922
    %2468 = vmatpush.msra.mxu0 %v1810
    %2469 = vmatmul.f32.gmra.mxu0 %v2448
    %v2470 = vpop.f32.mrf.mxu0
    %v2471 = vadd.f32 0.0, %v2470
    %2472 = vmatmul.f32.gmra.mxu0 %v2451
    %v2473 = vpop.f32.mrf.mxu0
    %v2474 = vadd.f32 0.0, %v2473
    %2475 = vdwg.mxu0
    %v2477 = vsel %vm390, %v1044, 0
    %v2480 = vsel %vm390, %v1156, 0
    %2482 = vmatpush.msra.mxu0 0.0
    %2483 = vmatpush.msra.mxu0 0.0
    %2484 = vmatpush.msra.mxu0 0.0
    %2485 = vmatpush.msra.mxu0 0.0
    %2486 = vmatpush.msra.mxu0 0.0
    %2487 = vmatpush.msra.mxu0 0.0
    %2488 = vmatpush.msra.mxu0 0.0
    %2489 = vmatpush.msra.mxu0 0.0
    %2490 = vmatpush.msra.mxu0 0.0
    %2491 = vmatpush.msra.mxu0 0.0
    %2492 = vmatpush.msra.mxu0 0.0
    %2493 = vmatpush.msra.mxu0 0.0
    %2494 = vmatpush.msra.mxu0 0.0
    %2495 = vmatpush.msra.mxu0 0.0
    %2496 = vmatpush.msra.mxu0 %v1924
    %2497 = vmatpush.msra.mxu0 %v1812
    %2498 = vmatmul.f32.gmra.mxu0 %v2477
    %v2499 = vpop.f32.mrf.mxu0
    %v2500 = vadd.f32 0.0, %v2499
    %2501 = vmatmul.f32.gmra.mxu0 %v2480
    %v2502 = vpop.f32.mrf.mxu0
    %v2503 = vadd.f32 0.0, %v2502
    %2504 = vdwg.mxu0
    %v2506 = vsel %vm390, %v1046, 0
    %v2509 = vsel %vm390, %v1158, 0
    %2511 = vmatpush.msra.mxu0 0.0
    %2512 = vmatpush.msra.mxu0 0.0
    %2513 = vmatpush.msra.mxu0 0.0
    %2514 = vmatpush.msra.mxu0 0.0
    %2515 = vmatpush.msra.mxu0 0.0
    %2516 = vmatpush.msra.mxu0 0.0
    %2517 = vmatpush.msra.mxu0 0.0
    %2518 = vmatpush.msra.mxu0 0.0
    %2519 = vmatpush.msra.mxu0 0.0
    %2520 = vmatpush.msra.mxu0 0.0
    %2521 = vmatpush.msra.mxu0 0.0
    %2522 = vmatpush.msra.mxu0 0.0
    %2523 = vmatpush.msra.mxu0 0.0
    %2524 = vmatpush.msra.mxu0 0.0
    %2525 = vmatpush.msra.mxu0 %v1926
    %2526 = vmatpush.msra.mxu0 %v1814
    %2527 = vmatmul.f32.gmra.mxu0 %v2506
    %v2528 = vpop.f32.mrf.mxu0
    %v2529 = vadd.f32 0.0, %v2528
    %2530 = vmatmul.f32.gmra.mxu0 %v2509
    %v2531 = vpop.f32.mrf.mxu0
    %v2532 = vadd.f32 0.0, %v2531
    %2533 = vdwg.mxu0
    %v2535 = vsel %vm390, %v1048, 0
    %v2538 = vsel %vm390, %v1160, 0
    %2540 = vmatpush.msra.mxu0 0.0
    %2541 = vmatpush.msra.mxu0 0.0
    %2542 = vmatpush.msra.mxu0 0.0
    %2543 = vmatpush.msra.mxu0 0.0
    %2544 = vmatpush.msra.mxu0 0.0
    %2545 = vmatpush.msra.mxu0 0.0
    %2546 = vmatpush.msra.mxu0 0.0
    %2547 = vmatpush.msra.mxu0 0.0
    %2548 = vmatpush.msra.mxu0 0.0
    %2549 = vmatpush.msra.mxu0 0.0
    %2550 = vmatpush.msra.mxu0 0.0
    %2551 = vmatpush.msra.mxu0 0.0
    %2552 = vmatpush.msra.mxu0 0.0
    %2553 = vmatpush.msra.mxu0 0.0
    %2554 = vmatpush.msra.mxu0 %v1928
    %2555 = vmatpush.msra.mxu0 %v1816
    %2556 = vmatmul.f32.gmra.mxu0 %v2535
    %v2557 = vpop.f32.mrf.mxu0
    %v2558 = vadd.f32 0.0, %v2557
    %2559 = vmatmul.f32.gmra.mxu0 %v2538
    %v2560 = vpop.f32.mrf.mxu0
    %v2561 = vadd.f32 0.0, %v2560
    %2562 = vdwg.mxu0
    %v2564 = vsel %vm390, %v1050, 0
    %v2567 = vsel %vm390, %v1162, 0
    %2569 = vmatpush.msra.mxu0 0.0
    %2570 = vmatpush.msra.mxu0 0.0
    %2571 = vmatpush.msra.mxu0 0.0
    %2572 = vmatpush.msra.mxu0 0.0
    %2573 = vmatpush.msra.mxu0 0.0
    %2574 = vmatpush.msra.mxu0 0.0
    %2575 = vmatpush.msra.mxu0 0.0
    %2576 = vmatpush.msra.mxu0 0.0
    %2577 = vmatpush.msra.mxu0 0.0
    %2578 = vmatpush.msra.mxu0 0.0
    %2579 = vmatpush.msra.mxu0 0.0
    %2580 = vmatpush.msra.mxu0 0.0
    %2581 = vmatpush.msra.mxu0 0.0
    %2582 = vmatpush.msra.mxu0 0.0
    %2583 = vmatpush.msra.mxu0 %v1930
    %2584 = vmatpush.msra.mxu0 %v1818
    %2585 = vmatmul.f32.gmra.mxu0 %v2564
    %v2586 = vpop.f32.mrf.mxu0
    %v2587 = vadd.f32 0.0, %v2586
    %2588 = vmatmul.f32.gmra.mxu0 %v2567
    %v2589 = vpop.f32.mrf.mxu0
    %v2590 = vadd.f32 0.0, %v2589
    %2591 = vdwg.mxu0
    %v2593 = vsel %vm390, %v1052, 0
    %v2596 = vsel %vm390, %v1164, 0
    %2598 = vmatpush.msra.mxu0 0.0
    %2599 = vmatpush.msra.mxu0 0.0
    %2600 = vmatpush.msra.mxu0 0.0
    %2601 = vmatpush.msra.mxu0 0.0
    %2602 = vmatpush.msra.mxu0 0.0
    %2603 = vmatpush.msra.mxu0 0.0
    %2604 = vmatpush.msra.mxu0 0.0
    %2605 = vmatpush.msra.mxu0 0.0
    %2606 = vmatpush.msra.mxu0 0.0
    %2607 = vmatpush.msra.mxu0 0.0
    %2608 = vmatpush.msra.mxu0 0.0
    %2609 = vmatpush.msra.mxu0 0.0
    %2610 = vmatpush.msra.mxu0 0.0
    %2611 = vmatpush.msra.mxu0 0.0
    %2612 = vmatpush.msra.mxu0 %v1932
    %2613 = vmatpush.msra.mxu0 %v1820
    %2614 = vmatmul.f32.gmra.mxu0 %v2593
    %v2615 = vpop.f32.mrf.mxu0
    %v2616 = vadd.f32 0.0, %v2615
    %2617 = vmatmul.f32.gmra.mxu0 %v2596
    %v2618 = vpop.f32.mrf.mxu0
    %v2619 = vadd.f32 0.0, %v2618
    %2620 = vdwg.mxu0
    %v2622 = vsel %vm390, %v1262, 0
    %v2625 = vsel %vm390, %v1374, 0
    %2627 = vmatpush.msra.mxu0 0.0
    %2628 = vmatpush.msra.mxu0 0.0
    %2629 = vmatpush.msra.mxu0 0.0
    %2630 = vmatpush.msra.mxu0 0.0
    %2631 = vmatpush.msra.mxu0 0.0
    %2632 = vmatpush.msra.mxu0 0.0
    %2633 = vmatpush.msra.mxu0 0.0
    %2634 = vmatpush.msra.mxu0 0.0
    %2635 = vmatpush.msra.mxu0 0.0
    %2636 = vmatpush.msra.mxu0 0.0
    %2637 = vmatpush.msra.mxu0 0.0
    %2638 = vmatpush.msra.mxu0 0.0
    %2639 = vmatpush.msra.mxu0 0.0
    %2640 = vmatpush.msra.mxu0 0.0
    %2641 = vmatpush.msra.mxu0 %v2142
    %2642 = vmatpush.msra.mxu0 %v2030
    %2643 = vmatmul.f32.gmra.mxu0 %v2622
    %v2644 = vpop.f32.mrf.mxu0
    %v2645 = vadd.f32 0.0, %v2644
    %2646 = vmatmul.f32.gmra.mxu0 %v2625
    %v2647 = vpop.f32.mrf.mxu0
    %v2648 = vadd.f32 0.0, %v2647
    %2649 = vdwg.mxu0
    %v2651 = vsel %vm390, %v1264, 0
    %v2654 = vsel %vm390, %v1376, 0
    %2656 = vmatpush.msra.mxu0 0.0
    %2657 = vmatpush.msra.mxu0 0.0
    %2658 = vmatpush.msra.mxu0 0.0
    %2659 = vmatpush.msra.mxu0 0.0
    %2660 = vmatpush.msra.mxu0 0.0
    %2661 = vmatpush.msra.mxu0 0.0
    %2662 = vmatpush.msra.mxu0 0.0
    %2663 = vmatpush.msra.mxu0 0.0
    %2664 = vmatpush.msra.mxu0 0.0
    %2665 = vmatpush.msra.mxu0 0.0
    %2666 = vmatpush.msra.mxu0 0.0
    %2667 = vmatpush.msra.mxu0 0.0
    %2668 = vmatpush.msra.mxu0 0.0
    %2669 = vmatpush.msra.mxu0 0.0
    %2670 = vmatpush.msra.mxu0 %v2144
    %2671 = vmatpush.msra.mxu0 %v2032
    %2672 = vmatmul.f32.gmra.mxu0 %v2651
    %v2673 = vpop.f32.mrf.mxu0
    %v2674 = vadd.f32 0.0, %v2673
    %2675 = vmatmul.f32.gmra.mxu0 %v2654
    %v2676 = vpop.f32.mrf.mxu0
    %v2677 = vadd.f32 0.0, %v2676
    %2678 = vdwg.mxu0
    %v2680 = vsel %vm390, %v1266, 0
    %v2683 = vsel %vm390, %v1378, 0
    %2685 = vmatpush.msra.mxu0 0.0
    %2686 = vmatpush.msra.mxu0 0.0
    %2687 = vmatpush.msra.mxu0 0.0
    %2688 = vmatpush.msra.mxu0 0.0
    %2689 = vmatpush.msra.mxu0 0.0
    %2690 = vmatpush.msra.mxu0 0.0
    %2691 = vmatpush.msra.mxu0 0.0
    %2692 = vmatpush.msra.mxu0 0.0
    %2693 = vmatpush.msra.mxu0 0.0
    %2694 = vmatpush.msra.mxu0 0.0
    %2695 = vmatpush.msra.mxu0 0.0
    %2696 = vmatpush.msra.mxu0 0.0
    %2697 = vmatpush.msra.mxu0 0.0
    %2698 = vmatpush.msra.mxu0 0.0
    %2699 = vmatpush.msra.mxu0 %v2146
    %2700 = vmatpush.msra.mxu0 %v2034
    %2701 = vmatmul.f32.gmra.mxu0 %v2680
    %v2702 = vpop.f32.mrf.mxu0
    %v2703 = vadd.f32 0.0, %v2702
    %2704 = vmatmul.f32.gmra.mxu0 %v2683
    %v2705 = vpop.f32.mrf.mxu0
    %v2706 = vadd.f32 0.0, %v2705
    %2707 = vdwg.mxu0
    %v2709 = vsel %vm390, %v1268, 0
    %v2712 = vsel %vm390, %v1380, 0
    %2714 = vmatpush.msra.mxu0 0.0
    %2715 = vmatpush.msra.mxu0 0.0
    %2716 = vmatpush.msra.mxu0 0.0
    %2717 = vmatpush.msra.mxu0 0.0
    %2718 = vmatpush.msra.mxu0 0.0
    %2719 = vmatpush.msra.mxu0 0.0
    %2720 = vmatpush.msra.mxu0 0.0
    %2721 = vmatpush.msra.mxu0 0.0
    %2722 = vmatpush.msra.mxu0 0.0
    %2723 = vmatpush.msra.mxu0 0.0
    %2724 = vmatpush.msra.mxu0 0.0
    %2725 = vmatpush.msra.mxu0 0.0
    %2726 = vmatpush.msra.mxu0 0.0
    %2727 = vmatpush.msra.mxu0 0.0
    %2728 = vmatpush.msra.mxu0 %v2148
    %2729 = vmatpush.msra.mxu0 %v2036
    %2730 = vmatmul.f32.gmra.mxu0 %v2709
    %v2731 = vpop.f32.mrf.mxu0
    %v2732 = vadd.f32 0.0, %v2731
    %2733 = vmatmul.f32.gmra.mxu0 %v2712
    %v2734 = vpop.f32.mrf.mxu0
    %v2735 = vadd.f32 0.0, %v2734
    %2736 = vdwg.mxu0
    %v2738 = vsel %vm390, %v1270, 0
    %v2741 = vsel %vm390, %v1382, 0
    %2743 = vmatpush.msra.mxu0 0.0
    %2744 = vmatpush.msra.mxu0 0.0
    %2745 = vmatpush.msra.mxu0 0.0
    %2746 = vmatpush.msra.mxu0 0.0
    %2747 = vmatpush.msra.mxu0 0.0
    %2748 = vmatpush.msra.mxu0 0.0
    %2749 = vmatpush.msra.mxu0 0.0
    %2750 = vmatpush.msra.mxu0 0.0
    %2751 = vmatpush.msra.mxu0 0.0
    %2752 = vmatpush.msra.mxu0 0.0
    %2753 = vmatpush.msra.mxu0 0.0
    %2754 = vmatpush.msra.mxu0 0.0
    %2755 = vmatpush.msra.mxu0 0.0
    %2756 = vmatpush.msra.mxu0 0.0
    %2757 = vmatpush.msra.mxu0 %v2150
    %2758 = vmatpush.msra.mxu0 %v2038
    %2759 = vmatmul.f32.gmra.mxu0 %v2738
    %v2760 = vpop.f32.mrf.mxu0
    %v2761 = vadd.f32 0.0, %v2760
    %2762 = vmatmul.f32.gmra.mxu0 %v2741
    %v2763 = vpop.f32.mrf.mxu0
    %v2764 = vadd.f32 0.0, %v2763
    %2765 = vdwg.mxu0
    %v2767 = vsel %vm390, %v1272, 0
    %v2770 = vsel %vm390, %v1384, 0
    %2772 = vmatpush.msra.mxu0 0.0
    %2773 = vmatpush.msra.mxu0 0.0
    %2774 = vmatpush.msra.mxu0 0.0
    %2775 = vmatpush.msra.mxu0 0.0
    %2776 = vmatpush.msra.mxu0 0.0
    %2777 = vmatpush.msra.mxu0 0.0
    %2778 = vmatpush.msra.mxu0 0.0
    %2779 = vmatpush.msra.mxu0 0.0
    %2780 = vmatpush.msra.mxu0 0.0
    %2781 = vmatpush.msra.mxu0 0.0
    %2782 = vmatpush.msra.mxu0 0.0
    %2783 = vmatpush.msra.mxu0 0.0
    %2784 = vmatpush.msra.mxu0 0.0
    %2785 = vmatpush.msra.mxu0 0.0
    %2786 = vmatpush.msra.mxu0 %v2152
    %2787 = vmatpush.msra.mxu0 %v2040
    %2788 = vmatmul.f32.gmra.mxu0 %v2767
    %v2789 = vpop.f32.mrf.mxu0
    %v2790 = vadd.f32 0.0, %v2789
    %2791 = vmatmul.f32.gmra.mxu0 %v2770
    %v2792 = vpop.f32.mrf.mxu0
    %v2793 = vadd.f32 0.0, %v2792
    %2794 = vdwg.mxu0
    %v2796 = vsel %vm390, %v1274, 0
    %v2799 = vsel %vm390, %v1386, 0
    %2801 = vmatpush.msra.mxu0 0.0
    %2802 = vmatpush.msra.mxu0 0.0
    %2803 = vmatpush.msra.mxu0 0.0
    %2804 = vmatpush.msra.mxu0 0.0
    %2805 = vmatpush.msra.mxu0 0.0
    %2806 = vmatpush.msra.mxu0 0.0
    %2807 = vmatpush.msra.mxu0 0.0
    %2808 = vmatpush.msra.mxu0 0.0
    %2809 = vmatpush.msra.mxu0 0.0
    %2810 = vmatpush.msra.mxu0 0.0
    %2811 = vmatpush.msra.mxu0 0.0
    %2812 = vmatpush.msra.mxu0 0.0
    %2813 = vmatpush.msra.mxu0 0.0
    %2814 = vmatpush.msra.mxu0 0.0
    %2815 = vmatpush.msra.mxu0 %v2154
    %2816 = vmatpush.msra.mxu0 %v2042
    %2817 = vmatmul.f32.gmra.mxu0 %v2796
    %v2818 = vpop.f32.mrf.mxu0
    %v2819 = vadd.f32 0.0, %v2818
    %2820 = vmatmul.f32.gmra.mxu0 %v2799
    %v2821 = vpop.f32.mrf.mxu0
    %v2822 = vadd.f32 0.0, %v2821
    %2823 = vdwg.mxu0
    %v2825 = vsel %vm390, %v1276, 0
    %v2828 = vsel %vm390, %v1388, 0
    %2830 = vmatpush.msra.mxu0 0.0
    %2831 = vmatpush.msra.mxu0 0.0
    %2832 = vmatpush.msra.mxu0 0.0
    %2833 = vmatpush.msra.mxu0 0.0
    %2834 = vmatpush.msra.mxu0 0.0
    %2835 = vmatpush.msra.mxu0 0.0
    %2836 = vmatpush.msra.mxu0 0.0
    %2837 = vmatpush.msra.mxu0 0.0
    %2838 = vmatpush.msra.mxu0 0.0
    %2839 = vmatpush.msra.mxu0 0.0
    %2840 = vmatpush.msra.mxu0 0.0
    %2841 = vmatpush.msra.mxu0 0.0
    %2842 = vmatpush.msra.mxu0 0.0
    %2843 = vmatpush.msra.mxu0 0.0
    %2844 = vmatpush.msra.mxu0 %v2156
    %2845 = vmatpush.msra.mxu0 %v2044
    %2846 = vmatmul.f32.gmra.mxu0 %v2825
    %v2847 = vpop.f32.mrf.mxu0
    %v2848 = vadd.f32 0.0, %v2847
    %2849 = vmatmul.f32.gmra.mxu0 %v2828
    %v2850 = vpop.f32.mrf.mxu0
    %v2851 = vadd.f32 0.0, %v2850
    %2852 = vdwg.mxu0
    %v2853 = vrot.slane %v2239, 4
    %v2854 = vsel %vm717, %v2853, %v2181
    %v2855 = vrot.slane %v2181, 4
    %v2856 = vsel %vm717, %v2239, %v2855
    %v2858 = vunpack.c.l.s4 1983009808
    %v2859 = vunpack.c.0.s8 %v2858
    %v2860 = vperm.slane %v2854, %v2859
    %v2862 = vunpack.c.l.s4 1983009808
    %v2863 = vunpack.c.0.s8 %v2862
    %v2864 = vperm.slane %v2856, %v2863
    %v2865 = vrot.slane %v2268, 4
    %v2866 = vsel %vm717, %v2865, %v2210
    %v2867 = vrot.slane %v2210, 4
    %v2868 = vsel %vm717, %v2268, %v2867
    %v2870 = vunpack.c.l.s4 1983009808
    %v2871 = vunpack.c.0.s8 %v2870
    %v2872 = vperm.slane %v2866, %v2871
    %v2874 = vunpack.c.l.s4 1983009808
    %v2875 = vunpack.c.0.s8 %v2874
    %v2876 = vperm.slane %v2868, %v2875
    %v2877 = vrot.slane %v2355, 4
    %v2878 = vsel %vm717, %v2877, %v2297
    %v2879 = vrot.slane %v2297, 4
    %v2880 = vsel %vm717, %v2355, %v2879
    %v2882 = vunpack.c.l.s4 1983009808
    %v2883 = vunpack.c.0.s8 %v2882
    %v2884 = vperm.slane %v2878, %v2883
    %v2886 = vunpack.c.l.s4 1983009808
    %v2887 = vunpack.c.0.s8 %v2886
    %v2888 = vperm.slane %v2880, %v2887
    %v2889 = vrot.slane %v2384, 4
    %v2890 = vsel %vm717, %v2889, %v2326
    %v2891 = vrot.slane %v2326, 4
    %v2892 = vsel %vm717, %v2384, %v2891
    %v2894 = vunpack.c.l.s4 1983009808
    %v2895 = vunpack.c.0.s8 %v2894
    %v2896 = vperm.slane %v2890, %v2895
    %v2898 = vunpack.c.l.s4 1983009808
    %v2899 = vunpack.c.0.s8 %v2898
    %v2900 = vperm.slane %v2892, %v2899
    %v2901 = vrot.slane %v2872, 4
    %v2902 = vsel %vm717, %v2901, %v2860
    %v2903 = vrot.slane %v2860, 4
    %v2904 = vsel %vm717, %v2872, %v2903
    %v2906 = vunpack.c.l.s4 1934713408
    %v2907 = vunpack.c.0.s8 %v2906
    %v2908 = vperm.slane %v2902, %v2907
    %v2910 = vunpack.c.l.s4 1934713408
    %v2911 = vunpack.c.0.s8 %v2910
    %v2912 = vperm.slane %v2904, %v2911
    %v2913 = vrot.slane %v2876, 4
    %v2914 = vsel %vm717, %v2913, %v2864
    %v2915 = vrot.slane %v2864, 4
    %v2916 = vsel %vm717, %v2876, %v2915
    %v2918 = vunpack.c.l.s4 1934713408
    %v2919 = vunpack.c.0.s8 %v2918
    %v2920 = vperm.slane %v2914, %v2919
    %v2922 = vunpack.c.l.s4 1934713408
    %v2923 = vunpack.c.0.s8 %v2922
    %v2924 = vperm.slane %v2916, %v2923
    %v2925 = vrot.slane %v2896, 4
    %v2926 = vsel %vm717, %v2925, %v2884
    %v2927 = vrot.slane %v2884, 4
    %v2928 = vsel %vm717, %v2896, %v2927
    %v2930 = vunpack.c.l.s4 1934713408
    %v2931 = vunpack.c.0.s8 %v2930
    %v2932 = vperm.slane %v2926, %v2931
    %v2934 = vunpack.c.l.s4 1934713408
    %v2935 = vunpack.c.0.s8 %v2934
    %v2936 = vperm.slane %v2928, %v2935
    %v2937 = vrot.slane %v2900, 4
    %v2938 = vsel %vm717, %v2937, %v2888
    %v2939 = vrot.slane %v2888, 4
    %v2940 = vsel %vm717, %v2900, %v2939
    %v2942 = vunpack.c.l.s4 1934713408
    %v2943 = vunpack.c.0.s8 %v2942
    %v2944 = vperm.slane %v2938, %v2943
    %v2946 = vunpack.c.l.s4 1934713408
    %v2947 = vunpack.c.0.s8 %v2946
    %v2948 = vperm.slane %v2940, %v2947
    %v2949 = vrot.slane %v2932, 4
    %v2950 = vsel %vm717, %v2949, %v2908
    %v2951 = vrot.slane %v2908, 4
    %v2952 = vsel %vm717, %v2932, %v2951
    %v2953 = vrot.slane %v2936, 4
    %v2954 = vsel %vm717, %v2953, %v2912
    %v2955 = vrot.slane %v2912, 4
    %v2956 = vsel %vm717, %v2936, %v2955
    %v2957 = vrot.slane %v2944, 4
    %v2958 = vsel %vm717, %v2957, %v2920
    %v2959 = vrot.slane %v2920, 4
    %v2960 = vsel %vm717, %v2944, %v2959
    %v2961 = vrot.slane %v2948, 4
    %v2962 = vsel %vm717, %v2961, %v2924
    %v2963 = vrot.slane %v2924, 4
    %v2964 = vsel %vm717, %v2948, %v2963
    %v2965 = vrot.slane %v2471, 4
    %v2966 = vsel %vm717, %v2965, %v2413
    %v2967 = vrot.slane %v2413, 4
    %v2968 = vsel %vm717, %v2471, %v2967
    %v2970 = vunpack.c.l.s4 1983009808
    %v2971 = vunpack.c.0.s8 %v2970
    %v2972 = vperm.slane %v2966, %v2971
    %v2974 = vunpack.c.l.s4 1983009808
    %v2975 = vunpack.c.0.s8 %v2974
    %v2976 = vperm.slane %v2968, %v2975
    %v2977 = vrot.slane %v2500, 4
    %v2978 = vsel %vm717, %v2977, %v2442
    %v2979 = vrot.slane %v2442, 4
    %v2980 = vsel %vm717, %v2500, %v2979
    %v2982 = vunpack.c.l.s4 1983009808
    %v2983 = vunpack.c.0.s8 %v2982
    %v2984 = vperm.slane %v2978, %v2983
    %v2986 = vunpack.c.l.s4 1983009808
    %v2987 = vunpack.c.0.s8 %v2986
    %v2988 = vperm.slane %v2980, %v2987
    %v2989 = vrot.slane %v2587, 4
    %v2990 = vsel %vm717, %v2989, %v2529
    %v2991 = vrot.slane %v2529, 4
    %v2992 = vsel %vm717, %v2587, %v2991
    %v2994 = vunpack.c.l.s4 1983009808
    %v2995 = vunpack.c.0.s8 %v2994
    %v2996 = vperm.slane %v2990, %v2995
    %v2998 = vunpack.c.l.s4 1983009808
    %v2999 = vunpack.c.0.s8 %v2998
    %v3000 = vperm.slane %v2992, %v2999
    %v3001 = vrot.slane %v2616, 4
    %v3002 = vsel %vm717, %v3001, %v2558
    %v3003 = vrot.slane %v2558, 4
    %v3004 = vsel %vm717, %v2616, %v3003
    %v3006 = vunpack.c.l.s4 1983009808
    %v3007 = vunpack.c.0.s8 %v3006
    %v3008 = vperm.slane %v3002, %v3007
    %v3010 = vunpack.c.l.s4 1983009808
    %v3011 = vunpack.c.0.s8 %v3010
    %v3012 = vperm.slane %v3004, %v3011
    %v3013 = vrot.slane %v2984, 4
    %v3014 = vsel %vm717, %v3013, %v2972
    %v3015 = vrot.slane %v2972, 4
    %v3016 = vsel %vm717, %v2984, %v3015
    %v3018 = vunpack.c.l.s4 1934713408
    %v3019 = vunpack.c.0.s8 %v3018
    %v3020 = vperm.slane %v3014, %v3019
    %v3022 = vunpack.c.l.s4 1934713408
    %v3023 = vunpack.c.0.s8 %v3022
    %v3024 = vperm.slane %v3016, %v3023
    %v3025 = vrot.slane %v2988, 4
    %v3026 = vsel %vm717, %v3025, %v2976
    %v3027 = vrot.slane %v2976, 4
    %v3028 = vsel %vm717, %v2988, %v3027
    %v3030 = vunpack.c.l.s4 1934713408
    %v3031 = vunpack.c.0.s8 %v3030
    %v3032 = vperm.slane %v3026, %v3031
    %v3034 = vunpack.c.l.s4 1934713408
    %v3035 = vunpack.c.0.s8 %v3034
    %v3036 = vperm.slane %v3028, %v3035
    %v3037 = vrot.slane %v3008, 4
    %v3038 = vsel %vm717, %v3037, %v2996
    %v3039 = vrot.slane %v2996, 4
    %v3040 = vsel %vm717, %v3008, %v3039
    %v3042 = vunpack.c.l.s4 1934713408
    %v3043 = vunpack.c.0.s8 %v3042
    %v3044 = vperm.slane %v3038, %v3043
    %v3046 = vunpack.c.l.s4 1934713408
    %v3047 = vunpack.c.0.s8 %v3046
    %v3048 = vperm.slane %v3040, %v3047
    %v3049 = vrot.slane %v3012, 4
    %v3050 = vsel %vm717, %v3049, %v3000
    %v3051 = vrot.slane %v3000, 4
    %v3052 = vsel %vm717, %v3012, %v3051
    %v3054 = vunpack.c.l.s4 1934713408
    %v3055 = vunpack.c.0.s8 %v3054
    %v3056 = vperm.slane %v3050, %v3055
    %v3058 = vunpack.c.l.s4 1934713408
    %v3059 = vunpack.c.0.s8 %v3058
    %v3060 = vperm.slane %v3052, %v3059
    %v3061 = vrot.slane %v3044, 4
    %v3062 = vsel %vm717, %v3061, %v3020
    %v3063 = vrot.slane %v3020, 4
    %v3064 = vsel %vm717, %v3044, %v3063
    %v3065 = vrot.slane %v3048, 4
    %v3066 = vsel %vm717, %v3065, %v3024
    %v3067 = vrot.slane %v3024, 4
    %v3068 = vsel %vm717, %v3048, %v3067
    %v3069 = vrot.slane %v3056, 4
    %v3070 = vsel %vm717, %v3069, %v3032
    %v3071 = vrot.slane %v3032, 4
    %v3072 = vsel %vm717, %v3056, %v3071
    %v3073 = vrot.slane %v3060, 4
    %v3074 = vsel %vm717, %v3073, %v3036
    %v3075 = vrot.slane %v3036, 4
    %v3076 = vsel %vm717, %v3060, %v3075
    %v3077 = vrot.slane %v2703, 4
    %v3078 = vsel %vm717, %v3077, %v2645
    %v3079 = vrot.slane %v2645, 4
    %v3080 = vsel %vm717, %v2703, %v3079
    %v3082 = vunpack.c.l.s4 1983009808
    %v3083 = vunpack.c.0.s8 %v3082
    %v3084 = vperm.slane %v3078, %v3083
    %v3086 = vunpack.c.l.s4 1983009808
    %v3087 = vunpack.c.0.s8 %v3086
    %v3088 = vperm.slane %v3080, %v3087
    %v3089 = vrot.slane %v2732, 4
    %v3090 = vsel %vm717, %v3089, %v2674
    %v3091 = vrot.slane %v2674, 4
    %v3092 = vsel %vm717, %v2732, %v3091
    %v3094 = vunpack.c.l.s4 1983009808
    %v3095 = vunpack.c.0.s8 %v3094
    %v3096 = vperm.slane %v3090, %v3095
    %v3098 = vunpack.c.l.s4 1983009808
    %v3099 = vunpack.c.0.s8 %v3098
    %v3100 = vperm.slane %v3092, %v3099
    %v3101 = vrot.slane %v2819, 4
    %v3102 = vsel %vm717, %v3101, %v2761
    %v3103 = vrot.slane %v2761, 4
    %v3104 = vsel %vm717, %v2819, %v3103
    %v3106 = vunpack.c.l.s4 1983009808
    %v3107 = vunpack.c.0.s8 %v3106
    %v3108 = vperm.slane %v3102, %v3107
    %v3110 = vunpack.c.l.s4 1983009808
    %v3111 = vunpack.c.0.s8 %v3110
    %v3112 = vperm.slane %v3104, %v3111
    %v3113 = vrot.slane %v2848, 4
    %v3114 = vsel %vm717, %v3113, %v2790
    %v3115 = vrot.slane %v2790, 4
    %v3116 = vsel %vm717, %v2848, %v3115
    %v3118 = vunpack.c.l.s4 1983009808
    %v3119 = vunpack.c.0.s8 %v3118
    %v3120 = vperm.slane %v3114, %v3119
    %v3122 = vunpack.c.l.s4 1983009808
    %v3123 = vunpack.c.0.s8 %v3122
    %v3124 = vperm.slane %v3116, %v3123
    %v3125 = vrot.slane %v3096, 4
    %v3126 = vsel %vm717, %v3125, %v3084
    %v3127 = vrot.slane %v3084, 4
    %v3128 = vsel %vm717, %v3096, %v3127
    %v3130 = vunpack.c.l.s4 1934713408
    %v3131 = vunpack.c.0.s8 %v3130
    %v3132 = vperm.slane %v3126, %v3131
    %v3134 = vunpack.c.l.s4 1934713408
    %v3135 = vunpack.c.0.s8 %v3134
    %v3136 = vperm.slane %v3128, %v3135
    %v3137 = vrot.slane %v3100, 4
    %v3138 = vsel %vm717, %v3137, %v3088
    %v3139 = vrot.slane %v3088, 4
    %v3140 = vsel %vm717, %v3100, %v3139
    %v3142 = vunpack.c.l.s4 1934713408
    %v3143 = vunpack.c.0.s8 %v3142
    %v3144 = vperm.slane %v3138, %v3143
    %v3146 = vunpack.c.l.s4 1934713408
    %v3147 = vunpack.c.0.s8 %v3146
    %v3148 = vperm.slane %v3140, %v3147
    %v3149 = vrot.slane %v3120, 4
    %v3150 = vsel %vm717, %v3149, %v3108
    %v3151 = vrot.slane %v3108, 4
    %v3152 = vsel %vm717, %v3120, %v3151
    %v3154 = vunpack.c.l.s4 1934713408
    %v3155 = vunpack.c.0.s8 %v3154
    %v3156 = vperm.slane %v3150, %v3155
    %v3158 = vunpack.c.l.s4 1934713408
    %v3159 = vunpack.c.0.s8 %v3158
    %v3160 = vperm.slane %v3152, %v3159
    %v3161 = vrot.slane %v3124, 4
    %v3162 = vsel %vm717, %v3161, %v3112
    %v3163 = vrot.slane %v3112, 4
    %v3164 = vsel %vm717, %v3124, %v3163
    %v3166 = vunpack.c.l.s4 1934713408
    %v3167 = vunpack.c.0.s8 %v3166
    %v3168 = vperm.slane %v3162, %v3167
    %v3170 = vunpack.c.l.s4 1934713408
    %v3171 = vunpack.c.0.s8 %v3170
    %v3172 = vperm.slane %v3164, %v3171
    %v3173 = vrot.slane %v3156, 4
    %v3174 = vsel %vm717, %v3173, %v3132
    %v3175 = vrot.slane %v3132, 4
    %v3176 = vsel %vm717, %v3156, %v3175
    %v3177 = vrot.slane %v3160, 4
    %v3178 = vsel %vm717, %v3177, %v3136
    %v3179 = vrot.slane %v3136, 4
    %v3180 = vsel %vm717, %v3160, %v3179
    %v3181 = vrot.slane %v3168, 4
    %v3182 = vsel %vm717, %v3181, %v3144
    %v3183 = vrot.slane %v3144, 4
    %v3184 = vsel %vm717, %v3168, %v3183
    %v3185 = vrot.slane %v3172, 4
    %v3186 = vsel %vm717, %v3185, %v3148
    %v3187 = vrot.slane %v3148, 4
    %v3188 = vsel %vm717, %v3172, %v3187
    %v3189 = vrot.slane %v2242, 4
    %v3190 = vsel %vm717, %v3189, %v2184
    %v3191 = vrot.slane %v2184, 4
    %v3192 = vsel %vm717, %v2242, %v3191
    %v3194 = vunpack.c.l.s4 1983009808
    %v3195 = vunpack.c.0.s8 %v3194
    %v3196 = vperm.slane %v3190, %v3195
    %v3198 = vunpack.c.l.s4 1983009808
    %v3199 = vunpack.c.0.s8 %v3198
    %v3200 = vperm.slane %v3192, %v3199
    %v3201 = vrot.slane %v2271, 4
    %v3202 = vsel %vm717, %v3201, %v2213
    %v3203 = vrot.slane %v2213, 4
    %v3204 = vsel %vm717, %v2271, %v3203
    %v3206 = vunpack.c.l.s4 1983009808
    %v3207 = vunpack.c.0.s8 %v3206
    %v3208 = vperm.slane %v3202, %v3207
    %v3210 = vunpack.c.l.s4 1983009808
    %v3211 = vunpack.c.0.s8 %v3210
    %v3212 = vperm.slane %v3204, %v3211
    %v3213 = vrot.slane %v2358, 4
    %v3214 = vsel %vm717, %v3213, %v2300
    %v3215 = vrot.slane %v2300, 4
    %v3216 = vsel %vm717, %v2358, %v3215
    %v3218 = vunpack.c.l.s4 1983009808
    %v3219 = vunpack.c.0.s8 %v3218
    %v3220 = vperm.slane %v3214, %v3219
    %v3222 = vunpack.c.l.s4 1983009808
    %v3223 = vunpack.c.0.s8 %v3222
    %v3224 = vperm.slane %v3216, %v3223
    %v3225 = vrot.slane %v2387, 4
    %v3226 = vsel %vm717, %v3225, %v2329
    %v3227 = vrot.slane %v2329, 4
    %v3228 = vsel %vm717, %v2387, %v3227
    %v3230 = vunpack.c.l.s4 1983009808
    %v3231 = vunpack.c.0.s8 %v3230
    %v3232 = vperm.slane %v3226, %v3231
    %v3234 = vunpack.c.l.s4 1983009808
    %v3235 = vunpack.c.0.s8 %v3234
    %v3236 = vperm.slane %v3228, %v3235
    %v3237 = vrot.slane %v3208, 4
    %v3238 = vsel %vm717, %v3237, %v3196
    %v3239 = vrot.slane %v3196, 4
    %v3240 = vsel %vm717, %v3208, %v3239
    %v3242 = vunpack.c.l.s4 1934713408
    %v3243 = vunpack.c.0.s8 %v3242
    %v3244 = vperm.slane %v3238, %v3243
    %v3246 = vunpack.c.l.s4 1934713408
    %v3247 = vunpack.c.0.s8 %v3246
    %v3248 = vperm.slane %v3240, %v3247
    %v3249 = vrot.slane %v3212, 4
    %v3250 = vsel %vm717, %v3249, %v3200
    %v3251 = vrot.slane %v3200, 4
    %v3252 = vsel %vm717, %v3212, %v3251
    %v3254 = vunpack.c.l.s4 1934713408
    %v3255 = vunpack.c.0.s8 %v3254
    %v3256 = vperm.slane %v3250, %v3255
    %v3258 = vunpack.c.l.s4 1934713408
    %v3259 = vunpack.c.0.s8 %v3258
    %v3260 = vperm.slane %v3252, %v3259
    %v3261 = vrot.slane %v3232, 4
    %v3262 = vsel %vm717, %v3261, %v3220
    %v3263 = vrot.slane %v3220, 4
    %v3264 = vsel %vm717, %v3232, %v3263
    %v3266 = vunpack.c.l.s4 1934713408
    %v3267 = vunpack.c.0.s8 %v3266
    %v3268 = vperm.slane %v3262, %v3267
    %v3270 = vunpack.c.l.s4 1934713408
    %v3271 = vunpack.c.0.s8 %v3270
    %v3272 = vperm.slane %v3264, %v3271
    %v3273 = vrot.slane %v3236, 4
    %v3274 = vsel %vm717, %v3273, %v3224
    %v3275 = vrot.slane %v3224, 4
    %v3276 = vsel %vm717, %v3236, %v3275
    %v3278 = vunpack.c.l.s4 1934713408
    %v3279 = vunpack.c.0.s8 %v3278
    %v3280 = vperm.slane %v3274, %v3279
    %v3282 = vunpack.c.l.s4 1934713408
    %v3283 = vunpack.c.0.s8 %v3282
    %v3284 = vperm.slane %v3276, %v3283
    %v3285 = vrot.slane %v3268, 4
    %v3286 = vsel %vm717, %v3285, %v3244
    %v3287 = vrot.slane %v3244, 4
    %v3288 = vsel %vm717, %v3268, %v3287
    %v3289 = vrot.slane %v3272, 4
    %v3290 = vsel %vm717, %v3289, %v3248
    %v3291 = vrot.slane %v3248, 4
    %v3292 = vsel %vm717, %v3272, %v3291
    %v3293 = vrot.slane %v3280, 4
    %v3294 = vsel %vm717, %v3293, %v3256
    %v3295 = vrot.slane %v3256, 4
    %v3296 = vsel %vm717, %v3280, %v3295
    %v3297 = vrot.slane %v3284, 4
    %v3298 = vsel %vm717, %v3297, %v3260
    %v3299 = vrot.slane %v3260, 4
    %v3300 = vsel %vm717, %v3284, %v3299
    %v3301 = vrot.slane %v2474, 4
    %v3302 = vsel %vm717, %v3301, %v2416
    %v3303 = vrot.slane %v2416, 4
    %v3304 = vsel %vm717, %v2474, %v3303
    %v3306 = vunpack.c.l.s4 1983009808
    %v3307 = vunpack.c.0.s8 %v3306
    %v3308 = vperm.slane %v3302, %v3307
    %v3310 = vunpack.c.l.s4 1983009808
    %v3311 = vunpack.c.0.s8 %v3310
    %v3312 = vperm.slane %v3304, %v3311
    %v3313 = vrot.slane %v2503, 4
    %v3314 = vsel %vm717, %v3313, %v2445
    %v3315 = vrot.slane %v2445, 4
    %v3316 = vsel %vm717, %v2503, %v3315
    %v3318 = vunpack.c.l.s4 1983009808
    %v3319 = vunpack.c.0.s8 %v3318
    %v3320 = vperm.slane %v3314, %v3319
    %v3322 = vunpack.c.l.s4 1983009808
    %v3323 = vunpack.c.0.s8 %v3322
    %v3324 = vperm.slane %v3316, %v3323
    %v3325 = vrot.slane %v2590, 4
    %v3326 = vsel %vm717, %v3325, %v2532
    %v3327 = vrot.slane %v2532, 4
    %v3328 = vsel %vm717, %v2590, %v3327
    %v3330 = vunpack.c.l.s4 1983009808
    %v3331 = vunpack.c.0.s8 %v3330
    %v3332 = vperm.slane %v3326, %v3331
    %v3334 = vunpack.c.l.s4 1983009808
    %v3335 = vunpack.c.0.s8 %v3334
    %v3336 = vperm.slane %v3328, %v3335
    %v3337 = vrot.slane %v2619, 4
    %v3338 = vsel %vm717, %v3337, %v2561
    %v3339 = vrot.slane %v2561, 4
    %v3340 = vsel %vm717, %v2619, %v3339
    %v3342 = vunpack.c.l.s4 1983009808
    %v3343 = vunpack.c.0.s8 %v3342
    %v3344 = vperm.slane %v3338, %v3343
    %v3346 = vunpack.c.l.s4 1983009808
    %v3347 = vunpack.c.0.s8 %v3346
    %v3348 = vperm.slane %v3340, %v3347
    %v3349 = vrot.slane %v3320, 4
    %v3350 = vsel %vm717, %v3349, %v3308
    %v3351 = vrot.slane %v3308, 4
    %v3352 = vsel %vm717, %v3320, %v3351
    %v3354 = vunpack.c.l.s4 1934713408
    %v3355 = vunpack.c.0.s8 %v3354
    %v3356 = vperm.slane %v3350, %v3355
    %v3358 = vunpack.c.l.s4 1934713408
    %v3359 = vunpack.c.0.s8 %v3358
    %v3360 = vperm.slane %v3352, %v3359
    %v3361 = vrot.slane %v3324, 4
    %v3362 = vsel %vm717, %v3361, %v3312
    %v3363 = vrot.slane %v3312, 4
    %v3364 = vsel %vm717, %v3324, %v3363
    %v3366 = vunpack.c.l.s4 1934713408
    %v3367 = vunpack.c.0.s8 %v3366
    %v3368 = vperm.slane %v3362, %v3367
    %v3370 = vunpack.c.l.s4 1934713408
    %v3371 = vunpack.c.0.s8 %v3370
    %v3372 = vperm.slane %v3364, %v3371
    %v3373 = vrot.slane %v3344, 4
    %v3374 = vsel %vm717, %v3373, %v3332
    %v3375 = vrot.slane %v3332, 4
    %v3376 = vsel %vm717, %v3344, %v3375
    %v3378 = vunpack.c.l.s4 1934713408
    %v3379 = vunpack.c.0.s8 %v3378
    %v3380 = vperm.slane %v3374, %v3379
    %v3382 = vunpack.c.l.s4 1934713408
    %v3383 = vunpack.c.0.s8 %v3382
    %v3384 = vperm.slane %v3376, %v3383
    %v3385 = vrot.slane %v3348, 4
    %v3386 = vsel %vm717, %v3385, %v3336
    %v3387 = vrot.slane %v3336, 4
    %v3388 = vsel %vm717, %v3348, %v3387
    %v3390 = vunpack.c.l.s4 1934713408
    %v3391 = vunpack.c.0.s8 %v3390
    %v3392 = vperm.slane %v3386, %v3391
    %v3394 = vunpack.c.l.s4 1934713408
    %v3395 = vunpack.c.0.s8 %v3394
    %v3396 = vperm.slane %v3388, %v3395
    %v3397 = vrot.slane %v3380, 4
    %v3398 = vsel %vm717, %v3397, %v3356
    %v3399 = vrot.slane %v3356, 4
    %v3400 = vsel %vm717, %v3380, %v3399
    %v3401 = vrot.slane %v3384, 4
    %v3402 = vsel %vm717, %v3401, %v3360
    %v3403 = vrot.slane %v3360, 4
    %v3404 = vsel %vm717, %v3384, %v3403
    %v3405 = vrot.slane %v3392, 4
    %v3406 = vsel %vm717, %v3405, %v3368
    %v3407 = vrot.slane %v3368, 4
    %v3408 = vsel %vm717, %v3392, %v3407
    %v3409 = vrot.slane %v3396, 4
    %v3410 = vsel %vm717, %v3409, %v3372
    %v3411 = vrot.slane %v3372, 4
    %v3412 = vsel %vm717, %v3396, %v3411
    %v3413 = vrot.slane %v2706, 4
    %v3414 = vsel %vm717, %v3413, %v2648
    %v3415 = vrot.slane %v2648, 4
    %v3416 = vsel %vm717, %v2706, %v3415
    %v3418 = vunpack.c.l.s4 1983009808
    %v3419 = vunpack.c.0.s8 %v3418
    %v3420 = vperm.slane %v3414, %v3419
    %v3422 = vunpack.c.l.s4 1983009808
    %v3423 = vunpack.c.0.s8 %v3422
    %v3424 = vperm.slane %v3416, %v3423
    %v3425 = vrot.slane %v2735, 4
    %v3426 = vsel %vm717, %v3425, %v2677
    %v3427 = vrot.slane %v2677, 4
    %v3428 = vsel %vm717, %v2735, %v3427
    %v3430 = vunpack.c.l.s4 1983009808
    %v3431 = vunpack.c.0.s8 %v3430
    %v3432 = vperm.slane %v3426, %v3431
    %v3434 = vunpack.c.l.s4 1983009808
    %v3435 = vunpack.c.0.s8 %v3434
    %v3436 = vperm.slane %v3428, %v3435
    %v3437 = vrot.slane %v2822, 4
    %v3438 = vsel %vm717, %v3437, %v2764
    %v3439 = vrot.slane %v2764, 4
    %v3440 = vsel %vm717, %v2822, %v3439
    %v3442 = vunpack.c.l.s4 1983009808
    %v3443 = vunpack.c.0.s8 %v3442
    %v3444 = vperm.slane %v3438, %v3443
    %v3446 = vunpack.c.l.s4 1983009808
    %v3447 = vunpack.c.0.s8 %v3446
    %v3448 = vperm.slane %v3440, %v3447
    %v3449 = vrot.slane %v2851, 4
    %v3450 = vsel %vm717, %v3449, %v2793
    %v3451 = vrot.slane %v2793, 4
    %v3452 = vsel %vm717, %v2851, %v3451
    %v3454 = vunpack.c.l.s4 1983009808
    %v3455 = vunpack.c.0.s8 %v3454
    %v3456 = vperm.slane %v3450, %v3455
    %v3458 = vunpack.c.l.s4 1983009808
    %v3459 = vunpack.c.0.s8 %v3458
    %v3460 = vperm.slane %v3452, %v3459
    %v3461 = vrot.slane %v3432, 4
    %v3462 = vsel %vm717, %v3461, %v3420
    %v3463 = vrot.slane %v3420, 4
    %v3464 = vsel %vm717, %v3432, %v3463
    %v3466 = vunpack.c.l.s4 1934713408
    %v3467 = vunpack.c.0.s8 %v3466
    %v3468 = vperm.slane %v3462, %v3467
    %v3470 = vunpack.c.l.s4 1934713408
    %v3471 = vunpack.c.0.s8 %v3470
    %v3472 = vperm.slane %v3464, %v3471
    %v3473 = vrot.slane %v3436, 4
    %v3474 = vsel %vm717, %v3473, %v3424
    %v3475 = vrot.slane %v3424, 4
    %v3476 = vsel %vm717, %v3436, %v3475
    %v3478 = vunpack.c.l.s4 1934713408
    %v3479 = vunpack.c.0.s8 %v3478
    %v3480 = vperm.slane %v3474, %v3479
    %v3482 = vunpack.c.l.s4 1934713408
    %v3483 = vunpack.c.0.s8 %v3482
    %v3484 = vperm.slane %v3476, %v3483
    %v3485 = vrot.slane %v3456, 4
    %v3486 = vsel %vm717, %v3485, %v3444
    %v3487 = vrot.slane %v3444, 4
    %v3488 = vsel %vm717, %v3456, %v3487
    %v3490 = vunpack.c.l.s4 1934713408
    %v3491 = vunpack.c.0.s8 %v3490
    %v3492 = vperm.slane %v3486, %v3491
    %v3494 = vunpack.c.l.s4 1934713408
    %v3495 = vunpack.c.0.s8 %v3494
    %v3496 = vperm.slane %v3488, %v3495
    %v3497 = vrot.slane %v3460, 4
    %v3498 = vsel %vm717, %v3497, %v3448
    %v3499 = vrot.slane %v3448, 4
    %v3500 = vsel %vm717, %v3460, %v3499
    %v3502 = vunpack.c.l.s4 1934713408
    %v3503 = vunpack.c.0.s8 %v3502
    %v3504 = vperm.slane %v3498, %v3503
    %v3506 = vunpack.c.l.s4 1934713408
    %v3507 = vunpack.c.0.s8 %v3506
    %v3508 = vperm.slane %v3500, %v3507
    %v3509 = vrot.slane %v3492, 4
    %v3510 = vsel %vm717, %v3509, %v3468
    %v3511 = vrot.slane %v3468, 4
    %v3512 = vsel %vm717, %v3492, %v3511
    %v3513 = vrot.slane %v3496, 4
    %v3514 = vsel %vm717, %v3513, %v3472
    %v3515 = vrot.slane %v3472, 4
    %v3516 = vsel %vm717, %v3496, %v3515
    %v3517 = vrot.slane %v3504, 4
    %v3518 = vsel %vm717, %v3517, %v3480
    %v3519 = vrot.slane %v3480, 4
    %v3520 = vsel %vm717, %v3504, %v3519
    %v3521 = vrot.slane %v3508, 4
    %v3522 = vsel %vm717, %v3521, %v3484
    %v3523 = vrot.slane %v3484, 4
    %v3524 = vsel %vm717, %v3508, %v3523
    %3528 = vrot.lane.b32.xlu0 %v2952, 16
    %v3529 = vpop.permute.xlu0 %3528
    %3530 = vrot.lane.b32.xlu0 %v3064, 16
    %v3531 = vpop.permute.xlu0 %3530
    %3532 = vrot.lane.b32.xlu0 %v3176, 16
    %v3533 = vpop.permute.xlu0 %3532
    %3540 = vrot.lane.b32.xlu0 %v2954, 32
    %v3541 = vpop.permute.xlu0 %3540
    %3542 = vrot.lane.b32.xlu0 %v3066, 32
    %v3543 = vpop.permute.xlu0 %3542
    %3544 = vrot.lane.b32.xlu0 %v3178, 32
    %v3545 = vpop.permute.xlu0 %3544
    %3552 = vrot.lane.b32.xlu0 %v2956, 48
    %v3553 = vpop.permute.xlu0 %3552
    %3554 = vrot.lane.b32.xlu0 %v3068, 48
    %v3555 = vpop.permute.xlu0 %3554
    %3556 = vrot.lane.b32.xlu0 %v3180, 48
    %v3557 = vpop.permute.xlu0 %3556
    %3564 = vrot.lane.b32.xlu0 %v2958, 64
    %v3565 = vpop.permute.xlu0 %3564
    %3566 = vrot.lane.b32.xlu0 %v3070, 64
    %v3567 = vpop.permute.xlu0 %3566
    %3568 = vrot.lane.b32.xlu0 %v3182, 64
    %v3569 = vpop.permute.xlu0 %3568
    %3576 = vrot.lane.b32.xlu0 %v2960, 80
    %v3577 = vpop.permute.xlu0 %3576
    %3578 = vrot.lane.b32.xlu0 %v3072, 80
    %v3579 = vpop.permute.xlu0 %3578
    %3580 = vrot.lane.b32.xlu0 %v3184, 80
    %v3581 = vpop.permute.xlu0 %3580
    %3588 = vrot.lane.b32.xlu0 %v2962, 96
    %v3589 = vpop.permute.xlu0 %3588
    %3590 = vrot.lane.b32.xlu0 %v3074, 96
    %v3591 = vpop.permute.xlu0 %3590
    %3592 = vrot.lane.b32.xlu0 %v3186, 96
    %v3593 = vpop.permute.xlu0 %3592
    %3600 = vrot.lane.b32.xlu0 %v2964, 112
    %v3601 = vpop.permute.xlu0 %3600
    %3602 = vrot.lane.b32.xlu0 %v3076, 112
    %v3603 = vpop.permute.xlu0 %3602
    %3604 = vrot.lane.b32.xlu0 %v3188, 112
    %v3605 = vpop.permute.xlu0 %3604
    %3612 = vrot.lane.b32.xlu0 %v3288, 16
    %v3613 = vpop.permute.xlu0 %3612
    %3614 = vrot.lane.b32.xlu0 %v3400, 16
    %v3615 = vpop.permute.xlu0 %3614
    %3616 = vrot.lane.b32.xlu0 %v3512, 16
    %v3617 = vpop.permute.xlu0 %3616
    %3624 = vrot.lane.b32.xlu0 %v3290, 32
    %v3625 = vpop.permute.xlu0 %3624
    %3626 = vrot.lane.b32.xlu0 %v3402, 32
    %v3627 = vpop.permute.xlu0 %3626
    %3628 = vrot.lane.b32.xlu0 %v3514, 32
    %v3629 = vpop.permute.xlu0 %3628
    %3636 = vrot.lane.b32.xlu0 %v3292, 48
    %v3637 = vpop.permute.xlu0 %3636
    %3638 = vrot.lane.b32.xlu0 %v3404, 48
    %v3639 = vpop.permute.xlu0 %3638
    %3640 = vrot.lane.b32.xlu0 %v3516, 48
    %v3641 = vpop.permute.xlu0 %3640
    %3648 = vrot.lane.b32.xlu0 %v3294, 64
    %v3649 = vpop.permute.xlu0 %3648
    %3650 = vrot.lane.b32.xlu0 %v3406, 64
    %v3651 = vpop.permute.xlu0 %3650
    %3652 = vrot.lane.b32.xlu0 %v3518, 64
    %v3653 = vpop.permute.xlu0 %3652
    %3660 = vrot.lane.b32.xlu0 %v3296, 80
    %v3661 = vpop.permute.xlu0 %3660
    %3662 = vrot.lane.b32.xlu0 %v3408, 80
    %v3663 = vpop.permute.xlu0 %3662
    %3664 = vrot.lane.b32.xlu0 %v3520, 80
    %v3665 = vpop.permute.xlu0 %3664
    %3672 = vrot.lane.b32.xlu0 %v3298, 96
    %v3673 = vpop.permute.xlu0 %3672
    %3674 = vrot.lane.b32.xlu0 %v3410, 96
    %v3675 = vpop.permute.xlu0 %3674
    %3676 = vrot.lane.b32.xlu0 %v3522, 96
    %v3677 = vpop.permute.xlu0 %3676
    %3684 = vrot.lane.b32.xlu0 %v3300, 112
    %v3685 = vpop.permute.xlu0 %3684
    %3686 = vrot.lane.b32.xlu0 %v3412, 112
    %v3687 = vpop.permute.xlu0 %3686
    %3688 = vrot.lane.b32.xlu0 %v3524, 112
    %v3689 = vpop.permute.xlu0 %3688
    %v3693 = vsel %vm390, %v2950, %v3529
    %v3694 = vsel %vm390, %v3062, %v3531
    %v3695 = vsel %vm390, %v3174, %v3533
    %vm3696 = vcmask 261120
    %v3697 = vsel %vm3696, %v3693, %v3541
    %v3698 = vsel %vm3696, %v3694, %v3543
    %v3699 = vsel %vm3696, %v3695, %v3545
    %vm3700 = vcmask 392192
    %v3701 = vsel %vm3700, %v3697, %v3553
    %v3702 = vsel %vm3700, %v3698, %v3555
    %v3703 = vsel %vm3700, %v3699, %v3557
    %vm3704 = vcmask 523264
    %v3705 = vsel %vm3704, %v3701, %v3565
    %v3706 = vsel %vm3704, %v3702, %v3567
    %v3707 = vsel %vm3704, %v3703, %v3569
    %vm3708 = vcmask 654336
    %v3709 = vsel %vm3708, %v3705, %v3577
    %v3710 = vsel %vm3708, %v3706, %v3579
    %v3711 = vsel %vm3708, %v3707, %v3581
    %vm3712 = vcmask 785408
    %v3713 = vsel %vm3712, %v3709, %v3589
    %v3714 = vsel %vm3712, %v3710, %v3591
    %v3715 = vsel %vm3712, %v3711, %v3593
    %vm3716 = vcmask 916480
    %v3717 = vsel %vm3716, %v3713, %v3601
    %v3718 = vsel %vm3716, %v3714, %v3603
    %v3719 = vsel %vm3716, %v3715, %v3605
    %v3720 = vsel %vm390, %v3286, %v3613
    %v3721 = vsel %vm390, %v3398, %v3615
    %v3722 = vsel %vm390, %v3510, %v3617
    %v3723 = vsel %vm3696, %v3720, %v3625
    %v3724 = vsel %vm3696, %v3721, %v3627
    %v3725 = vsel %vm3696, %v3722, %v3629
    %v3726 = vsel %vm3700, %v3723, %v3637
    %v3727 = vsel %vm3700, %v3724, %v3639
    %v3728 = vsel %vm3700, %v3725, %v3641
    %v3729 = vsel %vm3704, %v3726, %v3649
    %v3730 = vsel %vm3704, %v3727, %v3651
    %v3731 = vsel %vm3704, %v3728, %v3653
    %v3732 = vsel %vm3708, %v3729, %v3661
    %v3733 = vsel %vm3708, %v3730, %v3663
    %v3734 = vsel %vm3708, %v3731, %v3665
    %v3735 = vsel %vm3712, %v3732, %v3673
    %v3736 = vsel %vm3712, %v3733, %v3675
    %v3737 = vsel %vm3712, %v3734, %v3677
    %v3738 = vsel %vm3716, %v3735, %v3685
    %v3739 = vsel %vm3716, %v3736, %v3687
    %v3740 = vsel %vm3716, %v3737, %v3689
    %3789 = vrot.lane.b32.xlu0 %v2181, 112
    %v3790 = vpop.permute.xlu0 %3789
    %3791 = vrot.lane.b32.xlu0 %v2184, 112
    %v3792 = vpop.permute.xlu0 %3791
    %3793 = vrot.lane.b32.xlu0 %v2210, 112
    %v3794 = vpop.permute.xlu0 %3793
    %3795 = vrot.lane.b32.xlu0 %v2213, 112
    %v3796 = vpop.permute.xlu0 %3795
    %3797 = vrot.lane.b32.xlu0 %v2239, 112
    %v3798 = vpop.permute.xlu0 %3797
    %3799 = vrot.lane.b32.xlu0 %v2242, 112
    %v3800 = vpop.permute.xlu0 %3799
    %3801 = vrot.lane.b32.xlu0 %v2268, 112
    %v3802 = vpop.permute.xlu0 %3801
    %3803 = vrot.lane.b32.xlu0 %v2271, 112
    %v3804 = vpop.permute.xlu0 %3803
    %3805 = vrot.lane.b32.xlu0 %v2297, 112
    %v3806 = vpop.permute.xlu0 %3805
    %3807 = vrot.lane.b32.xlu0 %v2300, 112
    %v3808 = vpop.permute.xlu0 %3807
    %3809 = vrot.lane.b32.xlu0 %v2326, 112
    %v3810 = vpop.permute.xlu0 %3809
    %3811 = vrot.lane.b32.xlu0 %v2329, 112
    %v3812 = vpop.permute.xlu0 %3811
    %3813 = vrot.lane.b32.xlu0 %v2355, 112
    %v3814 = vpop.permute.xlu0 %3813
    %3815 = vrot.lane.b32.xlu0 %v2358, 112
    %v3816 = vpop.permute.xlu0 %3815
    %3817 = vrot.lane.b32.xlu0 %v2384, 112
    %v3818 = vpop.permute.xlu0 %3817
    %3819 = vrot.lane.b32.xlu0 %v2387, 112
    %v3820 = vpop.permute.xlu0 %3819
    %3821 = vrot.lane.b32.xlu0 %v2413, 112
    %v3822 = vpop.permute.xlu0 %3821
    %3823 = vrot.lane.b32.xlu0 %v2416, 112
    %v3824 = vpop.permute.xlu0 %3823
    %3825 = vrot.lane.b32.xlu0 %v2442, 112
    %v3826 = vpop.permute.xlu0 %3825
    %3827 = vrot.lane.b32.xlu0 %v2445, 112
    %v3828 = vpop.permute.xlu0 %3827
    %3829 = vrot.lane.b32.xlu0 %v2471, 112
    %v3830 = vpop.permute.xlu0 %3829
    %3831 = vrot.lane.b32.xlu0 %v2474, 112
    %v3832 = vpop.permute.xlu0 %3831
    %3833 = vrot.lane.b32.xlu0 %v2500, 112
    %v3834 = vpop.permute.xlu0 %3833
    %3835 = vrot.lane.b32.xlu0 %v2503, 112
    %v3836 = vpop.permute.xlu0 %3835
    %3837 = vrot.lane.b32.xlu0 %v2529, 112
    %v3838 = vpop.permute.xlu0 %3837
    %3839 = vrot.lane.b32.xlu0 %v2532, 112
    %v3840 = vpop.permute.xlu0 %3839
    %3841 = vrot.lane.b32.xlu0 %v2558, 112
    %v3842 = vpop.permute.xlu0 %3841
    %3843 = vrot.lane.b32.xlu0 %v2561, 112
    %v3844 = vpop.permute.xlu0 %3843
    %3845 = vrot.lane.b32.xlu0 %v2587, 112
    %v3846 = vpop.permute.xlu0 %3845
    %3847 = vrot.lane.b32.xlu0 %v2590, 112
    %v3848 = vpop.permute.xlu0 %3847
    %3849 = vrot.lane.b32.xlu0 %v2616, 112
    %v3850 = vpop.permute.xlu0 %3849
    %3851 = vrot.lane.b32.xlu0 %v2619, 112
    %v3852 = vpop.permute.xlu0 %3851
    %3853 = vrot.lane.b32.xlu0 %v2645, 112
    %v3854 = vpop.permute.xlu0 %3853
    %3855 = vrot.lane.b32.xlu0 %v2648, 112
    %v3856 = vpop.permute.xlu0 %3855
    %3857 = vrot.lane.b32.xlu0 %v2674, 112
    %v3858 = vpop.permute.xlu0 %3857
    %3859 = vrot.lane.b32.xlu0 %v2677, 112
    %v3860 = vpop.permute.xlu0 %3859
    %3861 = vrot.lane.b32.xlu0 %v2703, 112
    %v3862 = vpop.permute.xlu0 %3861
    %3863 = vrot.lane.b32.xlu0 %v2706, 112
    %v3864 = vpop.permute.xlu0 %3863
    %3865 = vrot.lane.b32.xlu0 %v2732, 112
    %v3866 = vpop.permute.xlu0 %3865
    %3867 = vrot.lane.b32.xlu0 %v2735, 112
    %v3868 = vpop.permute.xlu0 %3867
    %3869 = vrot.lane.b32.xlu0 %v2761, 112
    %v3870 = vpop.permute.xlu0 %3869
    %3871 = vrot.lane.b32.xlu0 %v2764, 112
    %v3872 = vpop.permute.xlu0 %3871
    %3873 = vrot.lane.b32.xlu0 %v2790, 112
    %v3874 = vpop.permute.xlu0 %3873
    %3875 = vrot.lane.b32.xlu0 %v2793, 112
    %v3876 = vpop.permute.xlu0 %3875
    %3877 = vrot.lane.b32.xlu0 %v2819, 112
    %v3878 = vpop.permute.xlu0 %3877
    %3879 = vrot.lane.b32.xlu0 %v2822, 112
    %v3880 = vpop.permute.xlu0 %3879
    %3881 = vrot.lane.b32.xlu0 %v2848, 112
    %v3882 = vpop.permute.xlu0 %3881
    %3883 = vrot.lane.b32.xlu0 %v2851, 112
    %v3884 = vpop.permute.xlu0 %3883
    %v3933 = vrot.slane %v3798, 4
    %v3934 = vsel %vm717, %v3933, %v3790
    %v3935 = vrot.slane %v3790, 4
    %v3936 = vsel %vm717, %v3798, %v3935
    %v3938 = vunpack.c.l.s4 1983009808
    %v3939 = vunpack.c.0.s8 %v3938
    %v3940 = vperm.slane %v3934, %v3939
    %v3942 = vunpack.c.l.s4 1983009808
    %v3943 = vunpack.c.0.s8 %v3942
    %v3944 = vperm.slane %v3936, %v3943
    %v3945 = vrot.slane %v3802, 4
    %v3946 = vsel %vm717, %v3945, %v3794
    %v3947 = vrot.slane %v3794, 4
    %v3948 = vsel %vm717, %v3802, %v3947
    %v3950 = vunpack.c.l.s4 1983009808
    %v3951 = vunpack.c.0.s8 %v3950
    %v3952 = vperm.slane %v3946, %v3951
    %v3954 = vunpack.c.l.s4 1983009808
    %v3955 = vunpack.c.0.s8 %v3954
    %v3956 = vperm.slane %v3948, %v3955
    %v3957 = vrot.slane %v3814, 4
    %v3958 = vsel %vm717, %v3957, %v3806
    %v3959 = vrot.slane %v3806, 4
    %v3960 = vsel %vm717, %v3814, %v3959
    %v3962 = vunpack.c.l.s4 1983009808
    %v3963 = vunpack.c.0.s8 %v3962
    %v3964 = vperm.slane %v3958, %v3963
    %v3966 = vunpack.c.l.s4 1983009808
    %v3967 = vunpack.c.0.s8 %v3966
    %v3968 = vperm.slane %v3960, %v3967
    %v3969 = vrot.slane %v3818, 4
    %v3970 = vsel %vm717, %v3969, %v3810
    %v3971 = vrot.slane %v3810, 4
    %v3972 = vsel %vm717, %v3818, %v3971
    %v3974 = vunpack.c.l.s4 1983009808
    %v3975 = vunpack.c.0.s8 %v3974
    %v3976 = vperm.slane %v3970, %v3975
    %v3978 = vunpack.c.l.s4 1983009808
    %v3979 = vunpack.c.0.s8 %v3978
    %v3980 = vperm.slane %v3972, %v3979
    %v3981 = vrot.slane %v3952, 4
    %v3982 = vsel %vm717, %v3981, %v3940
    %v3983 = vrot.slane %v3940, 4
    %v3984 = vsel %vm717, %v3952, %v3983
    %v3986 = vunpack.c.l.s4 1934713408
    %v3987 = vunpack.c.0.s8 %v3986
    %v3988 = vperm.slane %v3982, %v3987
    %v3990 = vunpack.c.l.s4 1934713408
    %v3991 = vunpack.c.0.s8 %v3990
    %v3992 = vperm.slane %v3984, %v3991
    %v3993 = vrot.slane %v3956, 4
    %v3994 = vsel %vm717, %v3993, %v3944
    %v3995 = vrot.slane %v3944, 4
    %v3996 = vsel %vm717, %v3956, %v3995
    %v3998 = vunpack.c.l.s4 1934713408
    %v3999 = vunpack.c.0.s8 %v3998
    %v4000 = vperm.slane %v3994, %v3999
    %v4002 = vunpack.c.l.s4 1934713408
    %v4003 = vunpack.c.0.s8 %v4002
    %v4004 = vperm.slane %v3996, %v4003
    %v4005 = vrot.slane %v3976, 4
    %v4006 = vsel %vm717, %v4005, %v3964
    %v4007 = vrot.slane %v3964, 4
    %v4008 = vsel %vm717, %v3976, %v4007
    %v4010 = vunpack.c.l.s4 1934713408
    %v4011 = vunpack.c.0.s8 %v4010
    %v4012 = vperm.slane %v4006, %v4011
    %v4014 = vunpack.c.l.s4 1934713408
    %v4015 = vunpack.c.0.s8 %v4014
    %v4016 = vperm.slane %v4008, %v4015
    %v4017 = vrot.slane %v3980, 4
    %v4018 = vsel %vm717, %v4017, %v3968
    %v4019 = vrot.slane %v3968, 4
    %v4020 = vsel %vm717, %v3980, %v4019
    %v4022 = vunpack.c.l.s4 1934713408
    %v4023 = vunpack.c.0.s8 %v4022
    %v4024 = vperm.slane %v4018, %v4023
    %v4026 = vunpack.c.l.s4 1934713408
    %v4027 = vunpack.c.0.s8 %v4026
    %v4028 = vperm.slane %v4020, %v4027
    %v4029 = vrot.slane %v4012, 4
    %v4030 = vsel %vm717, %v4029, %v3988
    %v4031 = vrot.slane %v3988, 4
    %v4032 = vsel %vm717, %v4012, %v4031
    %v4033 = vrot.slane %v4016, 4
    %v4034 = vsel %vm717, %v4033, %v3992
    %v4035 = vrot.slane %v3992, 4
    %v4036 = vsel %vm717, %v4016, %v4035
    %v4037 = vrot.slane %v4024, 4
    %v4038 = vsel %vm717, %v4037, %v4000
    %v4039 = vrot.slane %v4000, 4
    %v4040 = vsel %vm717, %v4024, %v4039
    %v4041 = vrot.slane %v4028, 4
    %v4042 = vsel %vm717, %v4041, %v4004
    %v4043 = vrot.slane %v4004, 4
    %v4044 = vsel %vm717, %v4028, %v4043
    %v4045 = vrot.slane %v3830, 4
    %v4046 = vsel %vm717, %v4045, %v3822
    %v4047 = vrot.slane %v3822, 4
    %v4048 = vsel %vm717, %v3830, %v4047
    %v4050 = vunpack.c.l.s4 1983009808
    %v4051 = vunpack.c.0.s8 %v4050
    %v4052 = vperm.slane %v4046, %v4051
    %v4054 = vunpack.c.l.s4 1983009808
    %v4055 = vunpack.c.0.s8 %v4054
    %v4056 = vperm.slane %v4048, %v4055
    %v4057 = vrot.slane %v3834, 4
    %v4058 = vsel %vm717, %v4057, %v3826
    %v4059 = vrot.slane %v3826, 4
    %v4060 = vsel %vm717, %v3834, %v4059
    %v4062 = vunpack.c.l.s4 1983009808
    %v4063 = vunpack.c.0.s8 %v4062
    %v4064 = vperm.slane %v4058, %v4063
    %v4066 = vunpack.c.l.s4 1983009808
    %v4067 = vunpack.c.0.s8 %v4066
    %v4068 = vperm.slane %v4060, %v4067
    %v4069 = vrot.slane %v3846, 4
    %v4070 = vsel %vm717, %v4069, %v3838
    %v4071 = vrot.slane %v3838, 4
    %v4072 = vsel %vm717, %v3846, %v4071
    %v4074 = vunpack.c.l.s4 1983009808
    %v4075 = vunpack.c.0.s8 %v4074
    %v4076 = vperm.slane %v4070, %v4075
    %v4078 = vunpack.c.l.s4 1983009808
    %v4079 = vunpack.c.0.s8 %v4078
    %v4080 = vperm.slane %v4072, %v4079
    %v4081 = vrot.slane %v3850, 4
    %v4082 = vsel %vm717, %v4081, %v3842
    %v4083 = vrot.slane %v3842, 4
    %v4084 = vsel %vm717, %v3850, %v4083
    %v4086 = vunpack.c.l.s4 1983009808
    %v4087 = vunpack.c.0.s8 %v4086
    %v4088 = vperm.slane %v4082, %v4087
    %v4090 = vunpack.c.l.s4 1983009808
    %v4091 = vunpack.c.0.s8 %v4090
    %v4092 = vperm.slane %v4084, %v4091
    %v4093 = vrot.slane %v4064, 4
    %v4094 = vsel %vm717, %v4093, %v4052
    %v4095 = vrot.slane %v4052, 4
    %v4096 = vsel %vm717, %v4064, %v4095
    %v4098 = vunpack.c.l.s4 1934713408
    %v4099 = vunpack.c.0.s8 %v4098
    %v4100 = vperm.slane %v4094, %v4099
    %v4102 = vunpack.c.l.s4 1934713408
    %v4103 = vunpack.c.0.s8 %v4102
    %v4104 = vperm.slane %v4096, %v4103
    %v4105 = vrot.slane %v4068, 4
    %v4106 = vsel %vm717, %v4105, %v4056
    %v4107 = vrot.slane %v4056, 4
    %v4108 = vsel %vm717, %v4068, %v4107
    %v4110 = vunpack.c.l.s4 1934713408
    %v4111 = vunpack.c.0.s8 %v4110
    %v4112 = vperm.slane %v4106, %v4111
    %v4114 = vunpack.c.l.s4 1934713408
    %v4115 = vunpack.c.0.s8 %v4114
    %v4116 = vperm.slane %v4108, %v4115
    %v4117 = vrot.slane %v4088, 4
    %v4118 = vsel %vm717, %v4117, %v4076
    %v4119 = vrot.slane %v4076, 4
    %v4120 = vsel %vm717, %v4088, %v4119
    %v4122 = vunpack.c.l.s4 1934713408
    %v4123 = vunpack.c.0.s8 %v4122
    %v4124 = vperm.slane %v4118, %v4123
    %v4126 = vunpack.c.l.s4 1934713408
    %v4127 = vunpack.c.0.s8 %v4126
    %v4128 = vperm.slane %v4120, %v4127
    %v4129 = vrot.slane %v4092, 4
    %v4130 = vsel %vm717, %v4129, %v4080
    %v4131 = vrot.slane %v4080, 4
    %v4132 = vsel %vm717, %v4092, %v4131
    %v4134 = vunpack.c.l.s4 1934713408
    %v4135 = vunpack.c.0.s8 %v4134
    %v4136 = vperm.slane %v4130, %v4135
    %v4138 = vunpack.c.l.s4 1934713408
    %v4139 = vunpack.c.0.s8 %v4138
    %v4140 = vperm.slane %v4132, %v4139
    %v4141 = vrot.slane %v4124, 4
    %v4142 = vsel %vm717, %v4141, %v4100
    %v4143 = vrot.slane %v4100, 4
    %v4144 = vsel %vm717, %v4124, %v4143
    %v4145 = vrot.slane %v4128, 4
    %v4146 = vsel %vm717, %v4145, %v4104
    %v4147 = vrot.slane %v4104, 4
    %v4148 = vsel %vm717, %v4128, %v4147
    %v4149 = vrot.slane %v4136, 4
    %v4150 = vsel %vm717, %v4149, %v4112
    %v4151 = vrot.slane %v4112, 4
    %v4152 = vsel %vm717, %v4136, %v4151
    %v4153 = vrot.slane %v4140, 4
    %v4154 = vsel %vm717, %v4153, %v4116
    %v4155 = vrot.slane %v4116, 4
    %v4156 = vsel %vm717, %v4140, %v4155
    %v4157 = vrot.slane %v3862, 4
    %v4158 = vsel %vm717, %v4157, %v3854
    %v4159 = vrot.slane %v3854, 4
    %v4160 = vsel %vm717, %v3862, %v4159
    %v4162 = vunpack.c.l.s4 1983009808
    %v4163 = vunpack.c.0.s8 %v4162
    %v4164 = vperm.slane %v4158, %v4163
    %v4166 = vunpack.c.l.s4 1983009808
    %v4167 = vunpack.c.0.s8 %v4166
    %v4168 = vperm.slane %v4160, %v4167
    %v4169 = vrot.slane %v3866, 4
    %v4170 = vsel %vm717, %v4169, %v3858
    %v4171 = vrot.slane %v3858, 4
    %v4172 = vsel %vm717, %v3866, %v4171
    %v4174 = vunpack.c.l.s4 1983009808
    %v4175 = vunpack.c.0.s8 %v4174
    %v4176 = vperm.slane %v4170, %v4175
    %v4178 = vunpack.c.l.s4 1983009808
    %v4179 = vunpack.c.0.s8 %v4178
    %v4180 = vperm.slane %v4172, %v4179
    %v4181 = vrot.slane %v3878, 4
    %v4182 = vsel %vm717, %v4181, %v3870
    %v4183 = vrot.slane %v3870, 4
    %v4184 = vsel %vm717, %v3878, %v4183
    %v4186 = vunpack.c.l.s4 1983009808
    %v4187 = vunpack.c.0.s8 %v4186
    %v4188 = vperm.slane %v4182, %v4187
    %v4190 = vunpack.c.l.s4 1983009808
    %v4191 = vunpack.c.0.s8 %v4190
    %v4192 = vperm.slane %v4184, %v4191
    %v4193 = vrot.slane %v3882, 4
    %v4194 = vsel %vm717, %v4193, %v3874
    %v4195 = vrot.slane %v3874, 4
    %v4196 = vsel %vm717, %v3882, %v4195
    %v4198 = vunpack.c.l.s4 1983009808
    %v4199 = vunpack.c.0.s8 %v4198
    %v4200 = vperm.slane %v4194, %v4199
    %v4202 = vunpack.c.l.s4 1983009808
    %v4203 = vunpack.c.0.s8 %v4202
    %v4204 = vperm.slane %v4196, %v4203
    %v4205 = vrot.slane %v4176, 4
    %v4206 = vsel %vm717, %v4205, %v4164
    %v4207 = vrot.slane %v4164, 4
    %v4208 = vsel %vm717, %v4176, %v4207
    %v4210 = vunpack.c.l.s4 1934713408
    %v4211 = vunpack.c.0.s8 %v4210
    %v4212 = vperm.slane %v4206, %v4211
    %v4214 = vunpack.c.l.s4 1934713408
    %v4215 = vunpack.c.0.s8 %v4214
    %v4216 = vperm.slane %v4208, %v4215
    %v4217 = vrot.slane %v4180, 4
    %v4218 = vsel %vm717, %v4217, %v4168
    %v4219 = vrot.slane %v4168, 4
    %v4220 = vsel %vm717, %v4180, %v4219
    %v4222 = vunpack.c.l.s4 1934713408
    %v4223 = vunpack.c.0.s8 %v4222
    %v4224 = vperm.slane %v4218, %v4223
    %v4226 = vunpack.c.l.s4 1934713408
    %v4227 = vunpack.c.0.s8 %v4226
    %v4228 = vperm.slane %v4220, %v4227
    %v4229 = vrot.slane %v4200, 4
    %v4230 = vsel %vm717, %v4229, %v4188
    %v4231 = vrot.slane %v4188, 4
    %v4232 = vsel %vm717, %v4200, %v4231
    %v4234 = vunpack.c.l.s4 1934713408
    %v4235 = vunpack.c.0.s8 %v4234
    %v4236 = vperm.slane %v4230, %v4235
    %v4238 = vunpack.c.l.s4 1934713408
    %v4239 = vunpack.c.0.s8 %v4238
    %v4240 = vperm.slane %v4232, %v4239
    %v4241 = vrot.slane %v4204, 4
    %v4242 = vsel %vm717, %v4241, %v4192
    %v4243 = vrot.slane %v4192, 4
    %v4244 = vsel %vm717, %v4204, %v4243
    %v4246 = vunpack.c.l.s4 1934713408
    %v4247 = vunpack.c.0.s8 %v4246
    %v4248 = vperm.slane %v4242, %v4247
    %v4250 = vunpack.c.l.s4 1934713408
    %v4251 = vunpack.c.0.s8 %v4250
    %v4252 = vperm.slane %v4244, %v4251
    %v4253 = vrot.slane %v4236, 4
    %v4254 = vsel %vm717, %v4253, %v4212
    %v4255 = vrot.slane %v4212, 4
    %v4256 = vsel %vm717, %v4236, %v4255
    %v4257 = vrot.slane %v4240, 4
    %v4258 = vsel %vm717, %v4257, %v4216
    %v4259 = vrot.slane %v4216, 4
    %v4260 = vsel %vm717, %v4240, %v4259
    %v4261 = vrot.slane %v4248, 4
    %v4262 = vsel %vm717, %v4261, %v4224
    %v4263 = vrot.slane %v4224, 4
    %v4264 = vsel %vm717, %v4248, %v4263
    %v4265 = vrot.slane %v4252, 4
    %v4266 = vsel %vm717, %v4265, %v4228
    %v4267 = vrot.slane %v4228, 4
    %v4268 = vsel %vm717, %v4252, %v4267
    %v4269 = vrot.slane %v3800, 4
    %v4270 = vsel %vm717, %v4269, %v3792
    %v4271 = vrot.slane %v3792, 4
    %v4272 = vsel %vm717, %v3800, %v4271
    %v4274 = vunpack.c.l.s4 1983009808
    %v4275 = vunpack.c.0.s8 %v4274
    %v4276 = vperm.slane %v4270, %v4275
    %v4278 = vunpack.c.l.s4 1983009808
    %v4279 = vunpack.c.0.s8 %v4278
    %v4280 = vperm.slane %v4272, %v4279
    %v4281 = vrot.slane %v3804, 4
    %v4282 = vsel %vm717, %v4281, %v3796
    %v4283 = vrot.slane %v3796, 4
    %v4284 = vsel %vm717, %v3804, %v4283
    %v4286 = vunpack.c.l.s4 1983009808
    %v4287 = vunpack.c.0.s8 %v4286
    %v4288 = vperm.slane %v4282, %v4287
    %v4290 = vunpack.c.l.s4 1983009808
    %v4291 = vunpack.c.0.s8 %v4290
    %v4292 = vperm.slane %v4284, %v4291
    %v4293 = vrot.slane %v3816, 4
    %v4294 = vsel %vm717, %v4293, %v3808
    %v4295 = vrot.slane %v3808, 4
    %v4296 = vsel %vm717, %v3816, %v4295
    %v4298 = vunpack.c.l.s4 1983009808
    %v4299 = vunpack.c.0.s8 %v4298
    %v4300 = vperm.slane %v4294, %v4299
    %v4302 = vunpack.c.l.s4 1983009808
    %v4303 = vunpack.c.0.s8 %v4302
    %v4304 = vperm.slane %v4296, %v4303
    %v4305 = vrot.slane %v3820, 4
    %v4306 = vsel %vm717, %v4305, %v3812
    %v4307 = vrot.slane %v3812, 4
    %v4308 = vsel %vm717, %v3820, %v4307
    %v4310 = vunpack.c.l.s4 1983009808
    %v4311 = vunpack.c.0.s8 %v4310
    %v4312 = vperm.slane %v4306, %v4311
    %v4314 = vunpack.c.l.s4 1983009808
    %v4315 = vunpack.c.0.s8 %v4314
    %v4316 = vperm.slane %v4308, %v4315
    %v4317 = vrot.slane %v4288, 4
    %v4318 = vsel %vm717, %v4317, %v4276
    %v4319 = vrot.slane %v4276, 4
    %v4320 = vsel %vm717, %v4288, %v4319
    %v4322 = vunpack.c.l.s4 1934713408
    %v4323 = vunpack.c.0.s8 %v4322
    %v4324 = vperm.slane %v4318, %v4323
    %v4326 = vunpack.c.l.s4 1934713408
    %v4327 = vunpack.c.0.s8 %v4326
    %v4328 = vperm.slane %v4320, %v4327
    %v4329 = vrot.slane %v4292, 4
    %v4330 = vsel %vm717, %v4329, %v4280
    %v4331 = vrot.slane %v4280, 4
    %v4332 = vsel %vm717, %v4292, %v4331
    %v4334 = vunpack.c.l.s4 1934713408
    %v4335 = vunpack.c.0.s8 %v4334
    %v4336 = vperm.slane %v4330, %v4335
    %v4338 = vunpack.c.l.s4 1934713408
    %v4339 = vunpack.c.0.s8 %v4338
    %v4340 = vperm.slane %v4332, %v4339
    %v4341 = vrot.slane %v4312, 4
    %v4342 = vsel %vm717, %v4341, %v4300
    %v4343 = vrot.slane %v4300, 4
    %v4344 = vsel %vm717, %v4312, %v4343
    %v4346 = vunpack.c.l.s4 1934713408
    %v4347 = vunpack.c.0.s8 %v4346
    %v4348 = vperm.slane %v4342, %v4347
    %v4350 = vunpack.c.l.s4 1934713408
    %v4351 = vunpack.c.0.s8 %v4350
    %v4352 = vperm.slane %v4344, %v4351
    %v4353 = vrot.slane %v4316, 4
    %v4354 = vsel %vm717, %v4353, %v4304
    %v4355 = vrot.slane %v4304, 4
    %v4356 = vsel %vm717, %v4316, %v4355
    %v4358 = vunpack.c.l.s4 1934713408
    %v4359 = vunpack.c.0.s8 %v4358
    %v4360 = vperm.slane %v4354, %v4359
    %v4362 = vunpack.c.l.s4 1934713408
    %v4363 = vunpack.c.0.s8 %v4362
    %v4364 = vperm.slane %v4356, %v4363
    %v4365 = vrot.slane %v4348, 4
    %v4366 = vsel %vm717, %v4365, %v4324
    %v4367 = vrot.slane %v4324, 4
    %v4368 = vsel %vm717, %v4348, %v4367
    %v4369 = vrot.slane %v4352, 4
    %v4370 = vsel %vm717, %v4369, %v4328
    %v4371 = vrot.slane %v4328, 4
    %v4372 = vsel %vm717, %v4352, %v4371
    %v4373 = vrot.slane %v4360, 4
    %v4374 = vsel %vm717, %v4373, %v4336
    %v4375 = vrot.slane %v4336, 4
    %v4376 = vsel %vm717, %v4360, %v4375
    %v4377 = vrot.slane %v4364, 4
    %v4378 = vsel %vm717, %v4377, %v4340
    %v4379 = vrot.slane %v4340, 4
    %v4380 = vsel %vm717, %v4364, %v4379
    %v4381 = vrot.slane %v3832, 4
    %v4382 = vsel %vm717, %v4381, %v3824
    %v4383 = vrot.slane %v3824, 4
    %v4384 = vsel %vm717, %v3832, %v4383
    %v4386 = vunpack.c.l.s4 1983009808
    %v4387 = vunpack.c.0.s8 %v4386
    %v4388 = vperm.slane %v4382, %v4387
    %v4390 = vunpack.c.l.s4 1983009808
    %v4391 = vunpack.c.0.s8 %v4390
    %v4392 = vperm.slane %v4384, %v4391
    %v4393 = vrot.slane %v3836, 4
    %v4394 = vsel %vm717, %v4393, %v3828
    %v4395 = vrot.slane %v3828, 4
    %v4396 = vsel %vm717, %v3836, %v4395
    %v4398 = vunpack.c.l.s4 1983009808
    %v4399 = vunpack.c.0.s8 %v4398
    %v4400 = vperm.slane %v4394, %v4399
    %v4402 = vunpack.c.l.s4 1983009808
    %v4403 = vunpack.c.0.s8 %v4402
    %v4404 = vperm.slane %v4396, %v4403
    %v4405 = vrot.slane %v3848, 4
    %v4406 = vsel %vm717, %v4405, %v3840
    %v4407 = vrot.slane %v3840, 4
    %v4408 = vsel %vm717, %v3848, %v4407
    %v4410 = vunpack.c.l.s4 1983009808
    %v4411 = vunpack.c.0.s8 %v4410
    %v4412 = vperm.slane %v4406, %v4411
    %v4414 = vunpack.c.l.s4 1983009808
    %v4415 = vunpack.c.0.s8 %v4414
    %v4416 = vperm.slane %v4408, %v4415
    %v4417 = vrot.slane %v3852, 4
    %v4418 = vsel %vm717, %v4417, %v3844
    %v4419 = vrot.slane %v3844, 4
    %v4420 = vsel %vm717, %v3852, %v4419
    %v4422 = vunpack.c.l.s4 1983009808
    %v4423 = vunpack.c.0.s8 %v4422
    %v4424 = vperm.slane %v4418, %v4423
    %v4426 = vunpack.c.l.s4 1983009808
    %v4427 = vunpack.c.0.s8 %v4426
    %v4428 = vperm.slane %v4420, %v4427
    %v4429 = vrot.slane %v4400, 4
    %v4430 = vsel %vm717, %v4429, %v4388
    %v4431 = vrot.slane %v4388, 4
    %v4432 = vsel %vm717, %v4400, %v4431
    %v4434 = vunpack.c.l.s4 1934713408
    %v4435 = vunpack.c.0.s8 %v4434
    %v4436 = vperm.slane %v4430, %v4435
    %v4438 = vunpack.c.l.s4 1934713408
    %v4439 = vunpack.c.0.s8 %v4438
    %v4440 = vperm.slane %v4432, %v4439
    %v4441 = vrot.slane %v4404, 4
    %v4442 = vsel %vm717, %v4441, %v4392
    %v4443 = vrot.slane %v4392, 4
    %v4444 = vsel %vm717, %v4404, %v4443
    %v4446 = vunpack.c.l.s4 1934713408
    %v4447 = vunpack.c.0.s8 %v4446
    %v4448 = vperm.slane %v4442, %v4447
    %v4450 = vunpack.c.l.s4 1934713408
    %v4451 = vunpack.c.0.s8 %v4450
    %v4452 = vperm.slane %v4444, %v4451
    %v4453 = vrot.slane %v4424, 4
    %v4454 = vsel %vm717, %v4453, %v4412
    %v4455 = vrot.slane %v4412, 4
    %v4456 = vsel %vm717, %v4424, %v4455
    %v4458 = vunpack.c.l.s4 1934713408
    %v4459 = vunpack.c.0.s8 %v4458
    %v4460 = vperm.slane %v4454, %v4459
    %v4462 = vunpack.c.l.s4 1934713408
    %v4463 = vunpack.c.0.s8 %v4462
    %v4464 = vperm.slane %v4456, %v4463
    %v4465 = vrot.slane %v4428, 4
    %v4466 = vsel %vm717, %v4465, %v4416
    %v4467 = vrot.slane %v4416, 4
    %v4468 = vsel %vm717, %v4428, %v4467
    %v4470 = vunpack.c.l.s4 1934713408
    %v4471 = vunpack.c.0.s8 %v4470
    %v4472 = vperm.slane %v4466, %v4471
    %v4474 = vunpack.c.l.s4 1934713408
    %v4475 = vunpack.c.0.s8 %v4474
    %v4476 = vperm.slane %v4468, %v4475
    %v4477 = vrot.slane %v4460, 4
    %v4478 = vsel %vm717, %v4477, %v4436
    %v4479 = vrot.slane %v4436, 4
    %v4480 = vsel %vm717, %v4460, %v4479
    %v4481 = vrot.slane %v4464, 4
    %v4482 = vsel %vm717, %v4481, %v4440
    %v4483 = vrot.slane %v4440, 4
    %v4484 = vsel %vm717, %v4464, %v4483
    %v4485 = vrot.slane %v4472, 4
    %v4486 = vsel %vm717, %v4485, %v4448
    %v4487 = vrot.slane %v4448, 4
    %v4488 = vsel %vm717, %v4472, %v4487
    %v4489 = vrot.slane %v4476, 4
    %v4490 = vsel %vm717, %v4489, %v4452
    %v4491 = vrot.slane %v4452, 4
    %v4492 = vsel %vm717, %v4476, %v4491
    %v4493 = vrot.slane %v3864, 4
    %v4494 = vsel %vm717, %v4493, %v3856
    %v4495 = vrot.slane %v3856, 4
    %v4496 = vsel %vm717, %v3864, %v4495
    %v4498 = vunpack.c.l.s4 1983009808
    %v4499 = vunpack.c.0.s8 %v4498
    %v4500 = vperm.slane %v4494, %v4499
    %v4502 = vunpack.c.l.s4 1983009808
    %v4503 = vunpack.c.0.s8 %v4502
    %v4504 = vperm.slane %v4496, %v4503
    %v4505 = vrot.slane %v3868, 4
    %v4506 = vsel %vm717, %v4505, %v3860
    %v4507 = vrot.slane %v3860, 4
    %v4508 = vsel %vm717, %v3868, %v4507
    %v4510 = vunpack.c.l.s4 1983009808
    %v4511 = vunpack.c.0.s8 %v4510
    %v4512 = vperm.slane %v4506, %v4511
    %v4514 = vunpack.c.l.s4 1983009808
    %v4515 = vunpack.c.0.s8 %v4514
    %v4516 = vperm.slane %v4508, %v4515
    %v4517 = vrot.slane %v3880, 4
    %v4518 = vsel %vm717, %v4517, %v3872
    %v4519 = vrot.slane %v3872, 4
    %v4520 = vsel %vm717, %v3880, %v4519
    %v4522 = vunpack.c.l.s4 1983009808
    %v4523 = vunpack.c.0.s8 %v4522
    %v4524 = vperm.slane %v4518, %v4523
    %v4526 = vunpack.c.l.s4 1983009808
    %v4527 = vunpack.c.0.s8 %v4526
    %v4528 = vperm.slane %v4520, %v4527
    %v4529 = vrot.slane %v3884, 4
    %v4530 = vsel %vm717, %v4529, %v3876
    %v4531 = vrot.slane %v3876, 4
    %v4532 = vsel %vm717, %v3884, %v4531
    %v4534 = vunpack.c.l.s4 1983009808
    %v4535 = vunpack.c.0.s8 %v4534
    %v4536 = vperm.slane %v4530, %v4535
    %v4538 = vunpack.c.l.s4 1983009808
    %v4539 = vunpack.c.0.s8 %v4538
    %v4540 = vperm.slane %v4532, %v4539
    %v4541 = vrot.slane %v4512, 4
    %v4542 = vsel %vm717, %v4541, %v4500
    %v4543 = vrot.slane %v4500, 4
    %v4544 = vsel %vm717, %v4512, %v4543
    %v4546 = vunpack.c.l.s4 1934713408
    %v4547 = vunpack.c.0.s8 %v4546
    %v4548 = vperm.slane %v4542, %v4547
    %v4550 = vunpack.c.l.s4 1934713408
    %v4551 = vunpack.c.0.s8 %v4550
    %v4552 = vperm.slane %v4544, %v4551
    %v4553 = vrot.slane %v4516, 4
    %v4554 = vsel %vm717, %v4553, %v4504
    %v4555 = vrot.slane %v4504, 4
    %v4556 = vsel %vm717, %v4516, %v4555
    %v4558 = vunpack.c.l.s4 1934713408
    %v4559 = vunpack.c.0.s8 %v4558
    %v4560 = vperm.slane %v4554, %v4559
    %v4562 = vunpack.c.l.s4 1934713408
    %v4563 = vunpack.c.0.s8 %v4562
    %v4564 = vperm.slane %v4556, %v4563
    %v4565 = vrot.slane %v4536, 4
    %v4566 = vsel %vm717, %v4565, %v4524
    %v4567 = vrot.slane %v4524, 4
    %v4568 = vsel %vm717, %v4536, %v4567
    %v4570 = vunpack.c.l.s4 1934713408
    %v4571 = vunpack.c.0.s8 %v4570
    %v4572 = vperm.slane %v4566, %v4571
    %v4574 = vunpack.c.l.s4 1934713408
    %v4575 = vunpack.c.0.s8 %v4574
    %v4576 = vperm.slane %v4568, %v4575
    %v4577 = vrot.slane %v4540, 4
    %v4578 = vsel %vm717, %v4577, %v4528
    %v4579 = vrot.slane %v4528, 4
    %v4580 = vsel %vm717, %v4540, %v4579
    %v4582 = vunpack.c.l.s4 1934713408
    %v4583 = vunpack.c.0.s8 %v4582
    %v4584 = vperm.slane %v4578, %v4583
    %v4586 = vunpack.c.l.s4 1934713408
    %v4587 = vunpack.c.0.s8 %v4586
    %v4588 = vperm.slane %v4580, %v4587
    %v4589 = vrot.slane %v4572, 4
    %v4590 = vsel %vm717, %v4589, %v4548
    %v4591 = vrot.slane %v4548, 4
    %v4592 = vsel %vm717, %v4572, %v4591
    %v4593 = vrot.slane %v4576, 4
    %v4594 = vsel %vm717, %v4593, %v4552
    %v4595 = vrot.slane %v4552, 4
    %v4596 = vsel %vm717, %v4576, %v4595
    %v4597 = vrot.slane %v4584, 4
    %v4598 = vsel %vm717, %v4597, %v4560
    %v4599 = vrot.slane %v4560, 4
    %v4600 = vsel %vm717, %v4584, %v4599
    %v4601 = vrot.slane %v4588, 4
    %v4602 = vsel %vm717, %v4601, %v4564
    %v4603 = vrot.slane %v4564, 4
    %v4604 = vsel %vm717, %v4588, %v4603
    %4608 = vrot.lane.b32.xlu0 %v4032, 16
    %v4609 = vpop.permute.xlu0 %4608
    %4610 = vrot.lane.b32.xlu0 %v4144, 16
    %v4611 = vpop.permute.xlu0 %4610
    %4612 = vrot.lane.b32.xlu0 %v4256, 16
    %v4613 = vpop.permute.xlu0 %4612
    %4620 = vrot.lane.b32.xlu0 %v4034, 32
    %v4621 = vpop.permute.xlu0 %4620
    %4622 = vrot.lane.b32.xlu0 %v4146, 32
    %v4623 = vpop.permute.xlu0 %4622
    %4624 = vrot.lane.b32.xlu0 %v4258, 32
    %v4625 = vpop.permute.xlu0 %4624
    %4632 = vrot.lane.b32.xlu0 %v4036, 48
    %v4633 = vpop.permute.xlu0 %4632
    %4634 = vrot.lane.b32.xlu0 %v4148, 48
    %v4635 = vpop.permute.xlu0 %4634
    %4636 = vrot.lane.b32.xlu0 %v4260, 48
    %v4637 = vpop.permute.xlu0 %4636
    %4644 = vrot.lane.b32.xlu0 %v4038, 64
    %v4645 = vpop.permute.xlu0 %4644
    %4646 = vrot.lane.b32.xlu0 %v4150, 64
    %v4647 = vpop.permute.xlu0 %4646
    %4648 = vrot.lane.b32.xlu0 %v4262, 64
    %v4649 = vpop.permute.xlu0 %4648
    %4656 = vrot.lane.b32.xlu0 %v4040, 80
    %v4657 = vpop.permute.xlu0 %4656
    %4658 = vrot.lane.b32.xlu0 %v4152, 80
    %v4659 = vpop.permute.xlu0 %4658
    %4660 = vrot.lane.b32.xlu0 %v4264, 80
    %v4661 = vpop.permute.xlu0 %4660
    %4668 = vrot.lane.b32.xlu0 %v4042, 96
    %v4669 = vpop.permute.xlu0 %4668
    %4670 = vrot.lane.b32.xlu0 %v4154, 96
    %v4671 = vpop.permute.xlu0 %4670
    %4672 = vrot.lane.b32.xlu0 %v4266, 96
    %v4673 = vpop.permute.xlu0 %4672
    %4680 = vrot.lane.b32.xlu0 %v4044, 112
    %v4681 = vpop.permute.xlu0 %4680
    %4682 = vrot.lane.b32.xlu0 %v4156, 112
    %v4683 = vpop.permute.xlu0 %4682
    %4684 = vrot.lane.b32.xlu0 %v4268, 112
    %v4685 = vpop.permute.xlu0 %4684
    %4692 = vrot.lane.b32.xlu0 %v4368, 16
    %v4693 = vpop.permute.xlu0 %4692
    %4694 = vrot.lane.b32.xlu0 %v4480, 16
    %v4695 = vpop.permute.xlu0 %4694
    %4696 = vrot.lane.b32.xlu0 %v4592, 16
    %v4697 = vpop.permute.xlu0 %4696
    %4704 = vrot.lane.b32.xlu0 %v4370, 32
    %v4705 = vpop.permute.xlu0 %4704
    %4706 = vrot.lane.b32.xlu0 %v4482, 32
    %v4707 = vpop.permute.xlu0 %4706
    %4708 = vrot.lane.b32.xlu0 %v4594, 32
    %v4709 = vpop.permute.xlu0 %4708
    %4716 = vrot.lane.b32.xlu0 %v4372, 48
    %v4717 = vpop.permute.xlu0 %4716
    %4718 = vrot.lane.b32.xlu0 %v4484, 48
    %v4719 = vpop.permute.xlu0 %4718
    %4720 = vrot.lane.b32.xlu0 %v4596, 48
    %v4721 = vpop.permute.xlu0 %4720
    %4728 = vrot.lane.b32.xlu0 %v4374, 64
    %v4729 = vpop.permute.xlu0 %4728
    %4730 = vrot.lane.b32.xlu0 %v4486, 64
    %v4731 = vpop.permute.xlu0 %4730
    %4732 = vrot.lane.b32.xlu0 %v4598, 64
    %v4733 = vpop.permute.xlu0 %4732
    %4740 = vrot.lane.b32.xlu0 %v4376, 80
    %v4741 = vpop.permute.xlu0 %4740
    %4742 = vrot.lane.b32.xlu0 %v4488, 80
    %v4743 = vpop.permute.xlu0 %4742
    %4744 = vrot.lane.b32.xlu0 %v4600, 80
    %v4745 = vpop.permute.xlu0 %4744
    %4752 = vrot.lane.b32.xlu0 %v4378, 96
    %v4753 = vpop.permute.xlu0 %4752
    %4754 = vrot.lane.b32.xlu0 %v4490, 96
    %v4755 = vpop.permute.xlu0 %4754
    %4756 = vrot.lane.b32.xlu0 %v4602, 96
    %v4757 = vpop.permute.xlu0 %4756
    %4764 = vrot.lane.b32.xlu0 %v4380, 112
    %v4765 = vpop.permute.xlu0 %4764
    %4766 = vrot.lane.b32.xlu0 %v4492, 112
    %v4767 = vpop.permute.xlu0 %4766
    %4768 = vrot.lane.b32.xlu0 %v4604, 112
    %v4769 = vpop.permute.xlu0 %4768
    %v4773 = vsel %vm390, %v4030, %v4609
    %v4774 = vsel %vm390, %v4142, %v4611
    %v4775 = vsel %vm390, %v4254, %v4613
    %v4776 = vsel %vm3696, %v4773, %v4621
    %v4777 = vsel %vm3696, %v4774, %v4623
    %v4778 = vsel %vm3696, %v4775, %v4625
    %v4779 = vsel %vm3700, %v4776, %v4633
    %v4780 = vsel %vm3700, %v4777, %v4635
    %v4781 = vsel %vm3700, %v4778, %v4637
    %v4782 = vsel %vm3704, %v4779, %v4645
    %v4783 = vsel %vm3704, %v4780, %v4647
    %v4784 = vsel %vm3704, %v4781, %v4649
    %v4785 = vsel %vm3708, %v4782, %v4657
    %v4786 = vsel %vm3708, %v4783, %v4659
    %v4787 = vsel %vm3708, %v4784, %v4661
    %v4788 = vsel %vm3712, %v4785, %v4669
    %v4789 = vsel %vm3712, %v4786, %v4671
    %v4790 = vsel %vm3712, %v4787, %v4673
    %v4791 = vsel %vm3716, %v4788, %v4681
    %v4792 = vsel %vm3716, %v4789, %v4683
    %v4793 = vsel %vm3716, %v4790, %v4685
    %v4794 = vsel %vm390, %v4366, %v4693
    %v4795 = vsel %vm390, %v4478, %v4695
    %v4796 = vsel %vm390, %v4590, %v4697
    %v4797 = vsel %vm3696, %v4794, %v4705
    %v4798 = vsel %vm3696, %v4795, %v4707
    %v4799 = vsel %vm3696, %v4796, %v4709
    %v4800 = vsel %vm3700, %v4797, %v4717
    %v4801 = vsel %vm3700, %v4798, %v4719
    %v4802 = vsel %vm3700, %v4799, %v4721
    %v4803 = vsel %vm3704, %v4800, %v4729
    %v4804 = vsel %vm3704, %v4801, %v4731
    %v4805 = vsel %vm3704, %v4802, %v4733
    %v4806 = vsel %vm3708, %v4803, %v4741
    %v4807 = vsel %vm3708, %v4804, %v4743
    %v4808 = vsel %vm3708, %v4805, %v4745
    %v4809 = vsel %vm3712, %v4806, %v4753
    %v4810 = vsel %vm3712, %v4807, %v4755
    %v4811 = vsel %vm3712, %v4808, %v4757
    %v4812 = vsel %vm3716, %v4809, %v4765
    %v4813 = vsel %vm3716, %v4810, %v4767
    %v4814 = vsel %vm3716, %v4811, %v4769
    %4815 = vrot.lane.b32.xlu0 %v2181, 96
    %v4816 = vpop.permute.xlu0 %4815
    %4817 = vrot.lane.b32.xlu0 %v2184, 96
    %v4818 = vpop.permute.xlu0 %4817
    %4819 = vrot.lane.b32.xlu0 %v2210, 96
    %v4820 = vpop.permute.xlu0 %4819
    %4821 = vrot.lane.b32.xlu0 %v2213, 96
    %v4822 = vpop.permute.xlu0 %4821
    %4823 = vrot.lane.b32.xlu0 %v2239, 96
    %v4824 = vpop.permute.xlu0 %4823
    %4825 = vrot.lane.b32.xlu0 %v2242, 96
    %v4826 = vpop.permute.xlu0 %4825
    %4827 = vrot.lane.b32.xlu0 %v2268, 96
    %v4828 = vpop.permute.xlu0 %4827
    %4829 = vrot.lane.b32.xlu0 %v2271, 96
    %v4830 = vpop.permute.xlu0 %4829
    %4831 = vrot.lane.b32.xlu0 %v2297, 96
    %v4832 = vpop.permute.xlu0 %4831
    %4833 = vrot.lane.b32.xlu0 %v2300, 96
    %v4834 = vpop.permute.xlu0 %4833
    %4835 = vrot.lane.b32.xlu0 %v2326, 96
    %v4836 = vpop.permute.xlu0 %4835
    %4837 = vrot.lane.b32.xlu0 %v2329, 96
    %v4838 = vpop.permute.xlu0 %4837
    %4839 = vrot.lane.b32.xlu0 %v2355, 96
    %v4840 = vpop.permute.xlu0 %4839
    %4841 = vrot.lane.b32.xlu0 %v2358, 96
    %v4842 = vpop.permute.xlu0 %4841
    %4843 = vrot.lane.b32.xlu0 %v2384, 96
    %v4844 = vpop.permute.xlu0 %4843
    %4845 = vrot.lane.b32.xlu0 %v2387, 96
    %v4846 = vpop.permute.xlu0 %4845
    %4847 = vrot.lane.b32.xlu0 %v2413, 96
    %v4848 = vpop.permute.xlu0 %4847
    %4849 = vrot.lane.b32.xlu0 %v2416, 96
    %v4850 = vpop.permute.xlu0 %4849
    %4851 = vrot.lane.b32.xlu0 %v2442, 96
    %v4852 = vpop.permute.xlu0 %4851
    %4853 = vrot.lane.b32.xlu0 %v2445, 96
    %v4854 = vpop.permute.xlu0 %4853
    %4855 = vrot.lane.b32.xlu0 %v2471, 96
    %v4856 = vpop.permute.xlu0 %4855
    %4857 = vrot.lane.b32.xlu0 %v2474, 96
    %v4858 = vpop.permute.xlu0 %4857
    %4859 = vrot.lane.b32.xlu0 %v2500, 96
    %v4860 = vpop.permute.xlu0 %4859
    %4861 = vrot.lane.b32.xlu0 %v2503, 96
    %v4862 = vpop.permute.xlu0 %4861
    %4863 = vrot.lane.b32.xlu0 %v2529, 96
    %v4864 = vpop.permute.xlu0 %4863
    %4865 = vrot.lane.b32.xlu0 %v2532, 96
    %v4866 = vpop.permute.xlu0 %4865
    %4867 = vrot.lane.b32.xlu0 %v2558, 96
    %v4868 = vpop.permute.xlu0 %4867
    %4869 = vrot.lane.b32.xlu0 %v2561, 96
    %v4870 = vpop.permute.xlu0 %4869
    %4871 = vrot.lane.b32.xlu0 %v2587, 96
    %v4872 = vpop.permute.xlu0 %4871
    %4873 = vrot.lane.b32.xlu0 %v2590, 96
    %v4874 = vpop.permute.xlu0 %4873
    %4875 = vrot.lane.b32.xlu0 %v2616, 96
    %v4876 = vpop.permute.xlu0 %4875
    %4877 = vrot.lane.b32.xlu0 %v2619, 96
    %v4878 = vpop.permute.xlu0 %4877
    %4879 = vrot.lane.b32.xlu0 %v2645, 96
    %v4880 = vpop.permute.xlu0 %4879
    %4881 = vrot.lane.b32.xlu0 %v2648, 96
    %v4882 = vpop.permute.xlu0 %4881
    %4883 = vrot.lane.b32.xlu0 %v2674, 96
    %v4884 = vpop.permute.xlu0 %4883
    %4885 = vrot.lane.b32.xlu0 %v2677, 96
    %v4886 = vpop.permute.xlu0 %4885
    %4887 = vrot.lane.b32.xlu0 %v2703, 96
    %v4888 = vpop.permute.xlu0 %4887
    %4889 = vrot.lane.b32.xlu0 %v2706, 96
    %v4890 = vpop.permute.xlu0 %4889
    %4891 = vrot.lane.b32.xlu0 %v2732, 96
    %v4892 = vpop.permute.xlu0 %4891
    %4893 = vrot.lane.b32.xlu0 %v2735, 96
    %v4894 = vpop.permute.xlu0 %4893
    %4895 = vrot.lane.b32.xlu0 %v2761, 96
    %v4896 = vpop.permute.xlu0 %4895
    %4897 = vrot.lane.b32.xlu0 %v2764, 96
    %v4898 = vpop.permute.xlu0 %4897
    %4899 = vrot.lane.b32.xlu0 %v2790, 96
    %v4900 = vpop.permute.xlu0 %4899
    %4901 = vrot.lane.b32.xlu0 %v2793, 96
    %v4902 = vpop.permute.xlu0 %4901
    %4903 = vrot.lane.b32.xlu0 %v2819, 96
    %v4904 = vpop.permute.xlu0 %4903
    %4905 = vrot.lane.b32.xlu0 %v2822, 96
    %v4906 = vpop.permute.xlu0 %4905
    %4907 = vrot.lane.b32.xlu0 %v2848, 96
    %v4908 = vpop.permute.xlu0 %4907
    %4909 = vrot.lane.b32.xlu0 %v2851, 96
    %v4910 = vpop.permute.xlu0 %4909
    %v4959 = vrot.slane %v4824, 4
    %v4960 = vsel %vm717, %v4959, %v4816
    %v4961 = vrot.slane %v4816, 4
    %v4962 = vsel %vm717, %v4824, %v4961
    %v4964 = vunpack.c.l.s4 1983009808
    %v4965 = vunpack.c.0.s8 %v4964
    %v4966 = vperm.slane %v4960, %v4965
    %v4968 = vunpack.c.l.s4 1983009808
    %v4969 = vunpack.c.0.s8 %v4968
    %v4970 = vperm.slane %v4962, %v4969
    %v4971 = vrot.slane %v4828, 4
    %v4972 = vsel %vm717, %v4971, %v4820
    %v4973 = vrot.slane %v4820, 4
    %v4974 = vsel %vm717, %v4828, %v4973
    %v4976 = vunpack.c.l.s4 1983009808
    %v4977 = vunpack.c.0.s8 %v4976
    %v4978 = vperm.slane %v4972, %v4977
    %v4980 = vunpack.c.l.s4 1983009808
    %v4981 = vunpack.c.0.s8 %v4980
    %v4982 = vperm.slane %v4974, %v4981
    %v4983 = vrot.slane %v4840, 4
    %v4984 = vsel %vm717, %v4983, %v4832
    %v4985 = vrot.slane %v4832, 4
    %v4986 = vsel %vm717, %v4840, %v4985
    %v4988 = vunpack.c.l.s4 1983009808
    %v4989 = vunpack.c.0.s8 %v4988
    %v4990 = vperm.slane %v4984, %v4989
    %v4992 = vunpack.c.l.s4 1983009808
    %v4993 = vunpack.c.0.s8 %v4992
    %v4994 = vperm.slane %v4986, %v4993
    %v4995 = vrot.slane %v4844, 4
    %v4996 = vsel %vm717, %v4995, %v4836
    %v4997 = vrot.slane %v4836, 4
    %v4998 = vsel %vm717, %v4844, %v4997
    %v5000 = vunpack.c.l.s4 1983009808
    %v5001 = vunpack.c.0.s8 %v5000
    %v5002 = vperm.slane %v4996, %v5001
    %v5004 = vunpack.c.l.s4 1983009808
    %v5005 = vunpack.c.0.s8 %v5004
    %v5006 = vperm.slane %v4998, %v5005
    %v5007 = vrot.slane %v4978, 4
    %v5008 = vsel %vm717, %v5007, %v4966
    %v5009 = vrot.slane %v4966, 4
    %v5010 = vsel %vm717, %v4978, %v5009
    %v5012 = vunpack.c.l.s4 1934713408
    %v5013 = vunpack.c.0.s8 %v5012
    %v5014 = vperm.slane %v5008, %v5013
    %v5016 = vunpack.c.l.s4 1934713408
    %v5017 = vunpack.c.0.s8 %v5016
    %v5018 = vperm.slane %v5010, %v5017
    %v5019 = vrot.slane %v4982, 4
    %v5020 = vsel %vm717, %v5019, %v4970
    %v5021 = vrot.slane %v4970, 4
    %v5022 = vsel %vm717, %v4982, %v5021
    %v5024 = vunpack.c.l.s4 1934713408
    %v5025 = vunpack.c.0.s8 %v5024
    %v5026 = vperm.slane %v5020, %v5025
    %v5028 = vunpack.c.l.s4 1934713408
    %v5029 = vunpack.c.0.s8 %v5028
    %v5030 = vperm.slane %v5022, %v5029
    %v5031 = vrot.slane %v5002, 4
    %v5032 = vsel %vm717, %v5031, %v4990
    %v5033 = vrot.slane %v4990, 4
    %v5034 = vsel %vm717, %v5002, %v5033
    %v5036 = vunpack.c.l.s4 1934713408
    %v5037 = vunpack.c.0.s8 %v5036
    %v5038 = vperm.slane %v5032, %v5037
    %v5040 = vunpack.c.l.s4 1934713408
    %v5041 = vunpack.c.0.s8 %v5040
    %v5042 = vperm.slane %v5034, %v5041
    %v5043 = vrot.slane %v5006, 4
    %v5044 = vsel %vm717, %v5043, %v4994
    %v5045 = vrot.slane %v4994, 4
    %v5046 = vsel %vm717, %v5006, %v5045
    %v5048 = vunpack.c.l.s4 1934713408
    %v5049 = vunpack.c.0.s8 %v5048
    %v5050 = vperm.slane %v5044, %v5049
    %v5052 = vunpack.c.l.s4 1934713408
    %v5053 = vunpack.c.0.s8 %v5052
    %v5054 = vperm.slane %v5046, %v5053
    %v5055 = vrot.slane %v5038, 4
    %v5056 = vsel %vm717, %v5055, %v5014
    %v5057 = vrot.slane %v5014, 4
    %v5058 = vsel %vm717, %v5038, %v5057
    %v5059 = vrot.slane %v5042, 4
    %v5060 = vsel %vm717, %v5059, %v5018
    %v5061 = vrot.slane %v5018, 4
    %v5062 = vsel %vm717, %v5042, %v5061
    %v5063 = vrot.slane %v5050, 4
    %v5064 = vsel %vm717, %v5063, %v5026
    %v5065 = vrot.slane %v5026, 4
    %v5066 = vsel %vm717, %v5050, %v5065
    %v5067 = vrot.slane %v5054, 4
    %v5068 = vsel %vm717, %v5067, %v5030
    %v5069 = vrot.slane %v5030, 4
    %v5070 = vsel %vm717, %v5054, %v5069
    %v5071 = vrot.slane %v4856, 4
    %v5072 = vsel %vm717, %v5071, %v4848
    %v5073 = vrot.slane %v4848, 4
    %v5074 = vsel %vm717, %v4856, %v5073
    %v5076 = vunpack.c.l.s4 1983009808
    %v5077 = vunpack.c.0.s8 %v5076
    %v5078 = vperm.slane %v5072, %v5077
    %v5080 = vunpack.c.l.s4 1983009808
    %v5081 = vunpack.c.0.s8 %v5080
    %v5082 = vperm.slane %v5074, %v5081
    %v5083 = vrot.slane %v4860, 4
    %v5084 = vsel %vm717, %v5083, %v4852
    %v5085 = vrot.slane %v4852, 4
    %v5086 = vsel %vm717, %v4860, %v5085
    %v5088 = vunpack.c.l.s4 1983009808
    %v5089 = vunpack.c.0.s8 %v5088
    %v5090 = vperm.slane %v5084, %v5089
    %v5092 = vunpack.c.l.s4 1983009808
    %v5093 = vunpack.c.0.s8 %v5092
    %v5094 = vperm.slane %v5086, %v5093
    %v5095 = vrot.slane %v4872, 4
    %v5096 = vsel %vm717, %v5095, %v4864
    %v5097 = vrot.slane %v4864, 4
    %v5098 = vsel %vm717, %v4872, %v5097
    %v5100 = vunpack.c.l.s4 1983009808
    %v5101 = vunpack.c.0.s8 %v5100
    %v5102 = vperm.slane %v5096, %v5101
    %v5104 = vunpack.c.l.s4 1983009808
    %v5105 = vunpack.c.0.s8 %v5104
    %v5106 = vperm.slane %v5098, %v5105
    %v5107 = vrot.slane %v4876, 4
    %v5108 = vsel %vm717, %v5107, %v4868
    %v5109 = vrot.slane %v4868, 4
    %v5110 = vsel %vm717, %v4876, %v5109
    %v5112 = vunpack.c.l.s4 1983009808
    %v5113 = vunpack.c.0.s8 %v5112
    %v5114 = vperm.slane %v5108, %v5113
    %v5116 = vunpack.c.l.s4 1983009808
    %v5117 = vunpack.c.0.s8 %v5116
    %v5118 = vperm.slane %v5110, %v5117
    %v5119 = vrot.slane %v5090, 4
    %v5120 = vsel %vm717, %v5119, %v5078
    %v5121 = vrot.slane %v5078, 4
    %v5122 = vsel %vm717, %v5090, %v5121
    %v5124 = vunpack.c.l.s4 1934713408
    %v5125 = vunpack.c.0.s8 %v5124
    %v5126 = vperm.slane %v5120, %v5125
    %v5128 = vunpack.c.l.s4 1934713408
    %v5129 = vunpack.c.0.s8 %v5128
    %v5130 = vperm.slane %v5122, %v5129
    %v5131 = vrot.slane %v5094, 4
    %v5132 = vsel %vm717, %v5131, %v5082
    %v5133 = vrot.slane %v5082, 4
    %v5134 = vsel %vm717, %v5094, %v5133
    %v5136 = vunpack.c.l.s4 1934713408
    %v5137 = vunpack.c.0.s8 %v5136
    %v5138 = vperm.slane %v5132, %v5137
    %v5140 = vunpack.c.l.s4 1934713408
    %v5141 = vunpack.c.0.s8 %v5140
    %v5142 = vperm.slane %v5134, %v5141
    %v5143 = vrot.slane %v5114, 4
    %v5144 = vsel %vm717, %v5143, %v5102
    %v5145 = vrot.slane %v5102, 4
    %v5146 = vsel %vm717, %v5114, %v5145
    %v5148 = vunpack.c.l.s4 1934713408
    %v5149 = vunpack.c.0.s8 %v5148
    %v5150 = vperm.slane %v5144, %v5149
    %v5152 = vunpack.c.l.s4 1934713408
    %v5153 = vunpack.c.0.s8 %v5152
    %v5154 = vperm.slane %v5146, %v5153
    %v5155 = vrot.slane %v5118, 4
    %v5156 = vsel %vm717, %v5155, %v5106
    %v5157 = vrot.slane %v5106, 4
    %v5158 = vsel %vm717, %v5118, %v5157
    %v5160 = vunpack.c.l.s4 1934713408
    %v5161 = vunpack.c.0.s8 %v5160
    %v5162 = vperm.slane %v5156, %v5161
    %v5164 = vunpack.c.l.s4 1934713408
    %v5165 = vunpack.c.0.s8 %v5164
    %v5166 = vperm.slane %v5158, %v5165
    %v5167 = vrot.slane %v5150, 4
    %v5168 = vsel %vm717, %v5167, %v5126
    %v5169 = vrot.slane %v5126, 4
    %v5170 = vsel %vm717, %v5150, %v5169
    %v5171 = vrot.slane %v5154, 4
    %v5172 = vsel %vm717, %v5171, %v5130
    %v5173 = vrot.slane %v5130, 4
    %v5174 = vsel %vm717, %v5154, %v5173
    %v5175 = vrot.slane %v5162, 4
    %v5176 = vsel %vm717, %v5175, %v5138
    %v5177 = vrot.slane %v5138, 4
    %v5178 = vsel %vm717, %v5162, %v5177
    %v5179 = vrot.slane %v5166, 4
    %v5180 = vsel %vm717, %v5179, %v5142
    %v5181 = vrot.slane %v5142, 4
    %v5182 = vsel %vm717, %v5166, %v5181
    %v5183 = vrot.slane %v4888, 4
    %v5184 = vsel %vm717, %v5183, %v4880
    %v5185 = vrot.slane %v4880, 4
    %v5186 = vsel %vm717, %v4888, %v5185
    %v5188 = vunpack.c.l.s4 1983009808
    %v5189 = vunpack.c.0.s8 %v5188
    %v5190 = vperm.slane %v5184, %v5189
    %v5192 = vunpack.c.l.s4 1983009808
    %v5193 = vunpack.c.0.s8 %v5192
    %v5194 = vperm.slane %v5186, %v5193
    %v5195 = vrot.slane %v4892, 4
    %v5196 = vsel %vm717, %v5195, %v4884
    %v5197 = vrot.slane %v4884, 4
    %v5198 = vsel %vm717, %v4892, %v5197
    %v5200 = vunpack.c.l.s4 1983009808
    %v5201 = vunpack.c.0.s8 %v5200
    %v5202 = vperm.slane %v5196, %v5201
    %v5204 = vunpack.c.l.s4 1983009808
    %v5205 = vunpack.c.0.s8 %v5204
    %v5206 = vperm.slane %v5198, %v5205
    %v5207 = vrot.slane %v4904, 4
    %v5208 = vsel %vm717, %v5207, %v4896
    %v5209 = vrot.slane %v4896, 4
    %v5210 = vsel %vm717, %v4904, %v5209
    %v5212 = vunpack.c.l.s4 1983009808
    %v5213 = vunpack.c.0.s8 %v5212
    %v5214 = vperm.slane %v5208, %v5213
    %v5216 = vunpack.c.l.s4 1983009808
    %v5217 = vunpack.c.0.s8 %v5216
    %v5218 = vperm.slane %v5210, %v5217
    %v5219 = vrot.slane %v4908, 4
    %v5220 = vsel %vm717, %v5219, %v4900
    %v5221 = vrot.slane %v4900, 4
    %v5222 = vsel %vm717, %v4908, %v5221
    %v5224 = vunpack.c.l.s4 1983009808
    %v5225 = vunpack.c.0.s8 %v5224
    %v5226 = vperm.slane %v5220, %v5225
    %v5228 = vunpack.c.l.s4 1983009808
    %v5229 = vunpack.c.0.s8 %v5228
    %v5230 = vperm.slane %v5222, %v5229
    %v5231 = vrot.slane %v5202, 4
    %v5232 = vsel %vm717, %v5231, %v5190
    %v5233 = vrot.slane %v5190, 4
    %v5234 = vsel %vm717, %v5202, %v5233
    %v5236 = vunpack.c.l.s4 1934713408
    %v5237 = vunpack.c.0.s8 %v5236
    %v5238 = vperm.slane %v5232, %v5237
    %v5240 = vunpack.c.l.s4 1934713408
    %v5241 = vunpack.c.0.s8 %v5240
    %v5242 = vperm.slane %v5234, %v5241
    %v5243 = vrot.slane %v5206, 4
    %v5244 = vsel %vm717, %v5243, %v5194
    %v5245 = vrot.slane %v5194, 4
    %v5246 = vsel %vm717, %v5206, %v5245
    %v5248 = vunpack.c.l.s4 1934713408
    %v5249 = vunpack.c.0.s8 %v5248
    %v5250 = vperm.slane %v5244, %v5249
    %v5252 = vunpack.c.l.s4 1934713408
    %v5253 = vunpack.c.0.s8 %v5252
    %v5254 = vperm.slane %v5246, %v5253
    %v5255 = vrot.slane %v5226, 4
    %v5256 = vsel %vm717, %v5255, %v5214
    %v5257 = vrot.slane %v5214, 4
    %v5258 = vsel %vm717, %v5226, %v5257
    %v5260 = vunpack.c.l.s4 1934713408
    %v5261 = vunpack.c.0.s8 %v5260
    %v5262 = vperm.slane %v5256, %v5261
    %v5264 = vunpack.c.l.s4 1934713408
    %v5265 = vunpack.c.0.s8 %v5264
    %v5266 = vperm.slane %v5258, %v5265
    %v5267 = vrot.slane %v5230, 4
    %v5268 = vsel %vm717, %v5267, %v5218
    %v5269 = vrot.slane %v5218, 4
    %v5270 = vsel %vm717, %v5230, %v5269
    %v5272 = vunpack.c.l.s4 1934713408
    %v5273 = vunpack.c.0.s8 %v5272
    %v5274 = vperm.slane %v5268, %v5273
    %v5276 = vunpack.c.l.s4 1934713408
    %v5277 = vunpack.c.0.s8 %v5276
    %v5278 = vperm.slane %v5270, %v5277
    %v5279 = vrot.slane %v5262, 4
    %v5280 = vsel %vm717, %v5279, %v5238
    %v5281 = vrot.slane %v5238, 4
    %v5282 = vsel %vm717, %v5262, %v5281
    %v5283 = vrot.slane %v5266, 4
    %v5284 = vsel %vm717, %v5283, %v5242
    %v5285 = vrot.slane %v5242, 4
    %v5286 = vsel %vm717, %v5266, %v5285
    %v5287 = vrot.slane %v5274, 4
    %v5288 = vsel %vm717, %v5287, %v5250
    %v5289 = vrot.slane %v5250, 4
    %v5290 = vsel %vm717, %v5274, %v5289
    %v5291 = vrot.slane %v5278, 4
    %v5292 = vsel %vm717, %v5291, %v5254
    %v5293 = vrot.slane %v5254, 4
    %v5294 = vsel %vm717, %v5278, %v5293
    %v5295 = vrot.slane %v4826, 4
    %v5296 = vsel %vm717, %v5295, %v4818
    %v5297 = vrot.slane %v4818, 4
    %v5298 = vsel %vm717, %v4826, %v5297
    %v5300 = vunpack.c.l.s4 1983009808
    %v5301 = vunpack.c.0.s8 %v5300
    %v5302 = vperm.slane %v5296, %v5301
    %v5304 = vunpack.c.l.s4 1983009808
    %v5305 = vunpack.c.0.s8 %v5304
    %v5306 = vperm.slane %v5298, %v5305
    %v5307 = vrot.slane %v4830, 4
    %v5308 = vsel %vm717, %v5307, %v4822
    %v5309 = vrot.slane %v4822, 4
    %v5310 = vsel %vm717, %v4830, %v5309
    %v5312 = vunpack.c.l.s4 1983009808
    %v5313 = vunpack.c.0.s8 %v5312
    %v5314 = vperm.slane %v5308, %v5313
    %v5316 = vunpack.c.l.s4 1983009808
    %v5317 = vunpack.c.0.s8 %v5316
    %v5318 = vperm.slane %v5310, %v5317
    %v5319 = vrot.slane %v4842, 4
    %v5320 = vsel %vm717, %v5319, %v4834
    %v5321 = vrot.slane %v4834, 4
    %v5322 = vsel %vm717, %v4842, %v5321
    %v5324 = vunpack.c.l.s4 1983009808
    %v5325 = vunpack.c.0.s8 %v5324
    %v5326 = vperm.slane %v5320, %v5325
    %v5328 = vunpack.c.l.s4 1983009808
    %v5329 = vunpack.c.0.s8 %v5328
    %v5330 = vperm.slane %v5322, %v5329
    %v5331 = vrot.slane %v4846, 4
    %v5332 = vsel %vm717, %v5331, %v4838
    %v5333 = vrot.slane %v4838, 4
    %v5334 = vsel %vm717, %v4846, %v5333
    %v5336 = vunpack.c.l.s4 1983009808
    %v5337 = vunpack.c.0.s8 %v5336
    %v5338 = vperm.slane %v5332, %v5337
    %v5340 = vunpack.c.l.s4 1983009808
    %v5341 = vunpack.c.0.s8 %v5340
    %v5342 = vperm.slane %v5334, %v5341
    %v5343 = vrot.slane %v5314, 4
    %v5344 = vsel %vm717, %v5343, %v5302
    %v5345 = vrot.slane %v5302, 4
    %v5346 = vsel %vm717, %v5314, %v5345
    %v5348 = vunpack.c.l.s4 1934713408
    %v5349 = vunpack.c.0.s8 %v5348
    %v5350 = vperm.slane %v5344, %v5349
    %v5352 = vunpack.c.l.s4 1934713408
    %v5353 = vunpack.c.0.s8 %v5352
    %v5354 = vperm.slane %v5346, %v5353
    %v5355 = vrot.slane %v5318, 4
    %v5356 = vsel %vm717, %v5355, %v5306
    %v5357 = vrot.slane %v5306, 4
    %v5358 = vsel %vm717, %v5318, %v5357
    %v5360 = vunpack.c.l.s4 1934713408
    %v5361 = vunpack.c.0.s8 %v5360
    %v5362 = vperm.slane %v5356, %v5361
    %v5364 = vunpack.c.l.s4 1934713408
    %v5365 = vunpack.c.0.s8 %v5364
    %v5366 = vperm.slane %v5358, %v5365
    %v5367 = vrot.slane %v5338, 4
    %v5368 = vsel %vm717, %v5367, %v5326
    %v5369 = vrot.slane %v5326, 4
    %v5370 = vsel %vm717, %v5338, %v5369
    %v5372 = vunpack.c.l.s4 1934713408
    %v5373 = vunpack.c.0.s8 %v5372
    %v5374 = vperm.slane %v5368, %v5373
    %v5376 = vunpack.c.l.s4 1934713408
    %v5377 = vunpack.c.0.s8 %v5376
    %v5378 = vperm.slane %v5370, %v5377
    %v5379 = vrot.slane %v5342, 4
    %v5380 = vsel %vm717, %v5379, %v5330
    %v5381 = vrot.slane %v5330, 4
    %v5382 = vsel %vm717, %v5342, %v5381
    %v5384 = vunpack.c.l.s4 1934713408
    %v5385 = vunpack.c.0.s8 %v5384
    %v5386 = vperm.slane %v5380, %v5385
    %v5388 = vunpack.c.l.s4 1934713408
    %v5389 = vunpack.c.0.s8 %v5388
    %v5390 = vperm.slane %v5382, %v5389
    %v5391 = vrot.slane %v5374, 4
    %v5392 = vsel %vm717, %v5391, %v5350
    %v5393 = vrot.slane %v5350, 4
    %v5394 = vsel %vm717, %v5374, %v5393
    %v5395 = vrot.slane %v5378, 4
    %v5396 = vsel %vm717, %v5395, %v5354
    %v5397 = vrot.slane %v5354, 4
    %v5398 = vsel %vm717, %v5378, %v5397
    %v5399 = vrot.slane %v5386, 4
    %v5400 = vsel %vm717, %v5399, %v5362
    %v5401 = vrot.slane %v5362, 4
    %v5402 = vsel %vm717, %v5386, %v5401
    %v5403 = vrot.slane %v5390, 4
    %v5404 = vsel %vm717, %v5403, %v5366
    %v5405 = vrot.slane %v5366, 4
    %v5406 = vsel %vm717, %v5390, %v5405
    %v5407 = vrot.slane %v4858, 4
    %v5408 = vsel %vm717, %v5407, %v4850
    %v5409 = vrot.slane %v4850, 4
    %v5410 = vsel %vm717, %v4858, %v5409
    %v5412 = vunpack.c.l.s4 1983009808
    %v5413 = vunpack.c.0.s8 %v5412
    %v5414 = vperm.slane %v5408, %v5413
    %v5416 = vunpack.c.l.s4 1983009808
    %v5417 = vunpack.c.0.s8 %v5416
    %v5418 = vperm.slane %v5410, %v5417
    %v5419 = vrot.slane %v4862, 4
    %v5420 = vsel %vm717, %v5419, %v4854
    %v5421 = vrot.slane %v4854, 4
    %v5422 = vsel %vm717, %v4862, %v5421
    %v5424 = vunpack.c.l.s4 1983009808
    %v5425 = vunpack.c.0.s8 %v5424
    %v5426 = vperm.slane %v5420, %v5425
    %v5428 = vunpack.c.l.s4 1983009808
    %v5429 = vunpack.c.0.s8 %v5428
    %v5430 = vperm.slane %v5422, %v5429
    %v5431 = vrot.slane %v4874, 4
    %v5432 = vsel %vm717, %v5431, %v4866
    %v5433 = vrot.slane %v4866, 4
    %v5434 = vsel %vm717, %v4874, %v5433
    %v5436 = vunpack.c.l.s4 1983009808
    %v5437 = vunpack.c.0.s8 %v5436
    %v5438 = vperm.slane %v5432, %v5437
    %v5440 = vunpack.c.l.s4 1983009808
    %v5441 = vunpack.c.0.s8 %v5440
    %v5442 = vperm.slane %v5434, %v5441
    %v5443 = vrot.slane %v4878, 4
    %v5444 = vsel %vm717, %v5443, %v4870
    %v5445 = vrot.slane %v4870, 4
    %v5446 = vsel %vm717, %v4878, %v5445
    %v5448 = vunpack.c.l.s4 1983009808
    %v5449 = vunpack.c.0.s8 %v5448
    %v5450 = vperm.slane %v5444, %v5449
    %v5452 = vunpack.c.l.s4 1983009808
    %v5453 = vunpack.c.0.s8 %v5452
    %v5454 = vperm.slane %v5446, %v5453
    %v5455 = vrot.slane %v5426, 4
    %v5456 = vsel %vm717, %v5455, %v5414
    %v5457 = vrot.slane %v5414, 4
    %v5458 = vsel %vm717, %v5426, %v5457
    %v5460 = vunpack.c.l.s4 1934713408
    %v5461 = vunpack.c.0.s8 %v5460
    %v5462 = vperm.slane %v5456, %v5461
    %v5464 = vunpack.c.l.s4 1934713408
    %v5465 = vunpack.c.0.s8 %v5464
    %v5466 = vperm.slane %v5458, %v5465
    %v5467 = vrot.slane %v5430, 4
    %v5468 = vsel %vm717, %v5467, %v5418
    %v5469 = vrot.slane %v5418, 4
    %v5470 = vsel %vm717, %v5430, %v5469
    %v5472 = vunpack.c.l.s4 1934713408
    %v5473 = vunpack.c.0.s8 %v5472
    %v5474 = vperm.slane %v5468, %v5473
    %v5476 = vunpack.c.l.s4 1934713408
    %v5477 = vunpack.c.0.s8 %v5476
    %v5478 = vperm.slane %v5470, %v5477
    %v5479 = vrot.slane %v5450, 4
    %v5480 = vsel %vm717, %v5479, %v5438
    %v5481 = vrot.slane %v5438, 4
    %v5482 = vsel %vm717, %v5450, %v5481
    %v5484 = vunpack.c.l.s4 1934713408
    %v5485 = vunpack.c.0.s8 %v5484
    %v5486 = vperm.slane %v5480, %v5485
    %v5488 = vunpack.c.l.s4 1934713408
    %v5489 = vunpack.c.0.s8 %v5488
    %v5490 = vperm.slane %v5482, %v5489
    %v5491 = vrot.slane %v5454, 4
    %v5492 = vsel %vm717, %v5491, %v5442
    %v5493 = vrot.slane %v5442, 4
    %v5494 = vsel %vm717, %v5454, %v5493
    %v5496 = vunpack.c.l.s4 1934713408
    %v5497 = vunpack.c.0.s8 %v5496
    %v5498 = vperm.slane %v5492, %v5497
    %v5500 = vunpack.c.l.s4 1934713408
    %v5501 = vunpack.c.0.s8 %v5500
    %v5502 = vperm.slane %v5494, %v5501
    %v5503 = vrot.slane %v5486, 4
    %v5504 = vsel %vm717, %v5503, %v5462
    %v5505 = vrot.slane %v5462, 4
    %v5506 = vsel %vm717, %v5486, %v5505
    %v5507 = vrot.slane %v5490, 4
    %v5508 = vsel %vm717, %v5507, %v5466
    %v5509 = vrot.slane %v5466, 4
    %v5510 = vsel %vm717, %v5490, %v5509
    %v5511 = vrot.slane %v5498, 4
    %v5512 = vsel %vm717, %v5511, %v5474
    %v5513 = vrot.slane %v5474, 4
    %v5514 = vsel %vm717, %v5498, %v5513
    %v5515 = vrot.slane %v5502, 4
    %v5516 = vsel %vm717, %v5515, %v5478
    %v5517 = vrot.slane %v5478, 4
    %v5518 = vsel %vm717, %v5502, %v5517
    %v5519 = vrot.slane %v4890, 4
    %v5520 = vsel %vm717, %v5519, %v4882
    %v5521 = vrot.slane %v4882, 4
    %v5522 = vsel %vm717, %v4890, %v5521
    %v5524 = vunpack.c.l.s4 1983009808
    %v5525 = vunpack.c.0.s8 %v5524
    %v5526 = vperm.slane %v5520, %v5525
    %v5528 = vunpack.c.l.s4 1983009808
    %v5529 = vunpack.c.0.s8 %v5528
    %v5530 = vperm.slane %v5522, %v5529
    %v5531 = vrot.slane %v4894, 4
    %v5532 = vsel %vm717, %v5531, %v4886
    %v5533 = vrot.slane %v4886, 4
    %v5534 = vsel %vm717, %v4894, %v5533
    %v5536 = vunpack.c.l.s4 1983009808
    %v5537 = vunpack.c.0.s8 %v5536
    %v5538 = vperm.slane %v5532, %v5537
    %v5540 = vunpack.c.l.s4 1983009808
    %v5541 = vunpack.c.0.s8 %v5540
    %v5542 = vperm.slane %v5534, %v5541
    %v5543 = vrot.slane %v4906, 4
    %v5544 = vsel %vm717, %v5543, %v4898
    %v5545 = vrot.slane %v4898, 4
    %v5546 = vsel %vm717, %v4906, %v5545
    %v5548 = vunpack.c.l.s4 1983009808
    %v5549 = vunpack.c.0.s8 %v5548
    %v5550 = vperm.slane %v5544, %v5549
    %v5552 = vunpack.c.l.s4 1983009808
    %v5553 = vunpack.c.0.s8 %v5552
    %v5554 = vperm.slane %v5546, %v5553
    %v5555 = vrot.slane %v4910, 4
    %v5556 = vsel %vm717, %v5555, %v4902
    %v5557 = vrot.slane %v4902, 4
    %v5558 = vsel %vm717, %v4910, %v5557
    %v5560 = vunpack.c.l.s4 1983009808
    %v5561 = vunpack.c.0.s8 %v5560
    %v5562 = vperm.slane %v5556, %v5561
    %v5564 = vunpack.c.l.s4 1983009808
    %v5565 = vunpack.c.0.s8 %v5564
    %v5566 = vperm.slane %v5558, %v5565
    %v5567 = vrot.slane %v5538, 4
    %v5568 = vsel %vm717, %v5567, %v5526
    %v5569 = vrot.slane %v5526, 4
    %v5570 = vsel %vm717, %v5538, %v5569
    %v5572 = vunpack.c.l.s4 1934713408
    %v5573 = vunpack.c.0.s8 %v5572
    %v5574 = vperm.slane %v5568, %v5573
    %v5576 = vunpack.c.l.s4 1934713408
    %v5577 = vunpack.c.0.s8 %v5576
    %v5578 = vperm.slane %v5570, %v5577
    %v5579 = vrot.slane %v5542, 4
    %v5580 = vsel %vm717, %v5579, %v5530
    %v5581 = vrot.slane %v5530, 4
    %v5582 = vsel %vm717, %v5542, %v5581
    %v5584 = vunpack.c.l.s4 1934713408
    %v5585 = vunpack.c.0.s8 %v5584
    %v5586 = vperm.slane %v5580, %v5585
    %v5588 = vunpack.c.l.s4 1934713408
    %v5589 = vunpack.c.0.s8 %v5588
    %v5590 = vperm.slane %v5582, %v5589
    %v5591 = vrot.slane %v5562, 4
    %v5592 = vsel %vm717, %v5591, %v5550
    %v5593 = vrot.slane %v5550, 4
    %v5594 = vsel %vm717, %v5562, %v5593
    %v5596 = vunpack.c.l.s4 1934713408
    %v5597 = vunpack.c.0.s8 %v5596
    %v5598 = vperm.slane %v5592, %v5597
    %v5600 = vunpack.c.l.s4 1934713408
    %v5601 = vunpack.c.0.s8 %v5600
    %v5602 = vperm.slane %v5594, %v5601
    %v5603 = vrot.slane %v5566, 4
    %v5604 = vsel %vm717, %v5603, %v5554
    %v5605 = vrot.slane %v5554, 4
    %v5606 = vsel %vm717, %v5566, %v5605
    %v5608 = vunpack.c.l.s4 1934713408
    %v5609 = vunpack.c.0.s8 %v5608
    %v5610 = vperm.slane %v5604, %v5609
    %v5612 = vunpack.c.l.s4 1934713408
    %v5613 = vunpack.c.0.s8 %v5612
    %v5614 = vperm.slane %v5606, %v5613
    %v5615 = vrot.slane %v5598, 4
    %v5616 = vsel %vm717, %v5615, %v5574
    %v5617 = vrot.slane %v5574, 4
    %v5618 = vsel %vm717, %v5598, %v5617
    %v5619 = vrot.slane %v5602, 4
    %v5620 = vsel %vm717, %v5619, %v5578
    %v5621 = vrot.slane %v5578, 4
    %v5622 = vsel %vm717, %v5602, %v5621
    %v5623 = vrot.slane %v5610, 4
    %v5624 = vsel %vm717, %v5623, %v5586
    %v5625 = vrot.slane %v5586, 4
    %v5626 = vsel %vm717, %v5610, %v5625
    %v5627 = vrot.slane %v5614, 4
    %v5628 = vsel %vm717, %v5627, %v5590
    %v5629 = vrot.slane %v5590, 4
    %v5630 = vsel %vm717, %v5614, %v5629
    %5634 = vrot.lane.b32.xlu0 %v5058, 16
    %v5635 = vpop.permute.xlu0 %5634
    %5636 = vrot.lane.b32.xlu0 %v5170, 16
    %v5637 = vpop.permute.xlu0 %5636
    %5638 = vrot.lane.b32.xlu0 %v5282, 16
    %v5639 = vpop.permute.xlu0 %5638
    %5646 = vrot.lane.b32.xlu0 %v5060, 32
    %v5647 = vpop.permute.xlu0 %5646
    %5648 = vrot.lane.b32.xlu0 %v5172, 32
    %v5649 = vpop.permute.xlu0 %5648
    %5650 = vrot.lane.b32.xlu0 %v5284, 32
    %v5651 = vpop.permute.xlu0 %5650
    %5658 = vrot.lane.b32.xlu0 %v5062, 48
    %v5659 = vpop.permute.xlu0 %5658
    %5660 = vrot.lane.b32.xlu0 %v5174, 48
    %v5661 = vpop.permute.xlu0 %5660
    %5662 = vrot.lane.b32.xlu0 %v5286, 48
    %v5663 = vpop.permute.xlu0 %5662
    %5670 = vrot.lane.b32.xlu0 %v5064, 64
    %v5671 = vpop.permute.xlu0 %5670
    %5672 = vrot.lane.b32.xlu0 %v5176, 64
    %v5673 = vpop.permute.xlu0 %5672
    %5674 = vrot.lane.b32.xlu0 %v5288, 64
    %v5675 = vpop.permute.xlu0 %5674
    %5682 = vrot.lane.b32.xlu0 %v5066, 80
    %v5683 = vpop.permute.xlu0 %5682
    %5684 = vrot.lane.b32.xlu0 %v5178, 80
    %v5685 = vpop.permute.xlu0 %5684
    %5686 = vrot.lane.b32.xlu0 %v5290, 80
    %v5687 = vpop.permute.xlu0 %5686
    %5694 = vrot.lane.b32.xlu0 %v5068, 96
    %v5695 = vpop.permute.xlu0 %5694
    %5696 = vrot.lane.b32.xlu0 %v5180, 96
    %v5697 = vpop.permute.xlu0 %5696
    %5698 = vrot.lane.b32.xlu0 %v5292, 96
    %v5699 = vpop.permute.xlu0 %5698
    %5706 = vrot.lane.b32.xlu0 %v5070, 112
    %v5707 = vpop.permute.xlu0 %5706
    %5708 = vrot.lane.b32.xlu0 %v5182, 112
    %v5709 = vpop.permute.xlu0 %5708
    %5710 = vrot.lane.b32.xlu0 %v5294, 112
    %v5711 = vpop.permute.xlu0 %5710
    %5718 = vrot.lane.b32.xlu0 %v5394, 16
    %v5719 = vpop.permute.xlu0 %5718
    %5720 = vrot.lane.b32.xlu0 %v5506, 16
    %v5721 = vpop.permute.xlu0 %5720
    %5722 = vrot.lane.b32.xlu0 %v5618, 16
    %v5723 = vpop.permute.xlu0 %5722
    %5730 = vrot.lane.b32.xlu0 %v5396, 32
    %v5731 = vpop.permute.xlu0 %5730
    %5732 = vrot.lane.b32.xlu0 %v5508, 32
    %v5733 = vpop.permute.xlu0 %5732
    %5734 = vrot.lane.b32.xlu0 %v5620, 32
    %v5735 = vpop.permute.xlu0 %5734
    %5742 = vrot.lane.b32.xlu0 %v5398, 48
    %v5743 = vpop.permute.xlu0 %5742
    %5744 = vrot.lane.b32.xlu0 %v5510, 48
    %v5745 = vpop.permute.xlu0 %5744
    %5746 = vrot.lane.b32.xlu0 %v5622, 48
    %v5747 = vpop.permute.xlu0 %5746
    %5754 = vrot.lane.b32.xlu0 %v5400, 64
    %v5755 = vpop.permute.xlu0 %5754
    %5756 = vrot.lane.b32.xlu0 %v5512, 64
    %v5757 = vpop.permute.xlu0 %5756
    %5758 = vrot.lane.b32.xlu0 %v5624, 64
    %v5759 = vpop.permute.xlu0 %5758
    %5766 = vrot.lane.b32.xlu0 %v5402, 80
    %v5767 = vpop.permute.xlu0 %5766
    %5768 = vrot.lane.b32.xlu0 %v5514, 80
    %v5769 = vpop.permute.xlu0 %5768
    %5770 = vrot.lane.b32.xlu0 %v5626, 80
    %v5771 = vpop.permute.xlu0 %5770
    %5778 = vrot.lane.b32.xlu0 %v5404, 96
    %v5779 = vpop.permute.xlu0 %5778
    %5780 = vrot.lane.b32.xlu0 %v5516, 96
    %v5781 = vpop.permute.xlu0 %5780
    %5782 = vrot.lane.b32.xlu0 %v5628, 96
    %v5783 = vpop.permute.xlu0 %5782
    %5790 = vrot.lane.b32.xlu0 %v5406, 112
    %v5791 = vpop.permute.xlu0 %5790
    %5792 = vrot.lane.b32.xlu0 %v5518, 112
    %v5793 = vpop.permute.xlu0 %5792
    %5794 = vrot.lane.b32.xlu0 %v5630, 112
    %v5795 = vpop.permute.xlu0 %5794
    %v5799 = vsel %vm390, %v5056, %v5635
    %v5800 = vsel %vm390, %v5168, %v5637
    %v5801 = vsel %vm390, %v5280, %v5639
    %v5802 = vsel %vm3696, %v5799, %v5647
    %v5803 = vsel %vm3696, %v5800, %v5649
    %v5804 = vsel %vm3696, %v5801, %v5651
    %v5805 = vsel %vm3700, %v5802, %v5659
    %v5806 = vsel %vm3700, %v5803, %v5661
    %v5807 = vsel %vm3700, %v5804, %v5663
    %v5808 = vsel %vm3704, %v5805, %v5671
    %v5809 = vsel %vm3704, %v5806, %v5673
    %v5810 = vsel %vm3704, %v5807, %v5675
    %v5811 = vsel %vm3708, %v5808, %v5683
    %v5812 = vsel %vm3708, %v5809, %v5685
    %v5813 = vsel %vm3708, %v5810, %v5687
    %v5814 = vsel %vm3712, %v5811, %v5695
    %v5815 = vsel %vm3712, %v5812, %v5697
    %v5816 = vsel %vm3712, %v5813, %v5699
    %v5817 = vsel %vm3716, %v5814, %v5707
    %v5818 = vsel %vm3716, %v5815, %v5709
    %v5819 = vsel %vm3716, %v5816, %v5711
    %v5820 = vsel %vm390, %v5392, %v5719
    %v5821 = vsel %vm390, %v5504, %v5721
    %v5822 = vsel %vm390, %v5616, %v5723
    %v5823 = vsel %vm3696, %v5820, %v5731
    %v5824 = vsel %vm3696, %v5821, %v5733
    %v5825 = vsel %vm3696, %v5822, %v5735
    %v5826 = vsel %vm3700, %v5823, %v5743
    %v5827 = vsel %vm3700, %v5824, %v5745
    %v5828 = vsel %vm3700, %v5825, %v5747
    %v5829 = vsel %vm3704, %v5826, %v5755
    %v5830 = vsel %vm3704, %v5827, %v5757
    %v5831 = vsel %vm3704, %v5828, %v5759
    %v5832 = vsel %vm3708, %v5829, %v5767
    %v5833 = vsel %vm3708, %v5830, %v5769
    %v5834 = vsel %vm3708, %v5831, %v5771
    %v5835 = vsel %vm3712, %v5832, %v5779
    %v5836 = vsel %vm3712, %v5833, %v5781
    %v5837 = vsel %vm3712, %v5834, %v5783
    %v5838 = vsel %vm3716, %v5835, %v5791
    %v5839 = vsel %vm3716, %v5836, %v5793
    %v5840 = vsel %vm3716, %v5837, %v5795
    %5841 = vrot.lane.b32.xlu0 %v2181, 80
    %v5842 = vpop.permute.xlu0 %5841
    %5843 = vrot.lane.b32.xlu0 %v2184, 80
    %v5844 = vpop.permute.xlu0 %5843
    %5845 = vrot.lane.b32.xlu0 %v2210, 80
    %v5846 = vpop.permute.xlu0 %5845
    %5847 = vrot.lane.b32.xlu0 %v2213, 80
    %v5848 = vpop.permute.xlu0 %5847
    %5849 = vrot.lane.b32.xlu0 %v2239, 80
    %v5850 = vpop.permute.xlu0 %5849
    %5851 = vrot.lane.b32.xlu0 %v2242, 80
    %v5852 = vpop.permute.xlu0 %5851
    %5853 = vrot.lane.b32.xlu0 %v2268, 80
    %v5854 = vpop.permute.xlu0 %5853
    %5855 = vrot.lane.b32.xlu0 %v2271, 80
    %v5856 = vpop.permute.xlu0 %5855
    %5857 = vrot.lane.b32.xlu0 %v2297, 80
    %v5858 = vpop.permute.xlu0 %5857
    %5859 = vrot.lane.b32.xlu0 %v2300, 80
    %v5860 = vpop.permute.xlu0 %5859
    %5861 = vrot.lane.b32.xlu0 %v2326, 80
    %v5862 = vpop.permute.xlu0 %5861
    %5863 = vrot.lane.b32.xlu0 %v2329, 80
    %v5864 = vpop.permute.xlu0 %5863
    %5865 = vrot.lane.b32.xlu0 %v2355, 80
    %v5866 = vpop.permute.xlu0 %5865
    %5867 = vrot.lane.b32.xlu0 %v2358, 80
    %v5868 = vpop.permute.xlu0 %5867
    %5869 = vrot.lane.b32.xlu0 %v2384, 80
    %v5870 = vpop.permute.xlu0 %5869
    %5871 = vrot.lane.b32.xlu0 %v2387, 80
    %v5872 = vpop.permute.xlu0 %5871
    %5873 = vrot.lane.b32.xlu0 %v2413, 80
    %v5874 = vpop.permute.xlu0 %5873
    %5875 = vrot.lane.b32.xlu0 %v2416, 80
    %v5876 = vpop.permute.xlu0 %5875
    %5877 = vrot.lane.b32.xlu0 %v2442, 80
    %v5878 = vpop.permute.xlu0 %5877
    %5879 = vrot.lane.b32.xlu0 %v2445, 80
    %v5880 = vpop.permute.xlu0 %5879
    %5881 = vrot.lane.b32.xlu0 %v2471, 80
    %v5882 = vpop.permute.xlu0 %5881
    %5883 = vrot.lane.b32.xlu0 %v2474, 80
    %v5884 = vpop.permute.xlu0 %5883
    %5885 = vrot.lane.b32.xlu0 %v2500, 80
    %v5886 = vpop.permute.xlu0 %5885
    %5887 = vrot.lane.b32.xlu0 %v2503, 80
    %v5888 = vpop.permute.xlu0 %5887
    %5889 = vrot.lane.b32.xlu0 %v2529, 80
    %v5890 = vpop.permute.xlu0 %5889
    %5891 = vrot.lane.b32.xlu0 %v2532, 80
    %v5892 = vpop.permute.xlu0 %5891
    %5893 = vrot.lane.b32.xlu0 %v2558, 80
    %v5894 = vpop.permute.xlu0 %5893
    %5895 = vrot.lane.b32.xlu0 %v2561, 80
    %v5896 = vpop.permute.xlu0 %5895
    %5897 = vrot.lane.b32.xlu0 %v2587, 80
    %v5898 = vpop.permute.xlu0 %5897
    %5899 = vrot.lane.b32.xlu0 %v2590, 80
    %v5900 = vpop.permute.xlu0 %5899
    %5901 = vrot.lane.b32.xlu0 %v2616, 80
    %v5902 = vpop.permute.xlu0 %5901
    %5903 = vrot.lane.b32.xlu0 %v2619, 80
    %v5904 = vpop.permute.xlu0 %5903
    %5905 = vrot.lane.b32.xlu0 %v2645, 80
    %v5906 = vpop.permute.xlu0 %5905
    %5907 = vrot.lane.b32.xlu0 %v2648, 80
    %v5908 = vpop.permute.xlu0 %5907
    %5909 = vrot.lane.b32.xlu0 %v2674, 80
    %v5910 = vpop.permute.xlu0 %5909
    %5911 = vrot.lane.b32.xlu0 %v2677, 80
    %v5912 = vpop.permute.xlu0 %5911
    %5913 = vrot.lane.b32.xlu0 %v2703, 80
    %v5914 = vpop.permute.xlu0 %5913
    %5915 = vrot.lane.b32.xlu0 %v2706, 80
    %v5916 = vpop.permute.xlu0 %5915
    %5917 = vrot.lane.b32.xlu0 %v2732, 80
    %v5918 = vpop.permute.xlu0 %5917
    %5919 = vrot.lane.b32.xlu0 %v2735, 80
    %v5920 = vpop.permute.xlu0 %5919
    %5921 = vrot.lane.b32.xlu0 %v2761, 80
    %v5922 = vpop.permute.xlu0 %5921
    %5923 = vrot.lane.b32.xlu0 %v2764, 80
    %v5924 = vpop.permute.xlu0 %5923
    %5925 = vrot.lane.b32.xlu0 %v2790, 80
    %v5926 = vpop.permute.xlu0 %5925
    %5927 = vrot.lane.b32.xlu0 %v2793, 80
    %v5928 = vpop.permute.xlu0 %5927
    %5929 = vrot.lane.b32.xlu0 %v2819, 80
    %v5930 = vpop.permute.xlu0 %5929
    %5931 = vrot.lane.b32.xlu0 %v2822, 80
    %v5932 = vpop.permute.xlu0 %5931
    %5933 = vrot.lane.b32.xlu0 %v2848, 80
    %v5934 = vpop.permute.xlu0 %5933
    %5935 = vrot.lane.b32.xlu0 %v2851, 80
    %v5936 = vpop.permute.xlu0 %5935
    %v5985 = vrot.slane %v5850, 4
    %v5986 = vsel %vm717, %v5985, %v5842
    %v5987 = vrot.slane %v5842, 4
    %v5988 = vsel %vm717, %v5850, %v5987
    %v5990 = vunpack.c.l.s4 1983009808
    %v5991 = vunpack.c.0.s8 %v5990
    %v5992 = vperm.slane %v5986, %v5991
    %v5994 = vunpack.c.l.s4 1983009808
    %v5995 = vunpack.c.0.s8 %v5994
    %v5996 = vperm.slane %v5988, %v5995
    %v5997 = vrot.slane %v5854, 4
    %v5998 = vsel %vm717, %v5997, %v5846
    %v5999 = vrot.slane %v5846, 4
    %v6000 = vsel %vm717, %v5854, %v5999
    %v6002 = vunpack.c.l.s4 1983009808
    %v6003 = vunpack.c.0.s8 %v6002
    %v6004 = vperm.slane %v5998, %v6003
    %v6006 = vunpack.c.l.s4 1983009808
    %v6007 = vunpack.c.0.s8 %v6006
    %v6008 = vperm.slane %v6000, %v6007
    %v6009 = vrot.slane %v5866, 4
    %v6010 = vsel %vm717, %v6009, %v5858
    %v6011 = vrot.slane %v5858, 4
    %v6012 = vsel %vm717, %v5866, %v6011
    %v6014 = vunpack.c.l.s4 1983009808
    %v6015 = vunpack.c.0.s8 %v6014
    %v6016 = vperm.slane %v6010, %v6015
    %v6018 = vunpack.c.l.s4 1983009808
    %v6019 = vunpack.c.0.s8 %v6018
    %v6020 = vperm.slane %v6012, %v6019
    %v6021 = vrot.slane %v5870, 4
    %v6022 = vsel %vm717, %v6021, %v5862
    %v6023 = vrot.slane %v5862, 4
    %v6024 = vsel %vm717, %v5870, %v6023
    %v6026 = vunpack.c.l.s4 1983009808
    %v6027 = vunpack.c.0.s8 %v6026
    %v6028 = vperm.slane %v6022, %v6027
    %v6030 = vunpack.c.l.s4 1983009808
    %v6031 = vunpack.c.0.s8 %v6030
    %v6032 = vperm.slane %v6024, %v6031
    %v6033 = vrot.slane %v6004, 4
    %v6034 = vsel %vm717, %v6033, %v5992
    %v6035 = vrot.slane %v5992, 4
    %v6036 = vsel %vm717, %v6004, %v6035
    %v6038 = vunpack.c.l.s4 1934713408
    %v6039 = vunpack.c.0.s8 %v6038
    %v6040 = vperm.slane %v6034, %v6039
    %v6042 = vunpack.c.l.s4 1934713408
    %v6043 = vunpack.c.0.s8 %v6042
    %v6044 = vperm.slane %v6036, %v6043
    %v6045 = vrot.slane %v6008, 4
    %v6046 = vsel %vm717, %v6045, %v5996
    %v6047 = vrot.slane %v5996, 4
    %v6048 = vsel %vm717, %v6008, %v6047
    %v6050 = vunpack.c.l.s4 1934713408
    %v6051 = vunpack.c.0.s8 %v6050
    %v6052 = vperm.slane %v6046, %v6051
    %v6054 = vunpack.c.l.s4 1934713408
    %v6055 = vunpack.c.0.s8 %v6054
    %v6056 = vperm.slane %v6048, %v6055
    %v6057 = vrot.slane %v6028, 4
    %v6058 = vsel %vm717, %v6057, %v6016
    %v6059 = vrot.slane %v6016, 4
    %v6060 = vsel %vm717, %v6028, %v6059
    %v6062 = vunpack.c.l.s4 1934713408
    %v6063 = vunpack.c.0.s8 %v6062
    %v6064 = vperm.slane %v6058, %v6063
    %v6066 = vunpack.c.l.s4 1934713408
    %v6067 = vunpack.c.0.s8 %v6066
    %v6068 = vperm.slane %v6060, %v6067
    %v6069 = vrot.slane %v6032, 4
    %v6070 = vsel %vm717, %v6069, %v6020
    %v6071 = vrot.slane %v6020, 4
    %v6072 = vsel %vm717, %v6032, %v6071
    %v6074 = vunpack.c.l.s4 1934713408
    %v6075 = vunpack.c.0.s8 %v6074
    %v6076 = vperm.slane %v6070, %v6075
    %v6078 = vunpack.c.l.s4 1934713408
    %v6079 = vunpack.c.0.s8 %v6078
    %v6080 = vperm.slane %v6072, %v6079
    %v6081 = vrot.slane %v6064, 4
    %v6082 = vsel %vm717, %v6081, %v6040
    %v6083 = vrot.slane %v6040, 4
    %v6084 = vsel %vm717, %v6064, %v6083
    %v6085 = vrot.slane %v6068, 4
    %v6086 = vsel %vm717, %v6085, %v6044
    %v6087 = vrot.slane %v6044, 4
    %v6088 = vsel %vm717, %v6068, %v6087
    %v6089 = vrot.slane %v6076, 4
    %v6090 = vsel %vm717, %v6089, %v6052
    %v6091 = vrot.slane %v6052, 4
    %v6092 = vsel %vm717, %v6076, %v6091
    %v6093 = vrot.slane %v6080, 4
    %v6094 = vsel %vm717, %v6093, %v6056
    %v6095 = vrot.slane %v6056, 4
    %v6096 = vsel %vm717, %v6080, %v6095
    %v6097 = vrot.slane %v5882, 4
    %v6098 = vsel %vm717, %v6097, %v5874
    %v6099 = vrot.slane %v5874, 4
    %v6100 = vsel %vm717, %v5882, %v6099
    %v6102 = vunpack.c.l.s4 1983009808
    %v6103 = vunpack.c.0.s8 %v6102
    %v6104 = vperm.slane %v6098, %v6103
    %v6106 = vunpack.c.l.s4 1983009808
    %v6107 = vunpack.c.0.s8 %v6106
    %v6108 = vperm.slane %v6100, %v6107
    %v6109 = vrot.slane %v5886, 4
    %v6110 = vsel %vm717, %v6109, %v5878
    %v6111 = vrot.slane %v5878, 4
    %v6112 = vsel %vm717, %v5886, %v6111
    %v6114 = vunpack.c.l.s4 1983009808
    %v6115 = vunpack.c.0.s8 %v6114
    %v6116 = vperm.slane %v6110, %v6115
    %v6118 = vunpack.c.l.s4 1983009808
    %v6119 = vunpack.c.0.s8 %v6118
    %v6120 = vperm.slane %v6112, %v6119
    %v6121 = vrot.slane %v5898, 4
    %v6122 = vsel %vm717, %v6121, %v5890
    %v6123 = vrot.slane %v5890, 4
    %v6124 = vsel %vm717, %v5898, %v6123
    %v6126 = vunpack.c.l.s4 1983009808
    %v6127 = vunpack.c.0.s8 %v6126
    %v6128 = vperm.slane %v6122, %v6127
    %v6130 = vunpack.c.l.s4 1983009808
    %v6131 = vunpack.c.0.s8 %v6130
    %v6132 = vperm.slane %v6124, %v6131
    %v6133 = vrot.slane %v5902, 4
    %v6134 = vsel %vm717, %v6133, %v5894
    %v6135 = vrot.slane %v5894, 4
    %v6136 = vsel %vm717, %v5902, %v6135
    %v6138 = vunpack.c.l.s4 1983009808
    %v6139 = vunpack.c.0.s8 %v6138
    %v6140 = vperm.slane %v6134, %v6139
    %v6142 = vunpack.c.l.s4 1983009808
    %v6143 = vunpack.c.0.s8 %v6142
    %v6144 = vperm.slane %v6136, %v6143
    %v6145 = vrot.slane %v6116, 4
    %v6146 = vsel %vm717, %v6145, %v6104
    %v6147 = vrot.slane %v6104, 4
    %v6148 = vsel %vm717, %v6116, %v6147
    %v6150 = vunpack.c.l.s4 1934713408
    %v6151 = vunpack.c.0.s8 %v6150
    %v6152 = vperm.slane %v6146, %v6151
    %v6154 = vunpack.c.l.s4 1934713408
    %v6155 = vunpack.c.0.s8 %v6154
    %v6156 = vperm.slane %v6148, %v6155
    %v6157 = vrot.slane %v6120, 4
    %v6158 = vsel %vm717, %v6157, %v6108
    %v6159 = vrot.slane %v6108, 4
    %v6160 = vsel %vm717, %v6120, %v6159
    %v6162 = vunpack.c.l.s4 1934713408
    %v6163 = vunpack.c.0.s8 %v6162
    %v6164 = vperm.slane %v6158, %v6163
    %v6166 = vunpack.c.l.s4 1934713408
    %v6167 = vunpack.c.0.s8 %v6166
    %v6168 = vperm.slane %v6160, %v6167
    %v6169 = vrot.slane %v6140, 4
    %v6170 = vsel %vm717, %v6169, %v6128
    %v6171 = vrot.slane %v6128, 4
    %v6172 = vsel %vm717, %v6140, %v6171
    %v6174 = vunpack.c.l.s4 1934713408
    %v6175 = vunpack.c.0.s8 %v6174
    %v6176 = vperm.slane %v6170, %v6175
    %v6178 = vunpack.c.l.s4 1934713408
    %v6179 = vunpack.c.0.s8 %v6178
    %v6180 = vperm.slane %v6172, %v6179
    %v6181 = vrot.slane %v6144, 4
    %v6182 = vsel %vm717, %v6181, %v6132
    %v6183 = vrot.slane %v6132, 4
    %v6184 = vsel %vm717, %v6144, %v6183
    %v6186 = vunpack.c.l.s4 1934713408
    %v6187 = vunpack.c.0.s8 %v6186
    %v6188 = vperm.slane %v6182, %v6187
    %v6190 = vunpack.c.l.s4 1934713408
    %v6191 = vunpack.c.0.s8 %v6190
    %v6192 = vperm.slane %v6184, %v6191
    %v6193 = vrot.slane %v6176, 4
    %v6194 = vsel %vm717, %v6193, %v6152
    %v6195 = vrot.slane %v6152, 4
    %v6196 = vsel %vm717, %v6176, %v6195
    %v6197 = vrot.slane %v6180, 4
    %v6198 = vsel %vm717, %v6197, %v6156
    %v6199 = vrot.slane %v6156, 4
    %v6200 = vsel %vm717, %v6180, %v6199
    %v6201 = vrot.slane %v6188, 4
    %v6202 = vsel %vm717, %v6201, %v6164
    %v6203 = vrot.slane %v6164, 4
    %v6204 = vsel %vm717, %v6188, %v6203
    %v6205 = vrot.slane %v6192, 4
    %v6206 = vsel %vm717, %v6205, %v6168
    %v6207 = vrot.slane %v6168, 4
    %v6208 = vsel %vm717, %v6192, %v6207
    %v6209 = vrot.slane %v5914, 4
    %v6210 = vsel %vm717, %v6209, %v5906
    %v6211 = vrot.slane %v5906, 4
    %v6212 = vsel %vm717, %v5914, %v6211
    %v6214 = vunpack.c.l.s4 1983009808
    %v6215 = vunpack.c.0.s8 %v6214
    %v6216 = vperm.slane %v6210, %v6215
    %v6218 = vunpack.c.l.s4 1983009808
    %v6219 = vunpack.c.0.s8 %v6218
    %v6220 = vperm.slane %v6212, %v6219
    %v6221 = vrot.slane %v5918, 4
    %v6222 = vsel %vm717, %v6221, %v5910
    %v6223 = vrot.slane %v5910, 4
    %v6224 = vsel %vm717, %v5918, %v6223
    %v6226 = vunpack.c.l.s4 1983009808
    %v6227 = vunpack.c.0.s8 %v6226
    %v6228 = vperm.slane %v6222, %v6227
    %v6230 = vunpack.c.l.s4 1983009808
    %v6231 = vunpack.c.0.s8 %v6230
    %v6232 = vperm.slane %v6224, %v6231
    %v6233 = vrot.slane %v5930, 4
    %v6234 = vsel %vm717, %v6233, %v5922
    %v6235 = vrot.slane %v5922, 4
    %v6236 = vsel %vm717, %v5930, %v6235
    %v6238 = vunpack.c.l.s4 1983009808
    %v6239 = vunpack.c.0.s8 %v6238
    %v6240 = vperm.slane %v6234, %v6239
    %v6242 = vunpack.c.l.s4 1983009808
    %v6243 = vunpack.c.0.s8 %v6242
    %v6244 = vperm.slane %v6236, %v6243
    %v6245 = vrot.slane %v5934, 4
    %v6246 = vsel %vm717, %v6245, %v5926
    %v6247 = vrot.slane %v5926, 4
    %v6248 = vsel %vm717, %v5934, %v6247
    %v6250 = vunpack.c.l.s4 1983009808
    %v6251 = vunpack.c.0.s8 %v6250
    %v6252 = vperm.slane %v6246, %v6251
    %v6254 = vunpack.c.l.s4 1983009808
    %v6255 = vunpack.c.0.s8 %v6254
    %v6256 = vperm.slane %v6248, %v6255
    %v6257 = vrot.slane %v6228, 4
    %v6258 = vsel %vm717, %v6257, %v6216
    %v6259 = vrot.slane %v6216, 4
    %v6260 = vsel %vm717, %v6228, %v6259
    %v6262 = vunpack.c.l.s4 1934713408
    %v6263 = vunpack.c.0.s8 %v6262
    %v6264 = vperm.slane %v6258, %v6263
    %v6266 = vunpack.c.l.s4 1934713408
    %v6267 = vunpack.c.0.s8 %v6266
    %v6268 = vperm.slane %v6260, %v6267
    %v6269 = vrot.slane %v6232, 4
    %v6270 = vsel %vm717, %v6269, %v6220
    %v6271 = vrot.slane %v6220, 4
    %v6272 = vsel %vm717, %v6232, %v6271
    %v6274 = vunpack.c.l.s4 1934713408
    %v6275 = vunpack.c.0.s8 %v6274
    %v6276 = vperm.slane %v6270, %v6275
    %v6278 = vunpack.c.l.s4 1934713408
    %v6279 = vunpack.c.0.s8 %v6278
    %v6280 = vperm.slane %v6272, %v6279
    %v6281 = vrot.slane %v6252, 4
    %v6282 = vsel %vm717, %v6281, %v6240
    %v6283 = vrot.slane %v6240, 4
    %v6284 = vsel %vm717, %v6252, %v6283
    %v6286 = vunpack.c.l.s4 1934713408
    %v6287 = vunpack.c.0.s8 %v6286
    %v6288 = vperm.slane %v6282, %v6287
    %v6290 = vunpack.c.l.s4 1934713408
    %v6291 = vunpack.c.0.s8 %v6290
    %v6292 = vperm.slane %v6284, %v6291
    %v6293 = vrot.slane %v6256, 4
    %v6294 = vsel %vm717, %v6293, %v6244
    %v6295 = vrot.slane %v6244, 4
    %v6296 = vsel %vm717, %v6256, %v6295
    %v6298 = vunpack.c.l.s4 1934713408
    %v6299 = vunpack.c.0.s8 %v6298
    %v6300 = vperm.slane %v6294, %v6299
    %v6302 = vunpack.c.l.s4 1934713408
    %v6303 = vunpack.c.0.s8 %v6302
    %v6304 = vperm.slane %v6296, %v6303
    %v6305 = vrot.slane %v6288, 4
    %v6306 = vsel %vm717, %v6305, %v6264
    %v6307 = vrot.slane %v6264, 4
    %v6308 = vsel %vm717, %v6288, %v6307
    %v6309 = vrot.slane %v6292, 4
    %v6310 = vsel %vm717, %v6309, %v6268
    %v6311 = vrot.slane %v6268, 4
    %v6312 = vsel %vm717, %v6292, %v6311
    %v6313 = vrot.slane %v6300, 4
    %v6314 = vsel %vm717, %v6313, %v6276
    %v6315 = vrot.slane %v6276, 4
    %v6316 = vsel %vm717, %v6300, %v6315
    %v6317 = vrot.slane %v6304, 4
    %v6318 = vsel %vm717, %v6317, %v6280
    %v6319 = vrot.slane %v6280, 4
    %v6320 = vsel %vm717, %v6304, %v6319
    %v6321 = vrot.slane %v5852, 4
    %v6322 = vsel %vm717, %v6321, %v5844
    %v6323 = vrot.slane %v5844, 4
    %v6324 = vsel %vm717, %v5852, %v6323
    %v6326 = vunpack.c.l.s4 1983009808
    %v6327 = vunpack.c.0.s8 %v6326
    %v6328 = vperm.slane %v6322, %v6327
    %v6330 = vunpack.c.l.s4 1983009808
    %v6331 = vunpack.c.0.s8 %v6330
    %v6332 = vperm.slane %v6324, %v6331
    %v6333 = vrot.slane %v5856, 4
    %v6334 = vsel %vm717, %v6333, %v5848
    %v6335 = vrot.slane %v5848, 4
    %v6336 = vsel %vm717, %v5856, %v6335
    %v6338 = vunpack.c.l.s4 1983009808
    %v6339 = vunpack.c.0.s8 %v6338
    %v6340 = vperm.slane %v6334, %v6339
    %v6342 = vunpack.c.l.s4 1983009808
    %v6343 = vunpack.c.0.s8 %v6342
    %v6344 = vperm.slane %v6336, %v6343
    %v6345 = vrot.slane %v5868, 4
    %v6346 = vsel %vm717, %v6345, %v5860
    %v6347 = vrot.slane %v5860, 4
    %v6348 = vsel %vm717, %v5868, %v6347
    %v6350 = vunpack.c.l.s4 1983009808
    %v6351 = vunpack.c.0.s8 %v6350
    %v6352 = vperm.slane %v6346, %v6351
    %v6354 = vunpack.c.l.s4 1983009808
    %v6355 = vunpack.c.0.s8 %v6354
    %v6356 = vperm.slane %v6348, %v6355
    %v6357 = vrot.slane %v5872, 4
    %v6358 = vsel %vm717, %v6357, %v5864
    %v6359 = vrot.slane %v5864, 4
    %v6360 = vsel %vm717, %v5872, %v6359
    %v6362 = vunpack.c.l.s4 1983009808
    %v6363 = vunpack.c.0.s8 %v6362
    %v6364 = vperm.slane %v6358, %v6363
    %v6366 = vunpack.c.l.s4 1983009808
    %v6367 = vunpack.c.0.s8 %v6366
    %v6368 = vperm.slane %v6360, %v6367
    %v6369 = vrot.slane %v6340, 4
    %v6370 = vsel %vm717, %v6369, %v6328
    %v6371 = vrot.slane %v6328, 4
    %v6372 = vsel %vm717, %v6340, %v6371
    %v6374 = vunpack.c.l.s4 1934713408
    %v6375 = vunpack.c.0.s8 %v6374
    %v6376 = vperm.slane %v6370, %v6375
    %v6378 = vunpack.c.l.s4 1934713408
    %v6379 = vunpack.c.0.s8 %v6378
    %v6380 = vperm.slane %v6372, %v6379
    %v6381 = vrot.slane %v6344, 4
    %v6382 = vsel %vm717, %v6381, %v6332
    %v6383 = vrot.slane %v6332, 4
    %v6384 = vsel %vm717, %v6344, %v6383
    %v6386 = vunpack.c.l.s4 1934713408
    %v6387 = vunpack.c.0.s8 %v6386
    %v6388 = vperm.slane %v6382, %v6387
    %v6390 = vunpack.c.l.s4 1934713408
    %v6391 = vunpack.c.0.s8 %v6390
    %v6392 = vperm.slane %v6384, %v6391
    %v6393 = vrot.slane %v6364, 4
    %v6394 = vsel %vm717, %v6393, %v6352
    %v6395 = vrot.slane %v6352, 4
    %v6396 = vsel %vm717, %v6364, %v6395
    %v6398 = vunpack.c.l.s4 1934713408
    %v6399 = vunpack.c.0.s8 %v6398
    %v6400 = vperm.slane %v6394, %v6399
    %v6402 = vunpack.c.l.s4 1934713408
    %v6403 = vunpack.c.0.s8 %v6402
    %v6404 = vperm.slane %v6396, %v6403
    %v6405 = vrot.slane %v6368, 4
    %v6406 = vsel %vm717, %v6405, %v6356
    %v6407 = vrot.slane %v6356, 4
    %v6408 = vsel %vm717, %v6368, %v6407
    %v6410 = vunpack.c.l.s4 1934713408
    %v6411 = vunpack.c.0.s8 %v6410
    %v6412 = vperm.slane %v6406, %v6411
    %v6414 = vunpack.c.l.s4 1934713408
    %v6415 = vunpack.c.0.s8 %v6414
    %v6416 = vperm.slane %v6408, %v6415
    %v6417 = vrot.slane %v6400, 4
    %v6418 = vsel %vm717, %v6417, %v6376
    %v6419 = vrot.slane %v6376, 4
    %v6420 = vsel %vm717, %v6400, %v6419
    %v6421 = vrot.slane %v6404, 4
    %v6422 = vsel %vm717, %v6421, %v6380
    %v6423 = vrot.slane %v6380, 4
    %v6424 = vsel %vm717, %v6404, %v6423
    %v6425 = vrot.slane %v6412, 4
    %v6426 = vsel %vm717, %v6425, %v6388
    %v6427 = vrot.slane %v6388, 4
    %v6428 = vsel %vm717, %v6412, %v6427
    %v6429 = vrot.slane %v6416, 4
    %v6430 = vsel %vm717, %v6429, %v6392
    %v6431 = vrot.slane %v6392, 4
    %v6432 = vsel %vm717, %v6416, %v6431
    %v6433 = vrot.slane %v5884, 4
    %v6434 = vsel %vm717, %v6433, %v5876
    %v6435 = vrot.slane %v5876, 4
    %v6436 = vsel %vm717, %v5884, %v6435
    %v6438 = vunpack.c.l.s4 1983009808
    %v6439 = vunpack.c.0.s8 %v6438
    %v6440 = vperm.slane %v6434, %v6439
    %v6442 = vunpack.c.l.s4 1983009808
    %v6443 = vunpack.c.0.s8 %v6442
    %v6444 = vperm.slane %v6436, %v6443
    %v6445 = vrot.slane %v5888, 4
    %v6446 = vsel %vm717, %v6445, %v5880
    %v6447 = vrot.slane %v5880, 4
    %v6448 = vsel %vm717, %v5888, %v6447
    %v6450 = vunpack.c.l.s4 1983009808
    %v6451 = vunpack.c.0.s8 %v6450
    %v6452 = vperm.slane %v6446, %v6451
    %v6454 = vunpack.c.l.s4 1983009808
    %v6455 = vunpack.c.0.s8 %v6454
    %v6456 = vperm.slane %v6448, %v6455
    %v6457 = vrot.slane %v5900, 4
    %v6458 = vsel %vm717, %v6457, %v5892
    %v6459 = vrot.slane %v5892, 4
    %v6460 = vsel %vm717, %v5900, %v6459
    %v6462 = vunpack.c.l.s4 1983009808
    %v6463 = vunpack.c.0.s8 %v6462
    %v6464 = vperm.slane %v6458, %v6463
    %v6466 = vunpack.c.l.s4 1983009808
    %v6467 = vunpack.c.0.s8 %v6466
    %v6468 = vperm.slane %v6460, %v6467
    %v6469 = vrot.slane %v5904, 4
    %v6470 = vsel %vm717, %v6469, %v5896
    %v6471 = vrot.slane %v5896, 4
    %v6472 = vsel %vm717, %v5904, %v6471
    %v6474 = vunpack.c.l.s4 1983009808
    %v6475 = vunpack.c.0.s8 %v6474
    %v6476 = vperm.slane %v6470, %v6475
    %v6478 = vunpack.c.l.s4 1983009808
    %v6479 = vunpack.c.0.s8 %v6478
    %v6480 = vperm.slane %v6472, %v6479
    %v6481 = vrot.slane %v6452, 4
    %v6482 = vsel %vm717, %v6481, %v6440
    %v6483 = vrot.slane %v6440, 4
    %v6484 = vsel %vm717, %v6452, %v6483
    %v6486 = vunpack.c.l.s4 1934713408
    %v6487 = vunpack.c.0.s8 %v6486
    %v6488 = vperm.slane %v6482, %v6487
    %v6490 = vunpack.c.l.s4 1934713408
    %v6491 = vunpack.c.0.s8 %v6490
    %v6492 = vperm.slane %v6484, %v6491
    %v6493 = vrot.slane %v6456, 4
    %v6494 = vsel %vm717, %v6493, %v6444
    %v6495 = vrot.slane %v6444, 4
    %v6496 = vsel %vm717, %v6456, %v6495
    %v6498 = vunpack.c.l.s4 1934713408
    %v6499 = vunpack.c.0.s8 %v6498
    %v6500 = vperm.slane %v6494, %v6499
    %v6502 = vunpack.c.l.s4 1934713408
    %v6503 = vunpack.c.0.s8 %v6502
    %v6504 = vperm.slane %v6496, %v6503
    %v6505 = vrot.slane %v6476, 4
    %v6506 = vsel %vm717, %v6505, %v6464
    %v6507 = vrot.slane %v6464, 4
    %v6508 = vsel %vm717, %v6476, %v6507
    %v6510 = vunpack.c.l.s4 1934713408
    %v6511 = vunpack.c.0.s8 %v6510
    %v6512 = vperm.slane %v6506, %v6511
    %v6514 = vunpack.c.l.s4 1934713408
    %v6515 = vunpack.c.0.s8 %v6514
    %v6516 = vperm.slane %v6508, %v6515
    %v6517 = vrot.slane %v6480, 4
    %v6518 = vsel %vm717, %v6517, %v6468
    %v6519 = vrot.slane %v6468, 4
    %v6520 = vsel %vm717, %v6480, %v6519
    %v6522 = vunpack.c.l.s4 1934713408
    %v6523 = vunpack.c.0.s8 %v6522
    %v6524 = vperm.slane %v6518, %v6523
    %v6526 = vunpack.c.l.s4 1934713408
    %v6527 = vunpack.c.0.s8 %v6526
    %v6528 = vperm.slane %v6520, %v6527
    %v6529 = vrot.slane %v6512, 4
    %v6530 = vsel %vm717, %v6529, %v6488
    %v6531 = vrot.slane %v6488, 4
    %v6532 = vsel %vm717, %v6512, %v6531
    %v6533 = vrot.slane %v6516, 4
    %v6534 = vsel %vm717, %v6533, %v6492
    %v6535 = vrot.slane %v6492, 4
    %v6536 = vsel %vm717, %v6516, %v6535
    %v6537 = vrot.slane %v6524, 4
    %v6538 = vsel %vm717, %v6537, %v6500
    %v6539 = vrot.slane %v6500, 4
    %v6540 = vsel %vm717, %v6524, %v6539
    %v6541 = vrot.slane %v6528, 4
    %v6542 = vsel %vm717, %v6541, %v6504
    %v6543 = vrot.slane %v6504, 4
    %v6544 = vsel %vm717, %v6528, %v6543
    %v6545 = vrot.slane %v5916, 4
    %v6546 = vsel %vm717, %v6545, %v5908
    %v6547 = vrot.slane %v5908, 4
    %v6548 = vsel %vm717, %v5916, %v6547
    %v6550 = vunpack.c.l.s4 1983009808
    %v6551 = vunpack.c.0.s8 %v6550
    %v6552 = vperm.slane %v6546, %v6551
    %v6554 = vunpack.c.l.s4 1983009808
    %v6555 = vunpack.c.0.s8 %v6554
    %v6556 = vperm.slane %v6548, %v6555
    %v6557 = vrot.slane %v5920, 4
    %v6558 = vsel %vm717, %v6557, %v5912
    %v6559 = vrot.slane %v5912, 4
    %v6560 = vsel %vm717, %v5920, %v6559
    %v6562 = vunpack.c.l.s4 1983009808
    %v6563 = vunpack.c.0.s8 %v6562
    %v6564 = vperm.slane %v6558, %v6563
    %v6566 = vunpack.c.l.s4 1983009808
    %v6567 = vunpack.c.0.s8 %v6566
    %v6568 = vperm.slane %v6560, %v6567
    %v6569 = vrot.slane %v5932, 4
    %v6570 = vsel %vm717, %v6569, %v5924
    %v6571 = vrot.slane %v5924, 4
    %v6572 = vsel %vm717, %v5932, %v6571
    %v6574 = vunpack.c.l.s4 1983009808
    %v6575 = vunpack.c.0.s8 %v6574
    %v6576 = vperm.slane %v6570, %v6575
    %v6578 = vunpack.c.l.s4 1983009808
    %v6579 = vunpack.c.0.s8 %v6578
    %v6580 = vperm.slane %v6572, %v6579
    %v6581 = vrot.slane %v5936, 4
    %v6582 = vsel %vm717, %v6581, %v5928
    %v6583 = vrot.slane %v5928, 4
    %v6584 = vsel %vm717, %v5936, %v6583
    %v6586 = vunpack.c.l.s4 1983009808
    %v6587 = vunpack.c.0.s8 %v6586
    %v6588 = vperm.slane %v6582, %v6587
    %v6590 = vunpack.c.l.s4 1983009808
    %v6591 = vunpack.c.0.s8 %v6590
    %v6592 = vperm.slane %v6584, %v6591
    %v6593 = vrot.slane %v6564, 4
    %v6594 = vsel %vm717, %v6593, %v6552
    %v6595 = vrot.slane %v6552, 4
    %v6596 = vsel %vm717, %v6564, %v6595
    %v6598 = vunpack.c.l.s4 1934713408
    %v6599 = vunpack.c.0.s8 %v6598
    %v6600 = vperm.slane %v6594, %v6599
    %v6602 = vunpack.c.l.s4 1934713408
    %v6603 = vunpack.c.0.s8 %v6602
    %v6604 = vperm.slane %v6596, %v6603
    %v6605 = vrot.slane %v6568, 4
    %v6606 = vsel %vm717, %v6605, %v6556
    %v6607 = vrot.slane %v6556, 4
    %v6608 = vsel %vm717, %v6568, %v6607
    %v6610 = vunpack.c.l.s4 1934713408
    %v6611 = vunpack.c.0.s8 %v6610
    %v6612 = vperm.slane %v6606, %v6611
    %v6614 = vunpack.c.l.s4 1934713408
    %v6615 = vunpack.c.0.s8 %v6614
    %v6616 = vperm.slane %v6608, %v6615
    %v6617 = vrot.slane %v6588, 4
    %v6618 = vsel %vm717, %v6617, %v6576
    %v6619 = vrot.slane %v6576, 4
    %v6620 = vsel %vm717, %v6588, %v6619
    %v6622 = vunpack.c.l.s4 1934713408
    %v6623 = vunpack.c.0.s8 %v6622
    %v6624 = vperm.slane %v6618, %v6623
    %v6626 = vunpack.c.l.s4 1934713408
    %v6627 = vunpack.c.0.s8 %v6626
    %v6628 = vperm.slane %v6620, %v6627
    %v6629 = vrot.slane %v6592, 4
    %v6630 = vsel %vm717, %v6629, %v6580
    %v6631 = vrot.slane %v6580, 4
    %v6632 = vsel %vm717, %v6592, %v6631
    %v6634 = vunpack.c.l.s4 1934713408
    %v6635 = vunpack.c.0.s8 %v6634
    %v6636 = vperm.slane %v6630, %v6635
    %v6638 = vunpack.c.l.s4 1934713408
    %v6639 = vunpack.c.0.s8 %v6638
    %v6640 = vperm.slane %v6632, %v6639
    %v6641 = vrot.slane %v6624, 4
    %v6642 = vsel %vm717, %v6641, %v6600
    %v6643 = vrot.slane %v6600, 4
    %v6644 = vsel %vm717, %v6624, %v6643
    %v6645 = vrot.slane %v6628, 4
    %v6646 = vsel %vm717, %v6645, %v6604
    %v6647 = vrot.slane %v6604, 4
    %v6648 = vsel %vm717, %v6628, %v6647
    %v6649 = vrot.slane %v6636, 4
    %v6650 = vsel %vm717, %v6649, %v6612
    %v6651 = vrot.slane %v6612, 4
    %v6652 = vsel %vm717, %v6636, %v6651
    %v6653 = vrot.slane %v6640, 4
    %v6654 = vsel %vm717, %v6653, %v6616
    %v6655 = vrot.slane %v6616, 4
    %v6656 = vsel %vm717, %v6640, %v6655
    %6660 = vrot.lane.b32.xlu0 %v6084, 16
    %v6661 = vpop.permute.xlu0 %6660
    %6662 = vrot.lane.b32.xlu0 %v6196, 16
    %v6663 = vpop.permute.xlu0 %6662
    %6664 = vrot.lane.b32.xlu0 %v6308, 16
    %v6665 = vpop.permute.xlu0 %6664
    %6672 = vrot.lane.b32.xlu0 %v6086, 32
    %v6673 = vpop.permute.xlu0 %6672
    %6674 = vrot.lane.b32.xlu0 %v6198, 32
    %v6675 = vpop.permute.xlu0 %6674
    %6676 = vrot.lane.b32.xlu0 %v6310, 32
    %v6677 = vpop.permute.xlu0 %6676
    %6684 = vrot.lane.b32.xlu0 %v6088, 48
    %v6685 = vpop.permute.xlu0 %6684
    %6686 = vrot.lane.b32.xlu0 %v6200, 48
    %v6687 = vpop.permute.xlu0 %6686
    %6688 = vrot.lane.b32.xlu0 %v6312, 48
    %v6689 = vpop.permute.xlu0 %6688
    %6696 = vrot.lane.b32.xlu0 %v6090, 64
    %v6697 = vpop.permute.xlu0 %6696
    %6698 = vrot.lane.b32.xlu0 %v6202, 64
    %v6699 = vpop.permute.xlu0 %6698
    %6700 = vrot.lane.b32.xlu0 %v6314, 64
    %v6701 = vpop.permute.xlu0 %6700
    %6708 = vrot.lane.b32.xlu0 %v6092, 80
    %v6709 = vpop.permute.xlu0 %6708
    %6710 = vrot.lane.b32.xlu0 %v6204, 80
    %v6711 = vpop.permute.xlu0 %6710
    %6712 = vrot.lane.b32.xlu0 %v6316, 80
    %v6713 = vpop.permute.xlu0 %6712
    %6720 = vrot.lane.b32.xlu0 %v6094, 96
    %v6721 = vpop.permute.xlu0 %6720
    %6722 = vrot.lane.b32.xlu0 %v6206, 96
    %v6723 = vpop.permute.xlu0 %6722
    %6724 = vrot.lane.b32.xlu0 %v6318, 96
    %v6725 = vpop.permute.xlu0 %6724
    %6732 = vrot.lane.b32.xlu0 %v6096, 112
    %v6733 = vpop.permute.xlu0 %6732
    %6734 = vrot.lane.b32.xlu0 %v6208, 112
    %v6735 = vpop.permute.xlu0 %6734
    %6736 = vrot.lane.b32.xlu0 %v6320, 112
    %v6737 = vpop.permute.xlu0 %6736
    %6744 = vrot.lane.b32.xlu0 %v6420, 16
    %v6745 = vpop.permute.xlu0 %6744
    %6746 = vrot.lane.b32.xlu0 %v6532, 16
    %v6747 = vpop.permute.xlu0 %6746
    %6748 = vrot.lane.b32.xlu0 %v6644, 16
    %v6749 = vpop.permute.xlu0 %6748
    %6756 = vrot.lane.b32.xlu0 %v6422, 32
    %v6757 = vpop.permute.xlu0 %6756
    %6758 = vrot.lane.b32.xlu0 %v6534, 32
    %v6759 = vpop.permute.xlu0 %6758
    %6760 = vrot.lane.b32.xlu0 %v6646, 32
    %v6761 = vpop.permute.xlu0 %6760
    %6768 = vrot.lane.b32.xlu0 %v6424, 48
    %v6769 = vpop.permute.xlu0 %6768
    %6770 = vrot.lane.b32.xlu0 %v6536, 48
    %v6771 = vpop.permute.xlu0 %6770
    %6772 = vrot.lane.b32.xlu0 %v6648, 48
    %v6773 = vpop.permute.xlu0 %6772
    %6780 = vrot.lane.b32.xlu0 %v6426, 64
    %v6781 = vpop.permute.xlu0 %6780
    %6782 = vrot.lane.b32.xlu0 %v6538, 64
    %v6783 = vpop.permute.xlu0 %6782
    %6784 = vrot.lane.b32.xlu0 %v6650, 64
    %v6785 = vpop.permute.xlu0 %6784
    %6792 = vrot.lane.b32.xlu0 %v6428, 80
    %v6793 = vpop.permute.xlu0 %6792
    %6794 = vrot.lane.b32.xlu0 %v6540, 80
    %v6795 = vpop.permute.xlu0 %6794
    %6796 = vrot.lane.b32.xlu0 %v6652, 80
    %v6797 = vpop.permute.xlu0 %6796
    %6804 = vrot.lane.b32.xlu0 %v6430, 96
    %v6805 = vpop.permute.xlu0 %6804
    %6806 = vrot.lane.b32.xlu0 %v6542, 96
    %v6807 = vpop.permute.xlu0 %6806
    %6808 = vrot.lane.b32.xlu0 %v6654, 96
    %v6809 = vpop.permute.xlu0 %6808
    %6816 = vrot.lane.b32.xlu0 %v6432, 112
    %v6817 = vpop.permute.xlu0 %6816
    %6818 = vrot.lane.b32.xlu0 %v6544, 112
    %v6819 = vpop.permute.xlu0 %6818
    %6820 = vrot.lane.b32.xlu0 %v6656, 112
    %v6821 = vpop.permute.xlu0 %6820
    %v6825 = vsel %vm390, %v6082, %v6661
    %v6826 = vsel %vm390, %v6194, %v6663
    %v6827 = vsel %vm390, %v6306, %v6665
    %v6828 = vsel %vm3696, %v6825, %v6673
    %v6829 = vsel %vm3696, %v6826, %v6675
    %v6830 = vsel %vm3696, %v6827, %v6677
    %v6831 = vsel %vm3700, %v6828, %v6685
    %v6832 = vsel %vm3700, %v6829, %v6687
    %v6833 = vsel %vm3700, %v6830, %v6689
    %v6834 = vsel %vm3704, %v6831, %v6697
    %v6835 = vsel %vm3704, %v6832, %v6699
    %v6836 = vsel %vm3704, %v6833, %v6701
    %v6837 = vsel %vm3708, %v6834, %v6709
    %v6838 = vsel %vm3708, %v6835, %v6711
    %v6839 = vsel %vm3708, %v6836, %v6713
    %v6840 = vsel %vm3712, %v6837, %v6721
    %v6841 = vsel %vm3712, %v6838, %v6723
    %v6842 = vsel %vm3712, %v6839, %v6725
    %v6843 = vsel %vm3716, %v6840, %v6733
    %v6844 = vsel %vm3716, %v6841, %v6735
    %v6845 = vsel %vm3716, %v6842, %v6737
    %v6846 = vsel %vm390, %v6418, %v6745
    %v6847 = vsel %vm390, %v6530, %v6747
    %v6848 = vsel %vm390, %v6642, %v6749
    %v6849 = vsel %vm3696, %v6846, %v6757
    %v6850 = vsel %vm3696, %v6847, %v6759
    %v6851 = vsel %vm3696, %v6848, %v6761
    %v6852 = vsel %vm3700, %v6849, %v6769
    %v6853 = vsel %vm3700, %v6850, %v6771
    %v6854 = vsel %vm3700, %v6851, %v6773
    %v6855 = vsel %vm3704, %v6852, %v6781
    %v6856 = vsel %vm3704, %v6853, %v6783
    %v6857 = vsel %vm3704, %v6854, %v6785
    %v6858 = vsel %vm3708, %v6855, %v6793
    %v6859 = vsel %vm3708, %v6856, %v6795
    %v6860 = vsel %vm3708, %v6857, %v6797
    %v6861 = vsel %vm3712, %v6858, %v6805
    %v6862 = vsel %vm3712, %v6859, %v6807
    %v6863 = vsel %vm3712, %v6860, %v6809
    %v6864 = vsel %vm3716, %v6861, %v6817
    %v6865 = vsel %vm3716, %v6862, %v6819
    %v6866 = vsel %vm3716, %v6863, %v6821
    %v6867 = vmul.f32 %v3717, 0.5
    %v6868 = vmul.f32 %v3738, 0.5
    %v6869 = vmul.f32 %v4791, 0.5
    %v6870 = vmul.f32 %v4812, 0.5
    %v6871 = vmul.f32 %v5817, 0.5
    %v6872 = vmul.f32 %v5838, 0.5
    %v6873 = vmul.f32 %v6843, 0.5
    %v6874 = vmul.f32 %v6864, 0.5
    %v6875 = vmul.f32 %v3718, 0.5
    %v6876 = vmul.f32 %v3739, 0.5
    %v6877 = vmul.f32 %v4792, 0.5
    %v6878 = vmul.f32 %v4813, 0.5
    %v6879 = vmul.f32 %v5818, 0.5
    %v6880 = vmul.f32 %v5839, 0.5
    %v6881 = vmul.f32 %v6844, 0.5
    %v6882 = vmul.f32 %v6865, 0.5
    %v6883 = vmul.f32 %v3719, 0.5
    %v6884 = vmul.f32 %v3740, 0.5
    %v6885 = vmul.f32 %v4793, 0.5
    %v6886 = vmul.f32 %v4814, 0.5
    %v6887 = vmul.f32 %v5819, 0.5
    %v6888 = vmul.f32 %v5840, 0.5
    %v6889 = vmul.f32 %v6845, 0.5
    %v6890 = vmul.f32 %v6866, 0.5
    %v6891 = vadd.f32 %v24, %v6867
    %v6892 = vadd.f32 %v25, %v6868
    %v6893 = vadd.f32 %v26, %v6869
    %v6894 = vadd.f32 %v27, %v6870
    %v6895 = vadd.f32 %v28, %v6871
    %v6896 = vadd.f32 %v29, %v6872
    %v6897 = vadd.f32 %v30, %v6873
    %v6898 = vadd.f32 %v31, %v6874
    %v6899 = vadd.f32 %v32, %v6875
    %v6900 = vadd.f32 %v33, %v6876
    %v6901 = vadd.f32 %v34, %v6877
    %v6902 = vadd.f32 %v35, %v6878
    %v6903 = vadd.f32 %v36, %v6879
    %v6904 = vadd.f32 %v37, %v6880
    %v6905 = vadd.f32 %v38, %v6881
    %v6906 = vadd.f32 %v39, %v6882
    %v6907 = vadd.f32 %v40, %v6883
    %v6908 = vadd.f32 %v41, %v6884
    %v6909 = vadd.f32 %v42, %v6885
    %v6910 = vadd.f32 %v43, %v6886
    %v6911 = vadd.f32 %v44, %v6887
    %v6912 = vadd.f32 %v45, %v6888
    %v6913 = vadd.f32 %v46, %v6889
    %v6914 = vadd.f32 %v47, %v6890
    %6915 = vst [vmem:[#allocation2] sm:$0xff] %v6891
    %6916 = vst [vmem:[#allocation2 + $0x8] sm:$0xff] %v6892
    %6917 = vst [vmem:[#allocation2 + $0x10] sm:$0xff] %v6893
    %6918 = vst [vmem:[#allocation2 + $0x18] sm:$0xff] %v6894
    %6919 = vst [vmem:[#allocation2 + $0x20] sm:$0xff] %v6895
    %6920 = vst [vmem:[#allocation2 + $0x28] sm:$0xff] %v6896
    %6921 = vst [vmem:[#allocation2 + $0x30] sm:$0xff] %v6897
    %6922 = vst [vmem:[#allocation2 + $0x38] sm:$0xff] %v6898
    %6923 = vst [vmem:[#allocation2 + $0x40] sm:$0xff] %v6899
    %6924 = vst [vmem:[#allocation2 + $0x48] sm:$0xff] %v6900
    %6925 = vst [vmem:[#allocation2 + $0x50] sm:$0xff] %v6901
    %6926 = vst [vmem:[#allocation2 + $0x58] sm:$0xff] %v6902
    %6927 = vst [vmem:[#allocation2 + $0x60] sm:$0xff] %v6903
    %6928 = vst [vmem:[#allocation2 + $0x68] sm:$0xff] %v6904
    %6929 = vst [vmem:[#allocation2 + $0x70] sm:$0xff] %v6905
    %6930 = vst [vmem:[#allocation2 + $0x78] sm:$0xff] %v6906
    %6931 = vst [vmem:[#allocation2 + $0x80] sm:$0xff] %v6907
    %6932 = vst [vmem:[#allocation2 + $0x88] sm:$0xff] %v6908
    %6933 = vst [vmem:[#allocation2 + $0x90] sm:$0xff] %v6909
    %6934 = vst [vmem:[#allocation2 + $0x98] sm:$0xff] %v6910
    %6935 = vst [vmem:[#allocation2 + $0xa0] sm:$0xff] %v6911
    %6936 = vst [vmem:[#allocation2 + $0xa8] sm:$0xff] %v6912
    %6937 = vst [vmem:[#allocation2 + $0xb0] sm:$0xff] %v6913
    %6938 = vst [vmem:[#allocation2 + $0xb8] sm:$0xff] %v6914
    // Predicated region
    $region26: #{tpu_custom_call.1} parent=1 // pred_check
      _
    $region27: #{tpu_custom_call.1} parent=1 // pred_check_branch
      %6940 = sbr.rel (0) target = $region29
    $region28: #{tpu_custom_call.1} parent=1 // pred_region
      %6942 = vsyncadd [#allocation3], 0
      %s6943 = sshll.u32 [#allocation2], 4
      %s6944 = int_to_ptr.vmem [resolvable:$true] %s6943
      %s6945 = sshll.u32 %s6, 4
      %s6946 = int_to_ptr.hbm [resolvable:$true] %s6945
      %6951 = dma.vmem_to_hbm [thread:$0]  %s6944, 3072, %s6946, [#allocation3], 1024, 1024, 64
    $region29: #{tpu_custom_call.1} parent=1 // pred_fallthru
      _
    // Predicated region
    $region30: #{tpu_custom_call.1} parent=1 // pred_check
      _
    $region31: #{tpu_custom_call.1} parent=1 // pred_check_branch
      %6953 = sbr.rel (0) target = $region33
    $region32: #{tpu_custom_call.1} parent=1 // pred_region
      %6955 = dma.done [#allocation3], 3072
    $region33: #{tpu_custom_call.1} parent=1 // pred_fallthru
      _
    %6956 = vsyncpa [#allocation3], 1

</llo_original>
